<compile_context>
chip_gen: v5e
topology: v5e:2x2
jax: 0.10.0
libtpu: 0.0.40
codegen_flags: <defaults>
</compile_context>

<pallas_src>
import functools
import math

import numpy as np
import jax
import jax.numpy as jnp
from jax.experimental import pallas as pl
from jax.experimental.pallas import tpu as pltpu

# ----------------------------- FLIP constants --------------------------------
PPD = 0.7 * 3840.0 / 0.7 * math.pi / 180.0      # pixels per degree (~67.02)
QC, QF = 0.7, 0.5                                # color / feature exponents
PC, PT = 0.4, 0.95                               # error redistribution params

_A_RGB2XYZ = np.array(
    [[10135552 / 24577794, 8788810 / 24577794, 4435075 / 24577794],
     [2613072 / 12288897, 8788810 / 12288897, 887015 / 12288897],
     [1425312 / 73733382, 8788810 / 73733382, 70074185 / 73733382]],
    dtype=np.float64)
_A_XYZ2RGB = np.array(
    [[3.241003275, -1.537398934, -0.498615861],
     [-0.969224334, 1.875930071, 0.041554224],
     [0.055639423, -0.204011202, 1.057148933]], dtype=np.float64)
_WHITE = _A_RGB2XYZ.sum(axis=1)                  # reference illuminant (Xn,Yn,Zn)

_DELTA = 6.0 / 29.0
_DELTA3 = _DELTA ** 3
_LAB_FACTOR = 1.0 / (3.0 * _DELTA * _DELTA)

# Python-float copies (weakly typed -> stay f32 inside the kernel)
_RGB2XYZ_F = [[float(v) for v in row] for row in _A_RGB2XYZ]
_XYZ2RGB_F = [[float(v) for v in row] for row in _A_XYZ2RGB]
_WHITE_F = [float(v) for v in _WHITE]
_INV_WHITE_F = [float(1.0 / v) for v in _WHITE]


def _np_linrgb2lab_hunt(rgb):
    xyz = _A_RGB2XYZ @ rgb
    t = xyz / _WHITE
    f = np.where(t > _DELTA3, np.cbrt(np.maximum(t, _DELTA3)),
                 _LAB_FACTOR * t + 4.0 / 29.0)
    L = 116.0 * f[1] - 16.0
    a = 500.0 * (f[0] - f[1])
    b = 200.0 * (f[1] - f[2])
    return np.array([L, 0.01 * L * a, 0.01 * L * b])


_GRN = _np_linrgb2lab_hunt(np.array([0.0, 1.0, 0.0]))
_BLU = _np_linrgb2lab_hunt(np.array([0.0, 0.0, 1.0]))
_CMAX = float((abs(_GRN[0] - _BLU[0])
               + math.hypot(_GRN[1] - _BLU[1], _GRN[2] - _BLU[2])) ** QC)
_PCCMAX = PC * _CMAX


# ----------------------- spatial filters (host precompute) -------------------
def _csf_filter_2d(channel):
    a1, b1, a2, b2 = {"A": (1.0, 0.0047, 0.0, 1e-5),
                      "RG": (1.0, 0.0053, 0.0, 1e-5),
                      "BY": (34.1, 0.04, 13.5, 0.025)}[channel]
    max_b = 0.04                                  # max scale param over channels
    r = int(np.ceil(3 * np.sqrt(max_b / (2 * np.pi ** 2)) * PPD))
    dx = 1.0 / PPD
    x, y = np.meshgrid(np.arange(-r, r + 1), np.arange(-r, r + 1))
    z = (x * dx) ** 2 + (y * dx) ** 2
    g = (a1 * np.sqrt(np.pi / b1) * np.exp(-np.pi ** 2 * z / b1)
         + a2 * np.sqrt(np.pi / b2) * np.exp(-np.pi ** 2 * z / b2))
    return g / g.sum()


def _feature_filter_2d(kind):
    w = 0.082
    sd = 0.5 * w * PPD
    r = int(np.ceil(3 * sd))
    x, y = np.meshgrid(np.arange(-r, r + 1), np.arange(-r, r + 1))
    g = np.exp(-(x ** 2 + y ** 2) / (2 * sd * sd))
    gx = (-x * g) if kind == "edge" else ((x ** 2 / (sd * sd) - 1.0) * g)
    neg = -gx[gx < 0].sum()
    pos = gx[gx > 0].sum()
    return np.where(gx < 0, gx / neg, gx / pos)


def _separable_components(f2d, max_rank):
    u, s, vt = np.linalg.svd(f2d)
    comps = []
    for i in range(max_rank):
        if s[i] > 1e-7 * s[0]:
            comps.append((u[:, i] * np.sqrt(s[i]), vt[i, :] * np.sqrt(s[i])))
    return comps


def _band_left(taps, n):
    """(n, n) matrix M so M @ x == 'same' zero-padded cross-correlation of x
    with `taps` along the first axis (matches F.conv2d padding=r)."""
    r = (len(taps) - 1) // 2
    m = np.zeros((n, n), dtype=np.float64)
    for o in range(n):
        for i in range(max(0, o - r), min(n, o + r + 1)):
            m[o, i] = taps[i - o + r]
    return m


@functools.lru_cache(maxsize=None)
def _filter_banks(h, w):
    """Stacked banded matrices: every FLIP filter is bh[k] @ X @ bw[k]
    (the rank-2 BY CSF uses indices 2 and 3 summed)."""
    comps_a = _separable_components(_csf_filter_2d("A"), 1)
    comps_rg = _separable_components(_csf_filter_2d("RG"), 1)
    comps_by = _separable_components(_csf_filter_2d("BY"), 2)
    if len(comps_by) == 1:
        comps_by = comps_by + [(np.zeros_like(comps_by[0][0]),
                                np.zeros_like(comps_by[0][1]))]
    edge_c, edge_r = _separable_components(_feature_filter_2d("edge"), 1)[0]
    point_c, point_r = _separable_components(_feature_filter_2d("point"), 1)[0]

    pairs = [
        comps_a[0],            # 0: CSF A   (Y channel)
        comps_rg[0],           # 1: CSF RG  (Cx channel)
        comps_by[0],           # 2: CSF BY, component 1 (Cz channel)
        comps_by[1],           # 3: CSF BY, component 2 (Cz channel)
        (edge_c, edge_r),      # 4: edge detector, x direction
        (edge_r, edge_c),      # 5: edge detector, y direction (transposed)
        (point_c, point_r),    # 6: point detector, x direction
        (point_r, point_c),    # 7: point detector, y direction (transposed)
    ]
    bh = np.stack([_band_left(c, h) for (c, r) in pairs]).astype(np.float32)
    bw = np.stack([_band_left(r, w).T for (c, r) in pairs]).astype(np.float32)
    return jnp.asarray(bh), jnp.asarray(bw)


# --------------------------------- kernel ------------------------------------
def _flip_kernel(pre1_ref, pre2_ref, gt_ref, bh_ref, bw_ref, out_ref, *,
                 hw, useactive):
    f32 = jnp.float32

    def filt(x, k):
        y = jnp.dot(bh_ref[k], x, preferred_element_type=f32)
        return jnp.dot(y, bw_ref[k], preferred_element_type=f32)

    def srgb2lin(c):
        hi = jnp.exp(2.4 * jnp.log((jnp.maximum(c, 0.04045) + 0.055) * (1.0 / 1.055)))
        return jnp.where(c > 0.04045, hi, c * (1.0 / 12.92))

    def rgb2xyz(r, g, b):
        A = _RGB2XYZ_F
        return (A[0][0] * r + A[0][1] * g + A[0][2] * b,
                A[1][0] * r + A[1][1] * g + A[1][2] * b,
                A[2][0] * r + A[2][1] * g + A[2][2] * b)

    def xyz2ycxcz(X, Y, Z):
        xn = X * _INV_WHITE_F[0]
        yn = Y * _INV_WHITE_F[1]
        zn = Z * _INV_WHITE_F[2]
        return 116.0 * yn - 16.0, 500.0 * (xn - yn), 200.0 * (yn - zn)

    def srgb2ycxcz(r, g, b):
        return xyz2ycxcz(*rgb2xyz(srgb2lin(r), srgb2lin(g), srgb2lin(b)))

    def ycxcz2rgb(Yc, Cx, Cz):
        yy = (Yc + 16.0) * (1.0 / 116.0)
        X = (yy + Cx * (1.0 / 500.0)) * _WHITE_F[0]
        Y = yy * _WHITE_F[1]
        Z = (yy - Cz * (1.0 / 200.0)) * _WHITE_F[2]
        B = _XYZ2RGB_F
        return (B[0][0] * X + B[0][1] * Y + B[0][2] * Z,
                B[1][0] * X + B[1][1] * Y + B[1][2] * Z,
                B[2][0] * X + B[2][1] * Y + B[2][2] * Z)

    def lab_f(t):
        cube = jnp.exp(jnp.log(jnp.maximum(t, _DELTA3)) * (1.0 / 3.0))
        return jnp.where(t > _DELTA3, cube, t * _LAB_FACTOR + 4.0 / 29.0)

    def rgb2lab_hunt(r, g, b):
        X, Y, Z = rgb2xyz(r, g, b)
        fx = lab_f(X * _INV_WHITE_F[0])
        fy = lab_f(Y * _INV_WHITE_F[1])
        fz = lab_f(Z * _INV_WHITE_F[2])
        L = 116.0 * fy - 16.0
        a = 500.0 * (fx - fy)
        bb = 200.0 * (fy - fz)
        return L, (0.01 * L) * a, (0.01 * L) * bb

    def color_pipeline(Yc, Cx, Cz):
        # CSF prefilter in YCxCz, back to clamped linear RGB, then Hunt-Lab
        Yf = filt(Yc, 0)
        Cxf = filt(Cx, 1)
        Czf = filt(Cz, 2) + filt(Cz, 3)
        r, g, b = ycxcz2rgb(Yf, Cxf, Czf)
        r = jnp.clip(r, 0.0, 1.0)
        g = jnp.clip(g, 0.0, 1.0)
        b = jnp.clip(b, 0.0, 1.0)
        return rgb2lab_hunt(r, g, b)

    def feature_norms(y_norm):
        ex = filt(y_norm, 4)
        ey = filt(y_norm, 5)
        px = filt(y_norm, 6)
        py = filt(y_norm, 7)
        return jnp.sqrt(ex * ex + ey * ey), jnp.sqrt(px * px + py * py)

    # ---- load & mask (gt broadcasts over the 3 channels, as in torch) -------
    mask = 1.0 - gt_ref[0].astype(f32)             # (Cg, H, W), Cg in {1, 3}
    t = pre1_ref[0].astype(f32) * mask             # "test" image   (3, H, W)
    rr = pre2_ref[0].astype(f32) * mask            # "reference"    (3, H, W)
    t0, t1, t2 = t[0], t[1], t[2]
    r0, r1, r2 = rr[0], rr[1], rr[2]

    if useactive:
        def ch_softmax(c0, c1, c2):
            m = jnp.maximum(jnp.maximum(c0, c1), c2)
            e0 = jnp.exp(c0 - m)
            e1 = jnp.exp(c1 - m)
            e2 = jnp.exp(c2 - m)
            inv = 1.0 / (e0 + e1 + e2)
            return e0 * inv, e1 * inv, e2 * inv
        t0, t1, t2 = ch_softmax(t0, t1, t2)
        r0, r1, r2 = ch_softmax(r0, r1, r2)

    # ---- sRGB -> YCxCz opponent space ---------------------------------------
    tY, tCx, tCz = srgb2ycxcz(t0, t1, t2)
    rY, rCx, rCz = srgb2ycxcz(r0, r1, r2)

    # ---- color difference ----------------------------------------------------
    tL, ta, tb = color_pipeline(tY, tCx, tCz)
    rL, ra, rb = color_pipeline(rY, rCx, rCz)
    da = ra - ta
    db = rb - tb
    hyab = jnp.abs(rL - tL) + jnp.sqrt(da * da + db * db)
    hyab_qc = jnp.where(hyab > 0.0,
                        jnp.exp(QC * jnp.log(jnp.maximum(hyab, 1e-30))), 0.0)
    delta_e_c = jnp.where(
        hyab_qc < _PCCMAX,
        hyab_qc * (PT / _PCCMAX),
        PT + (hyab_qc - _PCCMAX) * ((1.0 - PT) / (_CMAX - _PCCMAX)))

    # ---- feature difference ---------------------------------------------------
    t_edges, t_points = feature_norms((tY + 16.0) * (1.0 / 116.0))
    r_edges, r_points = feature_norms((rY + 16.0) * (1.0 / 116.0))
    delta_e_f = jnp.maximum(jnp.abs(r_edges - t_edges),
                            jnp.abs(t_points - r_points))
    delta_e_f = jnp.sqrt(delta_e_f * (1.0 / math.sqrt(2.0)))   # (.)**qf, qf=0.5

    # ---- combine & per-image mean --------------------------------------------
    delta_e = jnp.where(delta_e_c > 0.0,
                        jnp.exp((1.0 - delta_e_f) *
                                jnp.log(jnp.maximum(delta_e_c, 1e-30))), 0.0)
    val = jnp.sum(delta_e) * (1.0 / float(hw))
    out_ref[...] = jnp.zeros((1, 1, 1), jnp.float32) + val


# --------------------------------- wrapper ------------------------------------
def changeloss_flip(pre, gt, useactive=False):
    """pre: (N, 6, H, W) float; gt: (N, 1 or 3, H, W) float -> scalar FLIP loss
    of the masked halves, matching Changelossflip.forward."""
    N, C2, H, W = pre.shape
    C = C2 // 2
    if C != 3:
        raise ValueError("FLIP loss expects RGB images: pre must have 2*3 channels")
    Cg = gt.shape[1]
    bh, bw = _filter_banks(H, W)
    nb = int(bh.shape[0])

    kernel = functools.partial(_flip_kernel, hw=H * W, useactive=useactive)

    compiler_kwargs = dict(dimension_semantics=("parallel",))
    if H * W >= 128 * 128:   # raise scoped VMEM only when the working set is big
        compiler_kwargs["vmem_limit_bytes"] = 64 * 1024 * 1024

    per_image = pl.pallas_call(
        kernel,
        out_shape=jax.ShapeDtypeStruct((N, 1, 1), jnp.float32),
        grid_spec=pltpu.PrefetchScalarGridSpec(
            num_scalar_prefetch=0,
            grid=(N,),
            in_specs=[
                # the two halves of `pre` are picked by channel block index:
                pl.BlockSpec((1, C, H, W), lambda n: (n, 0, 0, 0)),   # pre[:, :C]
                pl.BlockSpec((1, C, H, W), lambda n: (n, 1, 0, 0)),   # pre[:, C:]
                pl.BlockSpec((1, Cg, H, W), lambda n: (n, 0, 0, 0)),  # gt
                pl.BlockSpec((nb, H, H), lambda n: (0, 0, 0)),        # bh bank
                pl.BlockSpec((nb, W, W), lambda n: (0, 0, 0)),        # bw bank
            ],
            out_specs=pl.BlockSpec((1, 1, 1), lambda n: (n, 0, 0)),
        ),
        compiler_params=pltpu.CompilerParams(**compiler_kwargs),
    )(pre, pre, gt, bh, bw)

    # torch.mean over (N,1,H,W) == mean over per-image means (equal H*W)
    return jnp.mean(per_image)


if __name__ == "__main__":
    key = jax.random.PRNGKey(0)
    k1, k2 = jax.random.split(key)
    N, C, H, W = 2, 3, 16, 16                     # FLIP works on RGB -> pre has 6 ch
    pre = jax.random.uniform(k1, (N, 2 * C, H, W), dtype=jnp.float32)
    gt = (jax.random.uniform(k2, (N, 1, H, W)) > 0.5).astype(jnp.float32)

    loss = changeloss_flip(pre, gt, useactive=False)   # module default
    jax.block_until_ready(loss)
    print("KERNEL_OK")
</pallas_src>

<mosaic_0001>
module attributes {stable_mosaic.version = 11 : i64} {
  func.func @_flip_kernel(%arg0: i32, %arg1: memref<1x3x16x16xf32, #tpu.memory_space<vmem>>, %arg2: memref<1x3x16x16xf32, #tpu.memory_space<vmem>>, %arg3: memref<1x1x16x16xf32, #tpu.memory_space<vmem>>, %arg4: memref<8x16x16xf32, #tpu.memory_space<vmem>>, %arg5: memref<8x16x16xf32, #tpu.memory_space<vmem>>, %arg6: memref<1x1x1xf32, #tpu.memory_space<vmem>>) attributes {dimension_semantics = [#tpu.dimension_semantics<parallel>], iteration_bounds = array<i64: 2>, scalar_prefetch = 0 : i64, scratch_operands = 0 : i64, tpu.core_type = #tpu.core_type<tc>, window_params = [{transform_indices = @transform_0, window_bounds = array<i64: 1, 3, 16, 16>}, {transform_indices = @transform_1, window_bounds = array<i64: 1, 3, 16, 16>}, {transform_indices = @transform_2, window_bounds = array<i64: 1, 1, 16, 16>}, {pipeline_mode = #tpu.pipeline_mode<synchronous>, transform_indices = @transform_3, window_bounds = array<i64: 8, 16, 16>}, {pipeline_mode = #tpu.pipeline_mode<synchronous>, transform_indices = @transform_4, window_bounds = array<i64: 8, 16, 16>}, {transform_indices = @transform_5, window_bounds = array<i64: 1, 1, 1>}]} {
    %c0 = arith.constant 0 : index
    %c0_0 = arith.constant 0 : index
    %c0_1 = arith.constant 0 : index
    %c0_2 = arith.constant 0 : index
    %0 = vector.load %arg3[%c0, %c0_0, %c0_1, %c0_2] : memref<1x1x16x16xf32, #tpu.memory_space<vmem>>, vector<1x1x16x16xf32>
    %1 = vector.shape_cast %0 : vector<1x1x16x16xf32> to vector<1x16x16xf32>
    %cst = arith.constant 1.000000e+00 : f32
    %2 = vector.broadcast %cst : f32 to vector<1x16x16xf32>
    %3 = arith.subf %2, %1 : vector<1x16x16xf32>
    %c0_3 = arith.constant 0 : index
    %c0_4 = arith.constant 0 : index
    %c0_5 = arith.constant 0 : index
    %c0_6 = arith.constant 0 : index
    %4 = vector.load %arg1[%c0_3, %c0_4, %c0_5, %c0_6] : memref<1x3x16x16xf32, #tpu.memory_space<vmem>>, vector<1x3x16x16xf32>
    %5 = vector.shape_cast %4 : vector<1x3x16x16xf32> to vector<3x16x16xf32>
    %6 = vector.broadcast %3 : vector<1x16x16xf32> to vector<3x16x16xf32>
    %7 = arith.mulf %5, %6 : vector<3x16x16xf32>
    %c0_7 = arith.constant 0 : index
    %c0_8 = arith.constant 0 : index
    %c0_9 = arith.constant 0 : index
    %c0_10 = arith.constant 0 : index
    %8 = vector.load %arg2[%c0_7, %c0_8, %c0_9, %c0_10] : memref<1x3x16x16xf32, #tpu.memory_space<vmem>>, vector<1x3x16x16xf32>
    %9 = vector.shape_cast %8 : vector<1x3x16x16xf32> to vector<3x16x16xf32>
    %10 = vector.broadcast %3 : vector<1x16x16xf32> to vector<3x16x16xf32>
    %11 = arith.mulf %9, %10 : vector<3x16x16xf32>
    %12 = vector.extract_strided_slice %7 {offsets = [0, 0, 0], sizes = [1, 16, 16], strides = [1, 1, 1]} : vector<3x16x16xf32> to vector<1x16x16xf32>
    %13 = vector.shape_cast %12 : vector<1x16x16xf32> to vector<16x16xf32>
    %14 = vector.extract_strided_slice %7 {offsets = [1, 0, 0], sizes = [1, 16, 16], strides = [1, 1, 1]} : vector<3x16x16xf32> to vector<1x16x16xf32>
    %15 = vector.shape_cast %14 : vector<1x16x16xf32> to vector<16x16xf32>
    %16 = vector.extract_strided_slice %7 {offsets = [2, 0, 0], sizes = [1, 16, 16], strides = [1, 1, 1]} : vector<3x16x16xf32> to vector<1x16x16xf32>
    %17 = vector.shape_cast %16 : vector<1x16x16xf32> to vector<16x16xf32>
    %18 = vector.extract_strided_slice %11 {offsets = [0, 0, 0], sizes = [1, 16, 16], strides = [1, 1, 1]} : vector<3x16x16xf32> to vector<1x16x16xf32>
    %19 = vector.shape_cast %18 : vector<1x16x16xf32> to vector<16x16xf32>
    %20 = vector.extract_strided_slice %11 {offsets = [1, 0, 0], sizes = [1, 16, 16], strides = [1, 1, 1]} : vector<3x16x16xf32> to vector<1x16x16xf32>
    %21 = vector.shape_cast %20 : vector<1x16x16xf32> to vector<16x16xf32>
    %22 = vector.extract_strided_slice %11 {offsets = [2, 0, 0], sizes = [1, 16, 16], strides = [1, 1, 1]} : vector<3x16x16xf32> to vector<1x16x16xf32>
    %23 = vector.shape_cast %22 : vector<1x16x16xf32> to vector<16x16xf32>
    %cst_11 = arith.constant 4.045000e-02 : f32
    %24 = vector.broadcast %cst_11 : f32 to vector<16x16xf32>
    %25 = arith.maximumf %13, %24 : vector<16x16xf32>
    %cst_12 = arith.constant 5.500000e-02 : f32
    %26 = vector.broadcast %cst_12 : f32 to vector<16x16xf32>
    %27 = arith.addf %25, %26 : vector<16x16xf32>
    %cst_13 = arith.constant 0.947867274 : f32
    %28 = vector.broadcast %cst_13 : f32 to vector<16x16xf32>
    %29 = arith.mulf %27, %28 : vector<16x16xf32>
    %30 = math.log %29 : vector<16x16xf32>
    %cst_14 = arith.constant 2.400000e+00 : f32
    %31 = vector.broadcast %cst_14 : f32 to vector<16x16xf32>
    %32 = arith.mulf %31, %30 : vector<16x16xf32>
    %33 = math.exp %32 : vector<16x16xf32>
    %cst_15 = arith.constant 4.045000e-02 : f32
    %34 = vector.broadcast %cst_15 : f32 to vector<16x16xf32>
    %35 = arith.cmpf ogt, %13, %34 : vector<16x16xf32>
    %cst_16 = arith.constant 0.0773993805 : f32
    %36 = vector.broadcast %cst_16 : f32 to vector<16x16xf32>
    %37 = arith.mulf %13, %36 : vector<16x16xf32>
    %38 = arith.select %35, %33, %37 : vector<16x16xi1>, vector<16x16xf32>
    %cst_17 = arith.constant 4.045000e-02 : f32
    %39 = vector.broadcast %cst_17 : f32 to vector<16x16xf32>
    %40 = arith.maximumf %15, %39 : vector<16x16xf32>
    %cst_18 = arith.constant 5.500000e-02 : f32
    %41 = vector.broadcast %cst_18 : f32 to vector<16x16xf32>
    %42 = arith.addf %40, %41 : vector<16x16xf32>
    %cst_19 = arith.constant 0.947867274 : f32
    %43 = vector.broadcast %cst_19 : f32 to vector<16x16xf32>
    %44 = arith.mulf %42, %43 : vector<16x16xf32>
    %45 = math.log %44 : vector<16x16xf32>
    %cst_20 = arith.constant 2.400000e+00 : f32
    %46 = vector.broadcast %cst_20 : f32 to vector<16x16xf32>
    %47 = arith.mulf %46, %45 : vector<16x16xf32>
    %48 = math.exp %47 : vector<16x16xf32>
    %cst_21 = arith.constant 4.045000e-02 : f32
    %49 = vector.broadcast %cst_21 : f32 to vector<16x16xf32>
    %50 = arith.cmpf ogt, %15, %49 : vector<16x16xf32>
    %cst_22 = arith.constant 0.0773993805 : f32
    %51 = vector.broadcast %cst_22 : f32 to vector<16x16xf32>
    %52 = arith.mulf %15, %51 : vector<16x16xf32>
    %53 = arith.select %50, %48, %52 : vector<16x16xi1>, vector<16x16xf32>
    %cst_23 = arith.constant 4.045000e-02 : f32
    %54 = vector.broadcast %cst_23 : f32 to vector<16x16xf32>
    %55 = arith.maximumf %17, %54 : vector<16x16xf32>
    %cst_24 = arith.constant 5.500000e-02 : f32
    %56 = vector.broadcast %cst_24 : f32 to vector<16x16xf32>
    %57 = arith.addf %55, %56 : vector<16x16xf32>
    %cst_25 = arith.constant 0.947867274 : f32
    %58 = vector.broadcast %cst_25 : f32 to vector<16x16xf32>
    %59 = arith.mulf %57, %58 : vector<16x16xf32>
    %60 = math.log %59 : vector<16x16xf32>
    %cst_26 = arith.constant 2.400000e+00 : f32
    %61 = vector.broadcast %cst_26 : f32 to vector<16x16xf32>
    %62 = arith.mulf %61, %60 : vector<16x16xf32>
    %63 = math.exp %62 : vector<16x16xf32>
    %cst_27 = arith.constant 4.045000e-02 : f32
    %64 = vector.broadcast %cst_27 : f32 to vector<16x16xf32>
    %65 = arith.cmpf ogt, %17, %64 : vector<16x16xf32>
    %cst_28 = arith.constant 0.0773993805 : f32
    %66 = vector.broadcast %cst_28 : f32 to vector<16x16xf32>
    %67 = arith.mulf %17, %66 : vector<16x16xf32>
    %68 = arith.select %65, %63, %67 : vector<16x16xi1>, vector<16x16xf32>
    %cst_29 = arith.constant 0.412386566 : f32
    %69 = vector.broadcast %cst_29 : f32 to vector<16x16xf32>
    %70 = arith.mulf %69, %38 : vector<16x16xf32>
    %cst_30 = arith.constant 0.35759148 : f32
    %71 = vector.broadcast %cst_30 : f32 to vector<16x16xf32>
    %72 = arith.mulf %71, %53 : vector<16x16xf32>
    %73 = arith.addf %70, %72 : vector<16x16xf32>
    %cst_31 = arith.constant 0.180450484 : f32
    %74 = vector.broadcast %cst_31 : f32 to vector<16x16xf32>
    %75 = arith.mulf %74, %68 : vector<16x16xf32>
    %76 = arith.addf %73, %75 : vector<16x16xf32>
    %cst_32 = arith.constant 0.212636828 : f32
    %77 = vector.broadcast %cst_32 : f32 to vector<16x16xf32>
    %78 = arith.mulf %77, %38 : vector<16x16xf32>
    %cst_33 = arith.constant 0.71518296 : f32
    %79 = vector.broadcast %cst_33 : f32 to vector<16x16xf32>
    %80 = arith.mulf %79, %53 : vector<16x16xf32>
    %81 = arith.addf %78, %80 : vector<16x16xf32>
    %cst_34 = arith.constant 7.218020e-02 : f32
    %82 = vector.broadcast %cst_34 : f32 to vector<16x16xf32>
    %83 = arith.mulf %82, %68 : vector<16x16xf32>
    %84 = arith.addf %81, %83 : vector<16x16xf32>
    %cst_35 = arith.constant 0.0193306208 : f32
    %85 = vector.broadcast %cst_35 : f32 to vector<16x16xf32>
    %86 = arith.mulf %85, %38 : vector<16x16xf32>
    %cst_36 = arith.constant 0.11919716 : f32
    %87 = vector.broadcast %cst_36 : f32 to vector<16x16xf32>
    %88 = arith.mulf %87, %53 : vector<16x16xf32>
    %89 = arith.addf %86, %88 : vector<16x16xf32>
    %cst_37 = arith.constant 0.950372576 : f32
    %90 = vector.broadcast %cst_37 : f32 to vector<16x16xf32>
    %91 = arith.mulf %90, %68 : vector<16x16xf32>
    %92 = arith.addf %89, %91 : vector<16x16xf32>
    %cst_38 = arith.constant 1.05215693 : f32
    %93 = vector.broadcast %cst_38 : f32 to vector<16x16xf32>
    %94 = arith.mulf %76, %93 : vector<16x16xf32>
    %cst_39 = arith.constant 1.000000e+00 : f32
    %95 = vector.broadcast %cst_39 : f32 to vector<16x16xf32>
    %96 = arith.mulf %84, %95 : vector<16x16xf32>
    %cst_40 = arith.constant 0.91835767 : f32
    %97 = vector.broadcast %cst_40 : f32 to vector<16x16xf32>
    %98 = arith.mulf %92, %97 : vector<16x16xf32>
    %cst_41 = arith.constant 1.160000e+02 : f32
    %99 = vector.broadcast %cst_41 : f32 to vector<16x16xf32>
    %100 = arith.mulf %99, %96 : vector<16x16xf32>
    %cst_42 = arith.constant 1.600000e+01 : f32
    %101 = vector.broadcast %cst_42 : f32 to vector<16x16xf32>
    %102 = arith.subf %100, %101 : vector<16x16xf32>
    %103 = arith.subf %94, %96 : vector<16x16xf32>
    %cst_43 = arith.constant 5.000000e+02 : f32
    %104 = vector.broadcast %cst_43 : f32 to vector<16x16xf32>
    %105 = arith.mulf %104, %103 : vector<16x16xf32>
    %106 = arith.subf %96, %98 : vector<16x16xf32>
    %cst_44 = arith.constant 2.000000e+02 : f32
    %107 = vector.broadcast %cst_44 : f32 to vector<16x16xf32>
    %108 = arith.mulf %107, %106 : vector<16x16xf32>
    %cst_45 = arith.constant 4.045000e-02 : f32
    %109 = vector.broadcast %cst_45 : f32 to vector<16x16xf32>
    %110 = arith.maximumf %19, %109 : vector<16x16xf32>
    %cst_46 = arith.constant 5.500000e-02 : f32
    %111 = vector.broadcast %cst_46 : f32 to vector<16x16xf32>
    %112 = arith.addf %110, %111 : vector<16x16xf32>
    %cst_47 = arith.constant 0.947867274 : f32
    %113 = vector.broadcast %cst_47 : f32 to vector<16x16xf32>
    %114 = arith.mulf %112, %113 : vector<16x16xf32>
    %115 = math.log %114 : vector<16x16xf32>
    %cst_48 = arith.constant 2.400000e+00 : f32
    %116 = vector.broadcast %cst_48 : f32 to vector<16x16xf32>
    %117 = arith.mulf %116, %115 : vector<16x16xf32>
    %118 = math.exp %117 : vector<16x16xf32>
    %cst_49 = arith.constant 4.045000e-02 : f32
    %119 = vector.broadcast %cst_49 : f32 to vector<16x16xf32>
    %120 = arith.cmpf ogt, %19, %119 : vector<16x16xf32>
    %cst_50 = arith.constant 0.0773993805 : f32
    %121 = vector.broadcast %cst_50 : f32 to vector<16x16xf32>
    %122 = arith.mulf %19, %121 : vector<16x16xf32>
    %123 = arith.select %120, %118, %122 : vector<16x16xi1>, vector<16x16xf32>
    %cst_51 = arith.constant 4.045000e-02 : f32
    %124 = vector.broadcast %cst_51 : f32 to vector<16x16xf32>
    %125 = arith.maximumf %21, %124 : vector<16x16xf32>
    %cst_52 = arith.constant 5.500000e-02 : f32
    %126 = vector.broadcast %cst_52 : f32 to vector<16x16xf32>
    %127 = arith.addf %125, %126 : vector<16x16xf32>
    %cst_53 = arith.constant 0.947867274 : f32
    %128 = vector.broadcast %cst_53 : f32 to vector<16x16xf32>
    %129 = arith.mulf %127, %128 : vector<16x16xf32>
    %130 = math.log %129 : vector<16x16xf32>
    %cst_54 = arith.constant 2.400000e+00 : f32
    %131 = vector.broadcast %cst_54 : f32 to vector<16x16xf32>
    %132 = arith.mulf %131, %130 : vector<16x16xf32>
    %133 = math.exp %132 : vector<16x16xf32>
    %cst_55 = arith.constant 4.045000e-02 : f32
    %134 = vector.broadcast %cst_55 : f32 to vector<16x16xf32>
    %135 = arith.cmpf ogt, %21, %134 : vector<16x16xf32>
    %cst_56 = arith.constant 0.0773993805 : f32
    %136 = vector.broadcast %cst_56 : f32 to vector<16x16xf32>
    %137 = arith.mulf %21, %136 : vector<16x16xf32>
    %138 = arith.select %135, %133, %137 : vector<16x16xi1>, vector<16x16xf32>
    %cst_57 = arith.constant 4.045000e-02 : f32
    %139 = vector.broadcast %cst_57 : f32 to vector<16x16xf32>
    %140 = arith.maximumf %23, %139 : vector<16x16xf32>
    %cst_58 = arith.constant 5.500000e-02 : f32
    %141 = vector.broadcast %cst_58 : f32 to vector<16x16xf32>
    %142 = arith.addf %140, %141 : vector<16x16xf32>
    %cst_59 = arith.constant 0.947867274 : f32
    %143 = vector.broadcast %cst_59 : f32 to vector<16x16xf32>
    %144 = arith.mulf %142, %143 : vector<16x16xf32>
    %145 = math.log %144 : vector<16x16xf32>
    %cst_60 = arith.constant 2.400000e+00 : f32
    %146 = vector.broadcast %cst_60 : f32 to vector<16x16xf32>
    %147 = arith.mulf %146, %145 : vector<16x16xf32>
    %148 = math.exp %147 : vector<16x16xf32>
    %cst_61 = arith.constant 4.045000e-02 : f32
    %149 = vector.broadcast %cst_61 : f32 to vector<16x16xf32>
    %150 = arith.cmpf ogt, %23, %149 : vector<16x16xf32>
    %cst_62 = arith.constant 0.0773993805 : f32
    %151 = vector.broadcast %cst_62 : f32 to vector<16x16xf32>
    %152 = arith.mulf %23, %151 : vector<16x16xf32>
    %153 = arith.select %150, %148, %152 : vector<16x16xi1>, vector<16x16xf32>
    %cst_63 = arith.constant 0.412386566 : f32
    %154 = vector.broadcast %cst_63 : f32 to vector<16x16xf32>
    %155 = arith.mulf %154, %123 : vector<16x16xf32>
    %cst_64 = arith.constant 0.35759148 : f32
    %156 = vector.broadcast %cst_64 : f32 to vector<16x16xf32>
    %157 = arith.mulf %156, %138 : vector<16x16xf32>
    %158 = arith.addf %155, %157 : vector<16x16xf32>
    %cst_65 = arith.constant 0.180450484 : f32
    %159 = vector.broadcast %cst_65 : f32 to vector<16x16xf32>
    %160 = arith.mulf %159, %153 : vector<16x16xf32>
    %161 = arith.addf %158, %160 : vector<16x16xf32>
    %cst_66 = arith.constant 0.212636828 : f32
    %162 = vector.broadcast %cst_66 : f32 to vector<16x16xf32>
    %163 = arith.mulf %162, %123 : vector<16x16xf32>
    %cst_67 = arith.constant 0.71518296 : f32
    %164 = vector.broadcast %cst_67 : f32 to vector<16x16xf32>
    %165 = arith.mulf %164, %138 : vector<16x16xf32>
    %166 = arith.addf %163, %165 : vector<16x16xf32>
    %cst_68 = arith.constant 7.218020e-02 : f32
    %167 = vector.broadcast %cst_68 : f32 to vector<16x16xf32>
    %168 = arith.mulf %167, %153 : vector<16x16xf32>
    %169 = arith.addf %166, %168 : vector<16x16xf32>
    %cst_69 = arith.constant 0.0193306208 : f32
    %170 = vector.broadcast %cst_69 : f32 to vector<16x16xf32>
    %171 = arith.mulf %170, %123 : vector<16x16xf32>
    %cst_70 = arith.constant 0.11919716 : f32
    %172 = vector.broadcast %cst_70 : f32 to vector<16x16xf32>
    %173 = arith.mulf %172, %138 : vector<16x16xf32>
    %174 = arith.addf %171, %173 : vector<16x16xf32>
    %cst_71 = arith.constant 0.950372576 : f32
    %175 = vector.broadcast %cst_71 : f32 to vector<16x16xf32>
    %176 = arith.mulf %175, %153 : vector<16x16xf32>
    %177 = arith.addf %174, %176 : vector<16x16xf32>
    %cst_72 = arith.constant 1.05215693 : f32
    %178 = vector.broadcast %cst_72 : f32 to vector<16x16xf32>
    %179 = arith.mulf %161, %178 : vector<16x16xf32>
    %cst_73 = arith.constant 1.000000e+00 : f32
    %180 = vector.broadcast %cst_73 : f32 to vector<16x16xf32>
    %181 = arith.mulf %169, %180 : vector<16x16xf32>
    %cst_74 = arith.constant 0.91835767 : f32
    %182 = vector.broadcast %cst_74 : f32 to vector<16x16xf32>
    %183 = arith.mulf %177, %182 : vector<16x16xf32>
    %cst_75 = arith.constant 1.160000e+02 : f32
    %184 = vector.broadcast %cst_75 : f32 to vector<16x16xf32>
    %185 = arith.mulf %184, %181 : vector<16x16xf32>
    %cst_76 = arith.constant 1.600000e+01 : f32
    %186 = vector.broadcast %cst_76 : f32 to vector<16x16xf32>
    %187 = arith.subf %185, %186 : vector<16x16xf32>
    %188 = arith.subf %179, %181 : vector<16x16xf32>
    %cst_77 = arith.constant 5.000000e+02 : f32
    %189 = vector.broadcast %cst_77 : f32 to vector<16x16xf32>
    %190 = arith.mulf %189, %188 : vector<16x16xf32>
    %191 = arith.subf %181, %183 : vector<16x16xf32>
    %cst_78 = arith.constant 2.000000e+02 : f32
    %192 = vector.broadcast %cst_78 : f32 to vector<16x16xf32>
    %193 = arith.mulf %192, %191 : vector<16x16xf32>
    %c0_79 = arith.constant 0 : index
    %c0_80 = arith.constant 0 : index
    %c0_81 = arith.constant 0 : index
    %194 = vector.load %arg4[%c0_79, %c0_80, %c0_81] : memref<8x16x16xf32, #tpu.memory_space<vmem>>, vector<1x16x16xf32>
    %195 = vector.shape_cast %194 : vector<1x16x16xf32> to vector<16x16xf32>
    %cst_82 = arith.constant dense<0.000000e+00> : vector<16x16xf32>
    %196 = tpu.matmul %195, %102, %cst_82 {dimension_numbers = #tpu.dot_dimension_numbers<[1], [0], [0], [1], [0, 0, 1, 1], [], []>} : vector<16x16xf32>, vector<16x16xf32>, vector<16x16xf32> -> vector<16x16xf32>
    %c0_83 = arith.constant 0 : index
    %c0_84 = arith.constant 0 : index
    %c0_85 = arith.constant 0 : index
    %197 = vector.load %arg5[%c0_83, %c0_84, %c0_85] : memref<8x16x16xf32, #tpu.memory_space<vmem>>, vector<1x16x16xf32>
    %198 = vector.shape_cast %197 : vector<1x16x16xf32> to vector<16x16xf32>
    %cst_86 = arith.constant dense<0.000000e+00> : vector<16x16xf32>
    %199 = tpu.matmul %196, %198, %cst_86 {dimension_numbers = #tpu.dot_dimension_numbers<[1], [0], [0], [1], [0, 0, 1, 1], [], []>} : vector<16x16xf32>, vector<16x16xf32>, vector<16x16xf32> -> vector<16x16xf32>
    %c1 = arith.constant 1 : index
    %c0_87 = arith.constant 0 : index
    %c0_88 = arith.constant 0 : index
    %200 = vector.load %arg4[%c1, %c0_87, %c0_88] : memref<8x16x16xf32, #tpu.memory_space<vmem>>, vector<1x16x16xf32>
    %201 = vector.shape_cast %200 : vector<1x16x16xf32> to vector<16x16xf32>
    %cst_89 = arith.constant dense<0.000000e+00> : vector<16x16xf32>
    %202 = tpu.matmul %201, %105, %cst_89 {dimension_numbers = #tpu.dot_dimension_numbers<[1], [0], [0], [1], [0, 0, 1, 1], [], []>} : vector<16x16xf32>, vector<16x16xf32>, vector<16x16xf32> -> vector<16x16xf32>
    %c1_90 = arith.constant 1 : index
    %c0_91 = arith.constant 0 : index
    %c0_92 = arith.constant 0 : index
    %203 = vector.load %arg5[%c1_90, %c0_91, %c0_92] : memref<8x16x16xf32, #tpu.memory_space<vmem>>, vector<1x16x16xf32>
    %204 = vector.shape_cast %203 : vector<1x16x16xf32> to vector<16x16xf32>
    %cst_93 = arith.constant dense<0.000000e+00> : vector<16x16xf32>
    %205 = tpu.matmul %202, %204, %cst_93 {dimension_numbers = #tpu.dot_dimension_numbers<[1], [0], [0], [1], [0, 0, 1, 1], [], []>} : vector<16x16xf32>, vector<16x16xf32>, vector<16x16xf32> -> vector<16x16xf32>
    %c2 = arith.constant 2 : index
    %c0_94 = arith.constant 0 : index
    %c0_95 = arith.constant 0 : index
    %206 = vector.load %arg4[%c2, %c0_94, %c0_95] : memref<8x16x16xf32, #tpu.memory_space<vmem>>, vector<1x16x16xf32>
    %207 = vector.shape_cast %206 : vector<1x16x16xf32> to vector<16x16xf32>
    %cst_96 = arith.constant dense<0.000000e+00> : vector<16x16xf32>
    %208 = tpu.matmul %207, %108, %cst_96 {dimension_numbers = #tpu.dot_dimension_numbers<[1], [0], [0], [1], [0, 0, 1, 1], [], []>} : vector<16x16xf32>, vector<16x16xf32>, vector<16x16xf32> -> vector<16x16xf32>
    %c2_97 = arith.constant 2 : index
    %c0_98 = arith.constant 0 : index
    %c0_99 = arith.constant 0 : index
    %209 = vector.load %arg5[%c2_97, %c0_98, %c0_99] : memref<8x16x16xf32, #tpu.memory_space<vmem>>, vector<1x16x16xf32>
    %210 = vector.shape_cast %209 : vector<1x16x16xf32> to vector<16x16xf32>
    %cst_100 = arith.constant dense<0.000000e+00> : vector<16x16xf32>
    %211 = tpu.matmul %208, %210, %cst_100 {dimension_numbers = #tpu.dot_dimension_numbers<[1], [0], [0], [1], [0, 0, 1, 1], [], []>} : vector<16x16xf32>, vector<16x16xf32>, vector<16x16xf32> -> vector<16x16xf32>
    %c3 = arith.constant 3 : index
    %c0_101 = arith.constant 0 : index
    %c0_102 = arith.constant 0 : index
    %212 = vector.load %arg4[%c3, %c0_101, %c0_102] : memref<8x16x16xf32, #tpu.memory_space<vmem>>, vector<1x16x16xf32>
    %213 = vector.shape_cast %212 : vector<1x16x16xf32> to vector<16x16xf32>
    %cst_103 = arith.constant dense<0.000000e+00> : vector<16x16xf32>
    %214 = tpu.matmul %213, %108, %cst_103 {dimension_numbers = #tpu.dot_dimension_numbers<[1], [0], [0], [1], [0, 0, 1, 1], [], []>} : vector<16x16xf32>, vector<16x16xf32>, vector<16x16xf32> -> vector<16x16xf32>
    %c3_104 = arith.constant 3 : index
    %c0_105 = arith.constant 0 : index
    %c0_106 = arith.constant 0 : index
    %215 = vector.load %arg5[%c3_104, %c0_105, %c0_106] : memref<8x16x16xf32, #tpu.memory_space<vmem>>, vector<1x16x16xf32>
    %216 = vector.shape_cast %215 : vector<1x16x16xf32> to vector<16x16xf32>
    %cst_107 = arith.constant dense<0.000000e+00> : vector<16x16xf32>
    %217 = tpu.matmul %214, %216, %cst_107 {dimension_numbers = #tpu.dot_dimension_numbers<[1], [0], [0], [1], [0, 0, 1, 1], [], []>} : vector<16x16xf32>, vector<16x16xf32>, vector<16x16xf32> -> vector<16x16xf32>
    %218 = arith.addf %211, %217 : vector<16x16xf32>
    %cst_108 = arith.constant 1.600000e+01 : f32
    %219 = vector.broadcast %cst_108 : f32 to vector<16x16xf32>
    %220 = arith.addf %199, %219 : vector<16x16xf32>
    %cst_109 = arith.constant 8.620690e-03 : f32
    %221 = vector.broadcast %cst_109 : f32 to vector<16x16xf32>
    %222 = arith.mulf %220, %221 : vector<16x16xf32>
    %cst_110 = arith.constant 2.000000e-03 : f32
    %223 = vector.broadcast %cst_110 : f32 to vector<16x16xf32>
    %224 = arith.mulf %205, %223 : vector<16x16xf32>
    %225 = arith.addf %222, %224 : vector<16x16xf32>
    %cst_111 = arith.constant 0.950428545 : f32
    %226 = vector.broadcast %cst_111 : f32 to vector<16x16xf32>
    %227 = arith.mulf %225, %226 : vector<16x16xf32>
    %cst_112 = arith.constant 1.000000e+00 : f32
    %228 = vector.broadcast %cst_112 : f32 to vector<16x16xf32>
    %229 = arith.mulf %222, %228 : vector<16x16xf32>
    %cst_113 = arith.constant 5.000000e-03 : f32
    %230 = vector.broadcast %cst_113 : f32 to vector<16x16xf32>
    %231 = arith.mulf %218, %230 : vector<16x16xf32>
    %232 = arith.subf %222, %231 : vector<16x16xf32>
    %cst_114 = arith.constant 1.08890033 : f32
    %233 = vector.broadcast %cst_114 : f32 to vector<16x16xf32>
    %234 = arith.mulf %232, %233 : vector<16x16xf32>
    %cst_115 = arith.constant 3.24100327 : f32
    %235 = vector.broadcast %cst_115 : f32 to vector<16x16xf32>
    %236 = arith.mulf %235, %227 : vector<16x16xf32>
    %cst_116 = arith.constant -1.53739893 : f32
    %237 = vector.broadcast %cst_116 : f32 to vector<16x16xf32>
    %238 = arith.mulf %237, %229 : vector<16x16xf32>
    %239 = arith.addf %236, %238 : vector<16x16xf32>
    %cst_117 = arith.constant -0.498615861 : f32
    %240 = vector.broadcast %cst_117 : f32 to vector<16x16xf32>
    %241 = arith.mulf %240, %234 : vector<16x16xf32>
    %242 = arith.addf %239, %241 : vector<16x16xf32>
    %cst_118 = arith.constant -0.969224333 : f32
    %243 = vector.broadcast %cst_118 : f32 to vector<16x16xf32>
    %244 = arith.mulf %243, %227 : vector<16x16xf32>
    %cst_119 = arith.constant 1.87593007 : f32
    %245 = vector.broadcast %cst_119 : f32 to vector<16x16xf32>
    %246 = arith.mulf %245, %229 : vector<16x16xf32>
    %247 = arith.addf %244, %246 : vector<16x16xf32>
    %cst_120 = arith.constant 0.0415542237 : f32
    %248 = vector.broadcast %cst_120 : f32 to vector<16x16xf32>
    %249 = arith.mulf %248, %234 : vector<16x16xf32>
    %250 = arith.addf %247, %249 : vector<16x16xf32>
    %cst_121 = arith.constant 0.0556394234 : f32
    %251 = vector.broadcast %cst_121 : f32 to vector<16x16xf32>
    %252 = arith.mulf %251, %227 : vector<16x16xf32>
    %cst_122 = arith.constant -0.204011202 : f32
    %253 = vector.broadcast %cst_122 : f32 to vector<16x16xf32>
    %254 = arith.mulf %253, %229 : vector<16x16xf32>
    %255 = arith.addf %252, %254 : vector<16x16xf32>
    %cst_123 = arith.constant 1.05714893 : f32
    %256 = vector.broadcast %cst_123 : f32 to vector<16x16xf32>
    %257 = arith.mulf %256, %234 : vector<16x16xf32>
    %258 = arith.addf %255, %257 : vector<16x16xf32>
    %cst_124 = arith.constant 0.000000e+00 : f32
    %cst_125 = arith.constant 1.000000e+00 : f32
    %259 = vector.broadcast %cst_124 : f32 to vector<16x16xf32>
    %260 = arith.maximumf %259, %242 : vector<16x16xf32>
    %261 = vector.broadcast %cst_125 : f32 to vector<16x16xf32>
    %262 = arith.minimumf %261, %260 : vector<16x16xf32>
    %cst_126 = arith.constant 0.000000e+00 : f32
    %cst_127 = arith.constant 1.000000e+00 : f32
    %263 = vector.broadcast %cst_126 : f32 to vector<16x16xf32>
    %264 = arith.maximumf %263, %250 : vector<16x16xf32>
    %265 = vector.broadcast %cst_127 : f32 to vector<16x16xf32>
    %266 = arith.minimumf %265, %264 : vector<16x16xf32>
    %cst_128 = arith.constant 0.000000e+00 : f32
    %cst_129 = arith.constant 1.000000e+00 : f32
    %267 = vector.broadcast %cst_128 : f32 to vector<16x16xf32>
    %268 = arith.maximumf %267, %258 : vector<16x16xf32>
    %269 = vector.broadcast %cst_129 : f32 to vector<16x16xf32>
    %270 = arith.minimumf %269, %268 : vector<16x16xf32>
    %cst_130 = arith.constant 0.412386566 : f32
    %271 = vector.broadcast %cst_130 : f32 to vector<16x16xf32>
    %272 = arith.mulf %271, %262 : vector<16x16xf32>
    %cst_131 = arith.constant 0.35759148 : f32
    %273 = vector.broadcast %cst_131 : f32 to vector<16x16xf32>
    %274 = arith.mulf %273, %266 : vector<16x16xf32>
    %275 = arith.addf %272, %274 : vector<16x16xf32>
    %cst_132 = arith.constant 0.180450484 : f32
    %276 = vector.broadcast %cst_132 : f32 to vector<16x16xf32>
    %277 = arith.mulf %276, %270 : vector<16x16xf32>
    %278 = arith.addf %275, %277 : vector<16x16xf32>
    %cst_133 = arith.constant 0.212636828 : f32
    %279 = vector.broadcast %cst_133 : f32 to vector<16x16xf32>
    %280 = arith.mulf %279, %262 : vector<16x16xf32>
    %cst_134 = arith.constant 0.71518296 : f32
    %281 = vector.broadcast %cst_134 : f32 to vector<16x16xf32>
    %282 = arith.mulf %281, %266 : vector<16x16xf32>
    %283 = arith.addf %280, %282 : vector<16x16xf32>
    %cst_135 = arith.constant 7.218020e-02 : f32
    %284 = vector.broadcast %cst_135 : f32 to vector<16x16xf32>
    %285 = arith.mulf %284, %270 : vector<16x16xf32>
    %286 = arith.addf %283, %285 : vector<16x16xf32>
    %cst_136 = arith.constant 0.0193306208 : f32
    %287 = vector.broadcast %cst_136 : f32 to vector<16x16xf32>
    %288 = arith.mulf %287, %262 : vector<16x16xf32>
    %cst_137 = arith.constant 0.11919716 : f32
    %289 = vector.broadcast %cst_137 : f32 to vector<16x16xf32>
    %290 = arith.mulf %289, %266 : vector<16x16xf32>
    %291 = arith.addf %288, %290 : vector<16x16xf32>
    %cst_138 = arith.constant 0.950372576 : f32
    %292 = vector.broadcast %cst_138 : f32 to vector<16x16xf32>
    %293 = arith.mulf %292, %270 : vector<16x16xf32>
    %294 = arith.addf %291, %293 : vector<16x16xf32>
    %cst_139 = arith.constant 1.05215693 : f32
    %295 = vector.broadcast %cst_139 : f32 to vector<16x16xf32>
    %296 = arith.mulf %278, %295 : vector<16x16xf32>
    %cst_140 = arith.constant 0.00885645207 : f32
    %297 = vector.broadcast %cst_140 : f32 to vector<16x16xf32>
    %298 = arith.maximumf %296, %297 : vector<16x16xf32>
    %299 = math.log %298 : vector<16x16xf32>
    %cst_141 = arith.constant 0.333333343 : f32
    %300 = vector.broadcast %cst_141 : f32 to vector<16x16xf32>
    %301 = arith.mulf %299, %300 : vector<16x16xf32>
    %302 = math.exp %301 : vector<16x16xf32>
    %cst_142 = arith.constant 0.00885645207 : f32
    %303 = vector.broadcast %cst_142 : f32 to vector<16x16xf32>
    %304 = arith.cmpf ogt, %296, %303 : vector<16x16xf32>
    %cst_143 = arith.constant 7.7870369 : f32
    %305 = vector.broadcast %cst_143 : f32 to vector<16x16xf32>
    %306 = arith.mulf %296, %305 : vector<16x16xf32>
    %cst_144 = arith.constant 0.137931034 : f32
    %307 = vector.broadcast %cst_144 : f32 to vector<16x16xf32>
    %308 = arith.addf %306, %307 : vector<16x16xf32>
    %309 = arith.select %304, %302, %308 : vector<16x16xi1>, vector<16x16xf32>
    %cst_145 = arith.constant 1.000000e+00 : f32
    %310 = vector.broadcast %cst_145 : f32 to vector<16x16xf32>
    %311 = arith.mulf %286, %310 : vector<16x16xf32>
    %cst_146 = arith.constant 0.00885645207 : f32
    %312 = vector.broadcast %cst_146 : f32 to vector<16x16xf32>
    %313 = arith.maximumf %311, %312 : vector<16x16xf32>
    %314 = math.log %313 : vector<16x16xf32>
    %cst_147 = arith.constant 0.333333343 : f32
    %315 = vector.broadcast %cst_147 : f32 to vector<16x16xf32>
    %316 = arith.mulf %314, %315 : vector<16x16xf32>
    %317 = math.exp %316 : vector<16x16xf32>
    %cst_148 = arith.constant 0.00885645207 : f32
    %318 = vector.broadcast %cst_148 : f32 to vector<16x16xf32>
    %319 = arith.cmpf ogt, %311, %318 : vector<16x16xf32>
    %cst_149 = arith.constant 7.7870369 : f32
    %320 = vector.broadcast %cst_149 : f32 to vector<16x16xf32>
    %321 = arith.mulf %311, %320 : vector<16x16xf32>
    %cst_150 = arith.constant 0.137931034 : f32
    %322 = vector.broadcast %cst_150 : f32 to vector<16x16xf32>
    %323 = arith.addf %321, %322 : vector<16x16xf32>
    %324 = arith.select %319, %317, %323 : vector<16x16xi1>, vector<16x16xf32>
    %cst_151 = arith.constant 0.91835767 : f32
    %325 = vector.broadcast %cst_151 : f32 to vector<16x16xf32>
    %326 = arith.mulf %294, %325 : vector<16x16xf32>
    %cst_152 = arith.constant 0.00885645207 : f32
    %327 = vector.broadcast %cst_152 : f32 to vector<16x16xf32>
    %328 = arith.maximumf %326, %327 : vector<16x16xf32>
    %329 = math.log %328 : vector<16x16xf32>
    %cst_153 = arith.constant 0.333333343 : f32
    %330 = vector.broadcast %cst_153 : f32 to vector<16x16xf32>
    %331 = arith.mulf %329, %330 : vector<16x16xf32>
    %332 = math.exp %331 : vector<16x16xf32>
    %cst_154 = arith.constant 0.00885645207 : f32
    %333 = vector.broadcast %cst_154 : f32 to vector<16x16xf32>
    %334 = arith.cmpf ogt, %326, %333 : vector<16x16xf32>
    %cst_155 = arith.constant 7.7870369 : f32
    %335 = vector.broadcast %cst_155 : f32 to vector<16x16xf32>
    %336 = arith.mulf %326, %335 : vector<16x16xf32>
    %cst_156 = arith.constant 0.137931034 : f32
    %337 = vector.broadcast %cst_156 : f32 to vector<16x16xf32>
    %338 = arith.addf %336, %337 : vector<16x16xf32>
    %339 = arith.select %334, %332, %338 : vector<16x16xi1>, vector<16x16xf32>
    %cst_157 = arith.constant 1.160000e+02 : f32
    %340 = vector.broadcast %cst_157 : f32 to vector<16x16xf32>
    %341 = arith.mulf %340, %324 : vector<16x16xf32>
    %cst_158 = arith.constant 1.600000e+01 : f32
    %342 = vector.broadcast %cst_158 : f32 to vector<16x16xf32>
    %343 = arith.subf %341, %342 : vector<16x16xf32>
    %344 = arith.subf %309, %324 : vector<16x16xf32>
    %cst_159 = arith.constant 5.000000e+02 : f32
    %345 = vector.broadcast %cst_159 : f32 to vector<16x16xf32>
    %346 = arith.mulf %345, %344 : vector<16x16xf32>
    %347 = arith.subf %324, %339 : vector<16x16xf32>
    %cst_160 = arith.constant 2.000000e+02 : f32
    %348 = vector.broadcast %cst_160 : f32 to vector<16x16xf32>
    %349 = arith.mulf %348, %347 : vector<16x16xf32>
    %cst_161 = arith.constant 0.00999999977 : f32
    %350 = vector.broadcast %cst_161 : f32 to vector<16x16xf32>
    %351 = arith.mulf %350, %343 : vector<16x16xf32>
    %352 = arith.mulf %351, %346 : vector<16x16xf32>
    %cst_162 = arith.constant 0.00999999977 : f32
    %353 = vector.broadcast %cst_162 : f32 to vector<16x16xf32>
    %354 = arith.mulf %353, %343 : vector<16x16xf32>
    %355 = arith.mulf %354, %349 : vector<16x16xf32>
    %c0_163 = arith.constant 0 : index
    %c0_164 = arith.constant 0 : index
    %c0_165 = arith.constant 0 : index
    %356 = vector.load %arg4[%c0_163, %c0_164, %c0_165] : memref<8x16x16xf32, #tpu.memory_space<vmem>>, vector<1x16x16xf32>
    %357 = vector.shape_cast %356 : vector<1x16x16xf32> to vector<16x16xf32>
    %cst_166 = arith.constant dense<0.000000e+00> : vector<16x16xf32>
    %358 = tpu.matmul %357, %187, %cst_166 {dimension_numbers = #tpu.dot_dimension_numbers<[1], [0], [0], [1], [0, 0, 1, 1], [], []>} : vector<16x16xf32>, vector<16x16xf32>, vector<16x16xf32> -> vector<16x16xf32>
    %c0_167 = arith.constant 0 : index
    %c0_168 = arith.constant 0 : index
    %c0_169 = arith.constant 0 : index
    %359 = vector.load %arg5[%c0_167, %c0_168, %c0_169] : memref<8x16x16xf32, #tpu.memory_space<vmem>>, vector<1x16x16xf32>
    %360 = vector.shape_cast %359 : vector<1x16x16xf32> to vector<16x16xf32>
    %cst_170 = arith.constant dense<0.000000e+00> : vector<16x16xf32>
    %361 = tpu.matmul %358, %360, %cst_170 {dimension_numbers = #tpu.dot_dimension_numbers<[1], [0], [0], [1], [0, 0, 1, 1], [], []>} : vector<16x16xf32>, vector<16x16xf32>, vector<16x16xf32> -> vector<16x16xf32>
    %c1_171 = arith.constant 1 : index
    %c0_172 = arith.constant 0 : index
    %c0_173 = arith.constant 0 : index
    %362 = vector.load %arg4[%c1_171, %c0_172, %c0_173] : memref<8x16x16xf32, #tpu.memory_space<vmem>>, vector<1x16x16xf32>
    %363 = vector.shape_cast %362 : vector<1x16x16xf32> to vector<16x16xf32>
    %cst_174 = arith.constant dense<0.000000e+00> : vector<16x16xf32>
    %364 = tpu.matmul %363, %190, %cst_174 {dimension_numbers = #tpu.dot_dimension_numbers<[1], [0], [0], [1], [0, 0, 1, 1], [], []>} : vector<16x16xf32>, vector<16x16xf32>, vector<16x16xf32> -> vector<16x16xf32>
    %c1_175 = arith.constant 1 : index
    %c0_176 = arith.constant 0 : index
    %c0_177 = arith.constant 0 : index
    %365 = vector.load %arg5[%c1_175, %c0_176, %c0_177] : memref<8x16x16xf32, #tpu.memory_space<vmem>>, vector<1x16x16xf32>
    %366 = vector.shape_cast %365 : vector<1x16x16xf32> to vector<16x16xf32>
    %cst_178 = arith.constant dense<0.000000e+00> : vector<16x16xf32>
    %367 = tpu.matmul %364, %366, %cst_178 {dimension_numbers = #tpu.dot_dimension_numbers<[1], [0], [0], [1], [0, 0, 1, 1], [], []>} : vector<16x16xf32>, vector<16x16xf32>, vector<16x16xf32> -> vector<16x16xf32>
    %c2_179 = arith.constant 2 : index
    %c0_180 = arith.constant 0 : index
    %c0_181 = arith.constant 0 : index
    %368 = vector.load %arg4[%c2_179, %c0_180, %c0_181] : memref<8x16x16xf32, #tpu.memory_space<vmem>>, vector<1x16x16xf32>
    %369 = vector.shape_cast %368 : vector<1x16x16xf32> to vector<16x16xf32>
    %cst_182 = arith.constant dense<0.000000e+00> : vector<16x16xf32>
    %370 = tpu.matmul %369, %193, %cst_182 {dimension_numbers = #tpu.dot_dimension_numbers<[1], [0], [0], [1], [0, 0, 1, 1], [], []>} : vector<16x16xf32>, vector<16x16xf32>, vector<16x16xf32> -> vector<16x16xf32>
    %c2_183 = arith.constant 2 : index
    %c0_184 = arith.constant 0 : index
    %c0_185 = arith.constant 0 : index
    %371 = vector.load %arg5[%c2_183, %c0_184, %c0_185] : memref<8x16x16xf32, #tpu.memory_space<vmem>>, vector<1x16x16xf32>
    %372 = vector.shape_cast %371 : vector<1x16x16xf32> to vector<16x16xf32>
    %cst_186 = arith.constant dense<0.000000e+00> : vector<16x16xf32>
    %373 = tpu.matmul %370, %372, %cst_186 {dimension_numbers = #tpu.dot_dimension_numbers<[1], [0], [0], [1], [0, 0, 1, 1], [], []>} : vector<16x16xf32>, vector<16x16xf32>, vector<16x16xf32> -> vector<16x16xf32>
    %c3_187 = arith.constant 3 : index
    %c0_188 = arith.constant 0 : index
    %c0_189 = arith.constant 0 : index
    %374 = vector.load %arg4[%c3_187, %c0_188, %c0_189] : memref<8x16x16xf32, #tpu.memory_space<vmem>>, vector<1x16x16xf32>
    %375 = vector.shape_cast %374 : vector<1x16x16xf32> to vector<16x16xf32>
    %cst_190 = arith.constant dense<0.000000e+00> : vector<16x16xf32>
    %376 = tpu.matmul %375, %193, %cst_190 {dimension_numbers = #tpu.dot_dimension_numbers<[1], [0], [0], [1], [0, 0, 1, 1], [], []>} : vector<16x16xf32>, vector<16x16xf32>, vector<16x16xf32> -> vector<16x16xf32>
    %c3_191 = arith.constant 3 : index
    %c0_192 = arith.constant 0 : index
    %c0_193 = arith.constant 0 : index
    %377 = vector.load %arg5[%c3_191, %c0_192, %c0_193] : memref<8x16x16xf32, #tpu.memory_space<vmem>>, vector<1x16x16xf32>
    %378 = vector.shape_cast %377 : vector<1x16x16xf32> to vector<16x16xf32>
    %cst_194 = arith.constant dense<0.000000e+00> : vector<16x16xf32>
    %379 = tpu.matmul %376, %378, %cst_194 {dimension_numbers = #tpu.dot_dimension_numbers<[1], [0], [0], [1], [0, 0, 1, 1], [], []>} : vector<16x16xf32>, vector<16x16xf32>, vector<16x16xf32> -> vector<16x16xf32>
    %380 = arith.addf %373, %379 : vector<16x16xf32>
    %cst_195 = arith.constant 1.600000e+01 : f32
    %381 = vector.broadcast %cst_195 : f32 to vector<16x16xf32>
    %382 = arith.addf %361, %381 : vector<16x16xf32>
    %cst_196 = arith.constant 8.620690e-03 : f32
    %383 = vector.broadcast %cst_196 : f32 to vector<16x16xf32>
    %384 = arith.mulf %382, %383 : vector<16x16xf32>
    %cst_197 = arith.constant 2.000000e-03 : f32
    %385 = vector.broadcast %cst_197 : f32 to vector<16x16xf32>
    %386 = arith.mulf %367, %385 : vector<16x16xf32>
    %387 = arith.addf %384, %386 : vector<16x16xf32>
    %cst_198 = arith.constant 0.950428545 : f32
    %388 = vector.broadcast %cst_198 : f32 to vector<16x16xf32>
    %389 = arith.mulf %387, %388 : vector<16x16xf32>
    %cst_199 = arith.constant 1.000000e+00 : f32
    %390 = vector.broadcast %cst_199 : f32 to vector<16x16xf32>
    %391 = arith.mulf %384, %390 : vector<16x16xf32>
    %cst_200 = arith.constant 5.000000e-03 : f32
    %392 = vector.broadcast %cst_200 : f32 to vector<16x16xf32>
    %393 = arith.mulf %380, %392 : vector<16x16xf32>
    %394 = arith.subf %384, %393 : vector<16x16xf32>
    %cst_201 = arith.constant 1.08890033 : f32
    %395 = vector.broadcast %cst_201 : f32 to vector<16x16xf32>
    %396 = arith.mulf %394, %395 : vector<16x16xf32>
    %cst_202 = arith.constant 3.24100327 : f32
    %397 = vector.broadcast %cst_202 : f32 to vector<16x16xf32>
    %398 = arith.mulf %397, %389 : vector<16x16xf32>
    %cst_203 = arith.constant -1.53739893 : f32
    %399 = vector.broadcast %cst_203 : f32 to vector<16x16xf32>
    %400 = arith.mulf %399, %391 : vector<16x16xf32>
    %401 = arith.addf %398, %400 : vector<16x16xf32>
    %cst_204 = arith.constant -0.498615861 : f32
    %402 = vector.broadcast %cst_204 : f32 to vector<16x16xf32>
    %403 = arith.mulf %402, %396 : vector<16x16xf32>
    %404 = arith.addf %401, %403 : vector<16x16xf32>
    %cst_205 = arith.constant -0.969224333 : f32
    %405 = vector.broadcast %cst_205 : f32 to vector<16x16xf32>
    %406 = arith.mulf %405, %389 : vector<16x16xf32>
    %cst_206 = arith.constant 1.87593007 : f32
    %407 = vector.broadcast %cst_206 : f32 to vector<16x16xf32>
    %408 = arith.mulf %407, %391 : vector<16x16xf32>
    %409 = arith.addf %406, %408 : vector<16x16xf32>
    %cst_207 = arith.constant 0.0415542237 : f32
    %410 = vector.broadcast %cst_207 : f32 to vector<16x16xf32>
    %411 = arith.mulf %410, %396 : vector<16x16xf32>
    %412 = arith.addf %409, %411 : vector<16x16xf32>
    %cst_208 = arith.constant 0.0556394234 : f32
    %413 = vector.broadcast %cst_208 : f32 to vector<16x16xf32>
    %414 = arith.mulf %413, %389 : vector<16x16xf32>
    %cst_209 = arith.constant -0.204011202 : f32
    %415 = vector.broadcast %cst_209 : f32 to vector<16x16xf32>
    %416 = arith.mulf %415, %391 : vector<16x16xf32>
    %417 = arith.addf %414, %416 : vector<16x16xf32>
    %cst_210 = arith.constant 1.05714893 : f32
    %418 = vector.broadcast %cst_210 : f32 to vector<16x16xf32>
    %419 = arith.mulf %418, %396 : vector<16x16xf32>
    %420 = arith.addf %417, %419 : vector<16x16xf32>
    %cst_211 = arith.constant 0.000000e+00 : f32
    %cst_212 = arith.constant 1.000000e+00 : f32
    %421 = vector.broadcast %cst_211 : f32 to vector<16x16xf32>
    %422 = arith.maximumf %421, %404 : vector<16x16xf32>
    %423 = vector.broadcast %cst_212 : f32 to vector<16x16xf32>
    %424 = arith.minimumf %423, %422 : vector<16x16xf32>
    %cst_213 = arith.constant 0.000000e+00 : f32
    %cst_214 = arith.constant 1.000000e+00 : f32
    %425 = vector.broadcast %cst_213 : f32 to vector<16x16xf32>
    %426 = arith.maximumf %425, %412 : vector<16x16xf32>
    %427 = vector.broadcast %cst_214 : f32 to vector<16x16xf32>
    %428 = arith.minimumf %427, %426 : vector<16x16xf32>
    %cst_215 = arith.constant 0.000000e+00 : f32
    %cst_216 = arith.constant 1.000000e+00 : f32
    %429 = vector.broadcast %cst_215 : f32 to vector<16x16xf32>
    %430 = arith.maximumf %429, %420 : vector<16x16xf32>
    %431 = vector.broadcast %cst_216 : f32 to vector<16x16xf32>
    %432 = arith.minimumf %431, %430 : vector<16x16xf32>
    %cst_217 = arith.constant 0.412386566 : f32
    %433 = vector.broadcast %cst_217 : f32 to vector<16x16xf32>
    %434 = arith.mulf %433, %424 : vector<16x16xf32>
    %cst_218 = arith.constant 0.35759148 : f32
    %435 = vector.broadcast %cst_218 : f32 to vector<16x16xf32>
    %436 = arith.mulf %435, %428 : vector<16x16xf32>
    %437 = arith.addf %434, %436 : vector<16x16xf32>
    %cst_219 = arith.constant 0.180450484 : f32
    %438 = vector.broadcast %cst_219 : f32 to vector<16x16xf32>
    %439 = arith.mulf %438, %432 : vector<16x16xf32>
    %440 = arith.addf %437, %439 : vector<16x16xf32>
    %cst_220 = arith.constant 0.212636828 : f32
    %441 = vector.broadcast %cst_220 : f32 to vector<16x16xf32>
    %442 = arith.mulf %441, %424 : vector<16x16xf32>
    %cst_221 = arith.constant 0.71518296 : f32
    %443 = vector.broadcast %cst_221 : f32 to vector<16x16xf32>
    %444 = arith.mulf %443, %428 : vector<16x16xf32>
    %445 = arith.addf %442, %444 : vector<16x16xf32>
    %cst_222 = arith.constant 7.218020e-02 : f32
    %446 = vector.broadcast %cst_222 : f32 to vector<16x16xf32>
    %447 = arith.mulf %446, %432 : vector<16x16xf32>
    %448 = arith.addf %445, %447 : vector<16x16xf32>
    %cst_223 = arith.constant 0.0193306208 : f32
    %449 = vector.broadcast %cst_223 : f32 to vector<16x16xf32>
    %450 = arith.mulf %449, %424 : vector<16x16xf32>
    %cst_224 = arith.constant 0.11919716 : f32
    %451 = vector.broadcast %cst_224 : f32 to vector<16x16xf32>
    %452 = arith.mulf %451, %428 : vector<16x16xf32>
    %453 = arith.addf %450, %452 : vector<16x16xf32>
    %cst_225 = arith.constant 0.950372576 : f32
    %454 = vector.broadcast %cst_225 : f32 to vector<16x16xf32>
    %455 = arith.mulf %454, %432 : vector<16x16xf32>
    %456 = arith.addf %453, %455 : vector<16x16xf32>
    %cst_226 = arith.constant 1.05215693 : f32
    %457 = vector.broadcast %cst_226 : f32 to vector<16x16xf32>
    %458 = arith.mulf %440, %457 : vector<16x16xf32>
    %cst_227 = arith.constant 0.00885645207 : f32
    %459 = vector.broadcast %cst_227 : f32 to vector<16x16xf32>
    %460 = arith.maximumf %458, %459 : vector<16x16xf32>
    %461 = math.log %460 : vector<16x16xf32>
    %cst_228 = arith.constant 0.333333343 : f32
    %462 = vector.broadcast %cst_228 : f32 to vector<16x16xf32>
    %463 = arith.mulf %461, %462 : vector<16x16xf32>
    %464 = math.exp %463 : vector<16x16xf32>
    %cst_229 = arith.constant 0.00885645207 : f32
    %465 = vector.broadcast %cst_229 : f32 to vector<16x16xf32>
    %466 = arith.cmpf ogt, %458, %465 : vector<16x16xf32>
    %cst_230 = arith.constant 7.7870369 : f32
    %467 = vector.broadcast %cst_230 : f32 to vector<16x16xf32>
    %468 = arith.mulf %458, %467 : vector<16x16xf32>
    %cst_231 = arith.constant 0.137931034 : f32
    %469 = vector.broadcast %cst_231 : f32 to vector<16x16xf32>
    %470 = arith.addf %468, %469 : vector<16x16xf32>
    %471 = arith.select %466, %464, %470 : vector<16x16xi1>, vector<16x16xf32>
    %cst_232 = arith.constant 1.000000e+00 : f32
    %472 = vector.broadcast %cst_232 : f32 to vector<16x16xf32>
    %473 = arith.mulf %448, %472 : vector<16x16xf32>
    %cst_233 = arith.constant 0.00885645207 : f32
    %474 = vector.broadcast %cst_233 : f32 to vector<16x16xf32>
    %475 = arith.maximumf %473, %474 : vector<16x16xf32>
    %476 = math.log %475 : vector<16x16xf32>
    %cst_234 = arith.constant 0.333333343 : f32
    %477 = vector.broadcast %cst_234 : f32 to vector<16x16xf32>
    %478 = arith.mulf %476, %477 : vector<16x16xf32>
    %479 = math.exp %478 : vector<16x16xf32>
    %cst_235 = arith.constant 0.00885645207 : f32
    %480 = vector.broadcast %cst_235 : f32 to vector<16x16xf32>
    %481 = arith.cmpf ogt, %473, %480 : vector<16x16xf32>
    %cst_236 = arith.constant 7.7870369 : f32
    %482 = vector.broadcast %cst_236 : f32 to vector<16x16xf32>
    %483 = arith.mulf %473, %482 : vector<16x16xf32>
    %cst_237 = arith.constant 0.137931034 : f32
    %484 = vector.broadcast %cst_237 : f32 to vector<16x16xf32>
    %485 = arith.addf %483, %484 : vector<16x16xf32>
    %486 = arith.select %481, %479, %485 : vector<16x16xi1>, vector<16x16xf32>
    %cst_238 = arith.constant 0.91835767 : f32
    %487 = vector.broadcast %cst_238 : f32 to vector<16x16xf32>
    %488 = arith.mulf %456, %487 : vector<16x16xf32>
    %cst_239 = arith.constant 0.00885645207 : f32
    %489 = vector.broadcast %cst_239 : f32 to vector<16x16xf32>
    %490 = arith.maximumf %488, %489 : vector<16x16xf32>
    %491 = math.log %490 : vector<16x16xf32>
    %cst_240 = arith.constant 0.333333343 : f32
    %492 = vector.broadcast %cst_240 : f32 to vector<16x16xf32>
    %493 = arith.mulf %491, %492 : vector<16x16xf32>
    %494 = math.exp %493 : vector<16x16xf32>
    %cst_241 = arith.constant 0.00885645207 : f32
    %495 = vector.broadcast %cst_241 : f32 to vector<16x16xf32>
    %496 = arith.cmpf ogt, %488, %495 : vector<16x16xf32>
    %cst_242 = arith.constant 7.7870369 : f32
    %497 = vector.broadcast %cst_242 : f32 to vector<16x16xf32>
    %498 = arith.mulf %488, %497 : vector<16x16xf32>
    %cst_243 = arith.constant 0.137931034 : f32
    %499 = vector.broadcast %cst_243 : f32 to vector<16x16xf32>
    %500 = arith.addf %498, %499 : vector<16x16xf32>
    %501 = arith.select %496, %494, %500 : vector<16x16xi1>, vector<16x16xf32>
    %cst_244 = arith.constant 1.160000e+02 : f32
    %502 = vector.broadcast %cst_244 : f32 to vector<16x16xf32>
    %503 = arith.mulf %502, %486 : vector<16x16xf32>
    %cst_245 = arith.constant 1.600000e+01 : f32
    %504 = vector.broadcast %cst_245 : f32 to vector<16x16xf32>
    %505 = arith.subf %503, %504 : vector<16x16xf32>
    %506 = arith.subf %471, %486 : vector<16x16xf32>
    %cst_246 = arith.constant 5.000000e+02 : f32
    %507 = vector.broadcast %cst_246 : f32 to vector<16x16xf32>
    %508 = arith.mulf %507, %506 : vector<16x16xf32>
    %509 = arith.subf %486, %501 : vector<16x16xf32>
    %cst_247 = arith.constant 2.000000e+02 : f32
    %510 = vector.broadcast %cst_247 : f32 to vector<16x16xf32>
    %511 = arith.mulf %510, %509 : vector<16x16xf32>
    %cst_248 = arith.constant 0.00999999977 : f32
    %512 = vector.broadcast %cst_248 : f32 to vector<16x16xf32>
    %513 = arith.mulf %512, %505 : vector<16x16xf32>
    %514 = arith.mulf %513, %508 : vector<16x16xf32>
    %cst_249 = arith.constant 0.00999999977 : f32
    %515 = vector.broadcast %cst_249 : f32 to vector<16x16xf32>
    %516 = arith.mulf %515, %505 : vector<16x16xf32>
    %517 = arith.mulf %516, %511 : vector<16x16xf32>
    %518 = arith.subf %514, %352 : vector<16x16xf32>
    %519 = arith.subf %517, %355 : vector<16x16xf32>
    %520 = arith.subf %505, %343 : vector<16x16xf32>
    %521 = math.absf %520 : vector<16x16xf32>
    %522 = arith.mulf %518, %518 : vector<16x16xf32>
    %523 = arith.mulf %519, %519 : vector<16x16xf32>
    %524 = arith.addf %522, %523 : vector<16x16xf32>
    %525 = math.sqrt %524 : vector<16x16xf32>
    %526 = arith.addf %521, %525 : vector<16x16xf32>
    %cst_250 = arith.constant 0.000000e+00 : f32
    %527 = vector.broadcast %cst_250 : f32 to vector<16x16xf32>
    %528 = arith.cmpf ogt, %526, %527 : vector<16x16xf32>
    %cst_251 = arith.constant 1.000000e-30 : f32
    %529 = vector.broadcast %cst_251 : f32 to vector<16x16xf32>
    %530 = arith.maximumf %526, %529 : vector<16x16xf32>
    %531 = math.log %530 : vector<16x16xf32>
    %cst_252 = arith.constant 0.699999988 : f32
    %532 = vector.broadcast %cst_252 : f32 to vector<16x16xf32>
    %533 = arith.mulf %532, %531 : vector<16x16xf32>
    %534 = math.exp %533 : vector<16x16xf32>
    %cst_253 = arith.constant 0.000000e+00 : f32
    %535 = vector.broadcast %cst_253 : f32 to vector<16x16xf32>
    %536 = arith.select %528, %534, %535 : vector<16x16xi1>, vector<16x16xf32>
    %cst_254 = arith.constant 16.5104389 : f32
    %537 = vector.broadcast %cst_254 : f32 to vector<16x16xf32>
    %538 = arith.cmpf olt, %536, %537 : vector<16x16xf32>
    %cst_255 = arith.constant 0.0575393513 : f32
    %539 = vector.broadcast %cst_255 : f32 to vector<16x16xf32>
    %540 = arith.mulf %536, %539 : vector<16x16xf32>
    %cst_256 = arith.constant 16.5104389 : f32
    %541 = vector.broadcast %cst_256 : f32 to vector<16x16xf32>
    %542 = arith.subf %536, %541 : vector<16x16xf32>
    %cst_257 = arith.constant 0.00201892457 : f32
    %543 = vector.broadcast %cst_257 : f32 to vector<16x16xf32>
    %544 = arith.mulf %542, %543 : vector<16x16xf32>
    %cst_258 = arith.constant 0.949999988 : f32
    %545 = vector.broadcast %cst_258 : f32 to vector<16x16xf32>
    %546 = arith.addf %545, %544 : vector<16x16xf32>
    %547 = arith.select %538, %540, %546 : vector<16x16xi1>, vector<16x16xf32>
    %cst_259 = arith.constant 1.600000e+01 : f32
    %548 = vector.broadcast %cst_259 : f32 to vector<16x16xf32>
    %549 = arith.addf %102, %548 : vector<16x16xf32>
    %cst_260 = arith.constant 8.620690e-03 : f32
    %550 = vector.broadcast %cst_260 : f32 to vector<16x16xf32>
    %551 = arith.mulf %549, %550 : vector<16x16xf32>
    %c4 = arith.constant 4 : index
    %c0_261 = arith.constant 0 : index
    %c0_262 = arith.constant 0 : index
    %552 = vector.load %arg4[%c4, %c0_261, %c0_262] : memref<8x16x16xf32, #tpu.memory_space<vmem>>, vector<1x16x16xf32>
    %553 = vector.shape_cast %552 : vector<1x16x16xf32> to vector<16x16xf32>
    %cst_263 = arith.constant dense<0.000000e+00> : vector<16x16xf32>
    %554 = tpu.matmul %553, %551, %cst_263 {dimension_numbers = #tpu.dot_dimension_numbers<[1], [0], [0], [1], [0, 0, 1, 1], [], []>} : vector<16x16xf32>, vector<16x16xf32>, vector<16x16xf32> -> vector<16x16xf32>
    %c4_264 = arith.constant 4 : index
    %c0_265 = arith.constant 0 : index
    %c0_266 = arith.constant 0 : index
    %555 = vector.load %arg5[%c4_264, %c0_265, %c0_266] : memref<8x16x16xf32, #tpu.memory_space<vmem>>, vector<1x16x16xf32>
    %556 = vector.shape_cast %555 : vector<1x16x16xf32> to vector<16x16xf32>
    %cst_267 = arith.constant dense<0.000000e+00> : vector<16x16xf32>
    %557 = tpu.matmul %554, %556, %cst_267 {dimension_numbers = #tpu.dot_dimension_numbers<[1], [0], [0], [1], [0, 0, 1, 1], [], []>} : vector<16x16xf32>, vector<16x16xf32>, vector<16x16xf32> -> vector<16x16xf32>
    %c5 = arith.constant 5 : index
    %c0_268 = arith.constant 0 : index
    %c0_269 = arith.constant 0 : index
    %558 = vector.load %arg4[%c5, %c0_268, %c0_269] : memref<8x16x16xf32, #tpu.memory_space<vmem>>, vector<1x16x16xf32>
    %559 = vector.shape_cast %558 : vector<1x16x16xf32> to vector<16x16xf32>
    %cst_270 = arith.constant dense<0.000000e+00> : vector<16x16xf32>
    %560 = tpu.matmul %559, %551, %cst_270 {dimension_numbers = #tpu.dot_dimension_numbers<[1], [0], [0], [1], [0, 0, 1, 1], [], []>} : vector<16x16xf32>, vector<16x16xf32>, vector<16x16xf32> -> vector<16x16xf32>
    %c5_271 = arith.constant 5 : index
    %c0_272 = arith.constant 0 : index
    %c0_273 = arith.constant 0 : index
    %561 = vector.load %arg5[%c5_271, %c0_272, %c0_273] : memref<8x16x16xf32, #tpu.memory_space<vmem>>, vector<1x16x16xf32>
    %562 = vector.shape_cast %561 : vector<1x16x16xf32> to vector<16x16xf32>
    %cst_274 = arith.constant dense<0.000000e+00> : vector<16x16xf32>
    %563 = tpu.matmul %560, %562, %cst_274 {dimension_numbers = #tpu.dot_dimension_numbers<[1], [0], [0], [1], [0, 0, 1, 1], [], []>} : vector<16x16xf32>, vector<16x16xf32>, vector<16x16xf32> -> vector<16x16xf32>
    %c6 = arith.constant 6 : index
    %c0_275 = arith.constant 0 : index
    %c0_276 = arith.constant 0 : index
    %564 = vector.load %arg4[%c6, %c0_275, %c0_276] : memref<8x16x16xf32, #tpu.memory_space<vmem>>, vector<1x16x16xf32>
    %565 = vector.shape_cast %564 : vector<1x16x16xf32> to vector<16x16xf32>
    %cst_277 = arith.constant dense<0.000000e+00> : vector<16x16xf32>
    %566 = tpu.matmul %565, %551, %cst_277 {dimension_numbers = #tpu.dot_dimension_numbers<[1], [0], [0], [1], [0, 0, 1, 1], [], []>} : vector<16x16xf32>, vector<16x16xf32>, vector<16x16xf32> -> vector<16x16xf32>
    %c6_278 = arith.constant 6 : index
    %c0_279 = arith.constant 0 : index
    %c0_280 = arith.constant 0 : index
    %567 = vector.load %arg5[%c6_278, %c0_279, %c0_280] : memref<8x16x16xf32, #tpu.memory_space<vmem>>, vector<1x16x16xf32>
    %568 = vector.shape_cast %567 : vector<1x16x16xf32> to vector<16x16xf32>
    %cst_281 = arith.constant dense<0.000000e+00> : vector<16x16xf32>
    %569 = tpu.matmul %566, %568, %cst_281 {dimension_numbers = #tpu.dot_dimension_numbers<[1], [0], [0], [1], [0, 0, 1, 1], [], []>} : vector<16x16xf32>, vector<16x16xf32>, vector<16x16xf32> -> vector<16x16xf32>
    %c7 = arith.constant 7 : index
    %c0_282 = arith.constant 0 : index
    %c0_283 = arith.constant 0 : index
    %570 = vector.load %arg4[%c7, %c0_282, %c0_283] : memref<8x16x16xf32, #tpu.memory_space<vmem>>, vector<1x16x16xf32>
    %571 = vector.shape_cast %570 : vector<1x16x16xf32> to vector<16x16xf32>
    %cst_284 = arith.constant dense<0.000000e+00> : vector<16x16xf32>
    %572 = tpu.matmul %571, %551, %cst_284 {dimension_numbers = #tpu.dot_dimension_numbers<[1], [0], [0], [1], [0, 0, 1, 1], [], []>} : vector<16x16xf32>, vector<16x16xf32>, vector<16x16xf32> -> vector<16x16xf32>
    %c7_285 = arith.constant 7 : index
    %c0_286 = arith.constant 0 : index
    %c0_287 = arith.constant 0 : index
    %573 = vector.load %arg5[%c7_285, %c0_286, %c0_287] : memref<8x16x16xf32, #tpu.memory_space<vmem>>, vector<1x16x16xf32>
    %574 = vector.shape_cast %573 : vector<1x16x16xf32> to vector<16x16xf32>
    %cst_288 = arith.constant dense<0.000000e+00> : vector<16x16xf32>
    %575 = tpu.matmul %572, %574, %cst_288 {dimension_numbers = #tpu.dot_dimension_numbers<[1], [0], [0], [1], [0, 0, 1, 1], [], []>} : vector<16x16xf32>, vector<16x16xf32>, vector<16x16xf32> -> vector<16x16xf32>
    %576 = arith.mulf %557, %557 : vector<16x16xf32>
    %577 = arith.mulf %563, %563 : vector<16x16xf32>
    %578 = arith.addf %576, %577 : vector<16x16xf32>
    %579 = math.sqrt %578 : vector<16x16xf32>
    %580 = arith.mulf %569, %569 : vector<16x16xf32>
    %581 = arith.mulf %575, %575 : vector<16x16xf32>
    %582 = arith.addf %580, %581 : vector<16x16xf32>
    %583 = math.sqrt %582 : vector<16x16xf32>
    %cst_289 = arith.constant 1.600000e+01 : f32
    %584 = vector.broadcast %cst_289 : f32 to vector<16x16xf32>
    %585 = arith.addf %187, %584 : vector<16x16xf32>
    %cst_290 = arith.constant 8.620690e-03 : f32
    %586 = vector.broadcast %cst_290 : f32 to vector<16x16xf32>
    %587 = arith.mulf %585, %586 : vector<16x16xf32>
    %c4_291 = arith.constant 4 : index
    %c0_292 = arith.constant 0 : index
    %c0_293 = arith.constant 0 : index
    %588 = vector.load %arg4[%c4_291, %c0_292, %c0_293] : memref<8x16x16xf32, #tpu.memory_space<vmem>>, vector<1x16x16xf32>
    %589 = vector.shape_cast %588 : vector<1x16x16xf32> to vector<16x16xf32>
    %cst_294 = arith.constant dense<0.000000e+00> : vector<16x16xf32>
    %590 = tpu.matmul %589, %587, %cst_294 {dimension_numbers = #tpu.dot_dimension_numbers<[1], [0], [0], [1], [0, 0, 1, 1], [], []>} : vector<16x16xf32>, vector<16x16xf32>, vector<16x16xf32> -> vector<16x16xf32>
    %c4_295 = arith.constant 4 : index
    %c0_296 = arith.constant 0 : index
    %c0_297 = arith.constant 0 : index
    %591 = vector.load %arg5[%c4_295, %c0_296, %c0_297] : memref<8x16x16xf32, #tpu.memory_space<vmem>>, vector<1x16x16xf32>
    %592 = vector.shape_cast %591 : vector<1x16x16xf32> to vector<16x16xf32>
    %cst_298 = arith.constant dense<0.000000e+00> : vector<16x16xf32>
    %593 = tpu.matmul %590, %592, %cst_298 {dimension_numbers = #tpu.dot_dimension_numbers<[1], [0], [0], [1], [0, 0, 1, 1], [], []>} : vector<16x16xf32>, vector<16x16xf32>, vector<16x16xf32> -> vector<16x16xf32>
    %c5_299 = arith.constant 5 : index
    %c0_300 = arith.constant 0 : index
    %c0_301 = arith.constant 0 : index
    %594 = vector.load %arg4[%c5_299, %c0_300, %c0_301] : memref<8x16x16xf32, #tpu.memory_space<vmem>>, vector<1x16x16xf32>
    %595 = vector.shape_cast %594 : vector<1x16x16xf32> to vector<16x16xf32>
    %cst_302 = arith.constant dense<0.000000e+00> : vector<16x16xf32>
    %596 = tpu.matmul %595, %587, %cst_302 {dimension_numbers = #tpu.dot_dimension_numbers<[1], [0], [0], [1], [0, 0, 1, 1], [], []>} : vector<16x16xf32>, vector<16x16xf32>, vector<16x16xf32> -> vector<16x16xf32>
    %c5_303 = arith.constant 5 : index
    %c0_304 = arith.constant 0 : index
    %c0_305 = arith.constant 0 : index
    %597 = vector.load %arg5[%c5_303, %c0_304, %c0_305] : memref<8x16x16xf32, #tpu.memory_space<vmem>>, vector<1x16x16xf32>
    %598 = vector.shape_cast %597 : vector<1x16x16xf32> to vector<16x16xf32>
    %cst_306 = arith.constant dense<0.000000e+00> : vector<16x16xf32>
    %599 = tpu.matmul %596, %598, %cst_306 {dimension_numbers = #tpu.dot_dimension_numbers<[1], [0], [0], [1], [0, 0, 1, 1], [], []>} : vector<16x16xf32>, vector<16x16xf32>, vector<16x16xf32> -> vector<16x16xf32>
    %c6_307 = arith.constant 6 : index
    %c0_308 = arith.constant 0 : index
    %c0_309 = arith.constant 0 : index
    %600 = vector.load %arg4[%c6_307, %c0_308, %c0_309] : memref<8x16x16xf32, #tpu.memory_space<vmem>>, vector<1x16x16xf32>
    %601 = vector.shape_cast %600 : vector<1x16x16xf32> to vector<16x16xf32>
    %cst_310 = arith.constant dense<0.000000e+00> : vector<16x16xf32>
    %602 = tpu.matmul %601, %587, %cst_310 {dimension_numbers = #tpu.dot_dimension_numbers<[1], [0], [0], [1], [0, 0, 1, 1], [], []>} : vector<16x16xf32>, vector<16x16xf32>, vector<16x16xf32> -> vector<16x16xf32>
    %c6_311 = arith.constant 6 : index
    %c0_312 = arith.constant 0 : index
    %c0_313 = arith.constant 0 : index
    %603 = vector.load %arg5[%c6_311, %c0_312, %c0_313] : memref<8x16x16xf32, #tpu.memory_space<vmem>>, vector<1x16x16xf32>
    %604 = vector.shape_cast %603 : vector<1x16x16xf32> to vector<16x16xf32>
    %cst_314 = arith.constant dense<0.000000e+00> : vector<16x16xf32>
    %605 = tpu.matmul %602, %604, %cst_314 {dimension_numbers = #tpu.dot_dimension_numbers<[1], [0], [0], [1], [0, 0, 1, 1], [], []>} : vector<16x16xf32>, vector<16x16xf32>, vector<16x16xf32> -> vector<16x16xf32>
    %c7_315 = arith.constant 7 : index
    %c0_316 = arith.constant 0 : index
    %c0_317 = arith.constant 0 : index
    %606 = vector.load %arg4[%c7_315, %c0_316, %c0_317] : memref<8x16x16xf32, #tpu.memory_space<vmem>>, vector<1x16x16xf32>
    %607 = vector.shape_cast %606 : vector<1x16x16xf32> to vector<16x16xf32>
    %cst_318 = arith.constant dense<0.000000e+00> : vector<16x16xf32>
    %608 = tpu.matmul %607, %587, %cst_318 {dimension_numbers = #tpu.dot_dimension_numbers<[1], [0], [0], [1], [0, 0, 1, 1], [], []>} : vector<16x16xf32>, vector<16x16xf32>, vector<16x16xf32> -> vector<16x16xf32>
    %c7_319 = arith.constant 7 : index
    %c0_320 = arith.constant 0 : index
    %c0_321 = arith.constant 0 : index
    %609 = vector.load %arg5[%c7_319, %c0_320, %c0_321] : memref<8x16x16xf32, #tpu.memory_space<vmem>>, vector<1x16x16xf32>
    %610 = vector.shape_cast %609 : vector<1x16x16xf32> to vector<16x16xf32>
    %cst_322 = arith.constant dense<0.000000e+00> : vector<16x16xf32>
    %611 = tpu.matmul %608, %610, %cst_322 {dimension_numbers = #tpu.dot_dimension_numbers<[1], [0], [0], [1], [0, 0, 1, 1], [], []>} : vector<16x16xf32>, vector<16x16xf32>, vector<16x16xf32> -> vector<16x16xf32>
    %612 = arith.mulf %593, %593 : vector<16x16xf32>
    %613 = arith.mulf %599, %599 : vector<16x16xf32>
    %614 = arith.addf %612, %613 : vector<16x16xf32>
    %615 = math.sqrt %614 : vector<16x16xf32>
    %616 = arith.mulf %605, %605 : vector<16x16xf32>
    %617 = arith.mulf %611, %611 : vector<16x16xf32>
    %618 = arith.addf %616, %617 : vector<16x16xf32>
    %619 = math.sqrt %618 : vector<16x16xf32>
    %620 = arith.subf %615, %579 : vector<16x16xf32>
    %621 = math.absf %620 : vector<16x16xf32>
    %622 = arith.subf %583, %619 : vector<16x16xf32>
    %623 = math.absf %622 : vector<16x16xf32>
    %624 = arith.maximumf %621, %623 : vector<16x16xf32>
    %cst_323 = arith.constant 0.707106769 : f32
    %625 = vector.broadcast %cst_323 : f32 to vector<16x16xf32>
    %626 = arith.mulf %624, %625 : vector<16x16xf32>
    %627 = math.sqrt %626 : vector<16x16xf32>
    %cst_324 = arith.constant 0.000000e+00 : f32
    %628 = vector.broadcast %cst_324 : f32 to vector<16x16xf32>
    %629 = arith.cmpf ogt, %547, %628 : vector<16x16xf32>
    %cst_325 = arith.constant 1.000000e+00 : f32
    %630 = vector.broadcast %cst_325 : f32 to vector<16x16xf32>
    %631 = arith.subf %630, %627 : vector<16x16xf32>
    %cst_326 = arith.constant 1.000000e-30 : f32
    %632 = vector.broadcast %cst_326 : f32 to vector<16x16xf32>
    %633 = arith.maximumf %547, %632 : vector<16x16xf32>
    %634 = math.log %633 : vector<16x16xf32>
    %635 = arith.mulf %631, %634 : vector<16x16xf32>
    %636 = math.exp %635 : vector<16x16xf32>
    %cst_327 = arith.constant 0.000000e+00 : f32
    %637 = vector.broadcast %cst_327 : f32 to vector<16x16xf32>
    %638 = arith.select %629, %636, %637 : vector<16x16xi1>, vector<16x16xf32>
    %639 = vector.shape_cast %638 : vector<16x16xf32> to vector<1x16x16xf32>
    %cst_328 = arith.constant dense<0.000000e+00> : vector<1xf32>
    %640 = vector.multi_reduction <add>, %639, %cst_328 [1, 2] : vector<1x16x16xf32> to vector<1xf32>
    %641 = vector.shape_cast %640 : vector<1xf32> to vector<1x1x1xf32>
    %642 = vector.extract %641[0, 0, 0] : f32 from vector<1x1x1xf32>
    %cst_329 = arith.constant 3.906250e-03 : f32
    %643 = arith.mulf %642, %cst_329 : f32
    %cst_330 = arith.constant 0.000000e+00 : f32
    %644 = vector.broadcast %cst_330 : f32 to vector<1x1x1xf32>
    %645 = vector.broadcast %643 : f32 to vector<1x1x1xf32>
    %646 = arith.addf %644, %645 : vector<1x1x1xf32>
    %c0_331 = arith.constant 0 : index
    %c0_332 = arith.constant 0 : index
    %c0_333 = arith.constant 0 : index
    %647 = vector.load %arg6[%c0_331, %c0_332, %c0_333] : memref<1x1x1xf32, #tpu.memory_space<vmem>>, vector<1x1x1xf32>
    tpu.vector_store %arg6[%c0_331, %c0_332, %c0_333], %646 {strides = array<i32>} : memref<1x1x1xf32, #tpu.memory_space<vmem>>, vector<1x1x1xf32>,
    return
  }
  func.func @transform_0(%arg0: i32) -> (i32, i32, i32, i32) {
    %c0_i32 = arith.constant 0 : i32
    %c0_i32_0 = arith.constant 0 : i32
    %c0_i32_1 = arith.constant 0 : i32
    %c0_i32_2 = arith.constant 0 : i32
    return %arg0, %c0_i32, %c0_i32_0, %c0_i32_1 : i32, i32, i32, i32
  }
  func.func @transform_1(%arg0: i32) -> (i32, i32, i32, i32) {
    %c1_i32 = arith.constant 1 : i32
    %c0_i32 = arith.constant 0 : i32
    %c0_i32_0 = arith.constant 0 : i32
    %c0_i32_1 = arith.constant 0 : i32
    return %arg0, %c1_i32, %c0_i32, %c0_i32_0 : i32, i32, i32, i32
  }
  func.func @transform_2(%arg0: i32) -> (i32, i32, i32, i32) {
    %c0_i32 = arith.constant 0 : i32
    %c0_i32_0 = arith.constant 0 : i32
    %c0_i32_1 = arith.constant 0 : i32
    %c0_i32_2 = arith.constant 0 : i32
    return %arg0, %c0_i32, %c0_i32_0, %c0_i32_1 : i32, i32, i32, i32
  }
  func.func @transform_3(%arg0: i32) -> (i32, i32, i32) {
    %c0_i32 = arith.constant 0 : i32
    %c0_i32_0 = arith.constant 0 : i32
    %c0_i32_1 = arith.constant 0 : i32
    %c0_i32_2 = arith.constant 0 : i32
    return %c0_i32, %c0_i32_0, %c0_i32_1 : i32, i32, i32
  }
  func.func @transform_4(%arg0: i32) -> (i32, i32, i32) {
    %c0_i32 = arith.constant 0 : i32
    %c0_i32_0 = arith.constant 0 : i32
    %c0_i32_1 = arith.constant 0 : i32
    %c0_i32_2 = arith.constant 0 : i32
    return %c0_i32, %c0_i32_0, %c0_i32_1 : i32, i32, i32
  }
  func.func @transform_5(%arg0: i32) -> (i32, i32, i32) {
    %c0_i32 = arith.constant 0 : i32
    %c0_i32_0 = arith.constant 0 : i32
    %c0_i32_1 = arith.constant 0 : i32
    return %arg0, %c0_i32, %c0_i32_0 : i32, i32, i32
  }
}

</mosaic_0001>

<llo_original>
// kernel: tpu_custom_call.1
$region0: #{tpu_custom_call.1}
  #allocation0 [shape = 'u32[]', space=smem, size = 0x4, offset = 0x4, fixed_abs, tag = 'smem constant byte address 0x4 - core index']
  #allocation1 [shape = 'u32[72,128]{1,0:T(1,128)}', space=vmem, size = 0x9000, scoped, tag = 'internal scratch']
  %s0 = inlined_call_operand.hbm [shape: f32[2,6,16,16], index: 0, kind: input, shape index: {}]
  %s1 = inlined_call_operand.hbm [shape: f32[2,6,16,16], index: 1, kind: input, shape index: {}]
  %s2 = inlined_call_operand.hbm [shape: f32[2,1,16,16], index: 2, kind: input, shape index: {}]
  %s3 = inlined_call_operand.hbm [shape: f32[8,16,16], index: 3, kind: input, shape index: {}]
  %s4 = inlined_call_operand.hbm [shape: f32[8,16,16], index: 4, kind: input, shape index: {}]
  %s5 = inlined_call_operand.vmem [shape: f32[2,1,1], index: 5, kind: output, shape index: {}]
  %s6 = sld [smem:[#allocation0]]
  $region73: #{tpu_custom_call.1} parent=0
    _
  %s8 = ssub.s32 1, %s6
  %s9 = scalar_select 0, %s8, %s6
  $region1: #{tpu_custom_call.1} parent=0
    #allocation2 [shape = 'u8[49152]{0}', space=vmem, size = 0xc000, scoped, tag = 'input window, operand 0']
    #allocation3 [shape = 's32[2]{0}', space=sflag, size = 0x8, scoped, tag = 'scoped memory for tpu_custom_call.1']
    #allocation4 [shape = 'u8[49152]{0}', space=vmem, size = 0xc000, scoped, tag = 'input window, operand 1']
    #allocation5 [shape = 's32[2]{0}', space=sflag, size = 0x8, scoped, tag = 'scoped memory for tpu_custom_call.1']
    #allocation6 [shape = 'u8[16384]{0}', space=vmem, size = 0x4000, scoped, tag = 'input window, operand 2']
    #allocation7 [shape = 'u8[65536]{0}', space=vmem, size = 0x10000, scoped, tag = 'input window, operand 3, single buffered']
    #allocation8 [shape = 's32[1]{0}', space=sflag, size = 0x4, scoped, tag = 'scoped memory for tpu_custom_call.1']
    #allocation9 [shape = 'u8[65536]{0}', space=vmem, size = 0x10000, scoped, tag = 'input window, operand 4, single buffered']
    %10 = vsyncpa [#allocation3], 0
    %s11 = scalar_lea.sflag [#allocation3], 1
    %12 = vsyncpa %s11, 0
    %13 = vsyncpa [#allocation5], 0
    %s14 = scalar_lea.sflag [#allocation5], 1
    %15 = vsyncpa %s14, 0
    %16 = vsyncpa [#allocation8], 0
    loop: start=0, step=1, limit=4
    $region2: #{tpu_custom_call.1} parent=1 // loop_pre_header
      _
    $region3: #{tpu_custom_call.1} parent=1 // loop_header
      %s18 = sphi 0, %s22
      %p19 = scmp.ge.s32.totalorder %s18, 4
      %s28 = sphi 0, %s30
      %s31 = sphi 0, %s28
      %s32 = sphi 0, %s31
      %s48 = sphi 0, %s32
      %s54 = sphi 0, %s56
      %s57 = sphi 0, %s54
      %s58 = sphi 0, %s57
      %s74 = sphi 0, %s58
      %s80 = sphi 0, %s82
      %s83 = sphi 0, %s80
      %s84 = sphi 0, %s83
      %s100 = sphi 0, %s84
      %s104 = sphi 0, %s104
      %s106 = sphi 0, %s104
      %s107 = sphi 0, %s106
      %s121 = sphi 0, %s107
      %s125 = sphi 0, %s125
      %s127 = sphi 0, %s125
      %s128 = sphi 0, %s127
      %s142 = sphi 0, %s128
      %s148 = sphi 0, %s150
      %s151 = sphi 0, %s148
      %s152 = sphi 0, %s151
      %s168 = sphi 0, %s152
    $region4: #{tpu_custom_call.1} parent=1 // loop_header_branch
      %21 = sbr.rel (%p19) target = $region8
    $region5: #{tpu_custom_call.1} parent=1 // loop_body
      %s23 = ssub.s32 %s18, 1
      %s24 = ssub.s32 %s18, 2
      %s25 = sadd.s32 %s18, 1
      %s26 = ssub.s32 %s18, %s25
      %p27 = scmp.eq.s32.totalorder %s26, 0
      %s29 = sadd.s32 %s28, 1
      %s30 = scalar_select %p27, %s28, %s29
      %p33 = pneg %p27
      %p34 = scmp.eq.s32.totalorder %s18, 1
      %p35 = por %p33, %p34
      %p36 = scmp.ne.s32.totalorder %s28, %s31
      %p37 = scmp.eq.s32.totalorder %s18, 0
      %p38 = por %p36, %p37
      %p39 = scmp.ne.s32.totalorder %s28, %s31
      %p40 = scmp.eq.s32.totalorder %s23, 1
      %p41 = por %p39, %p40
      %p42 = scmp.ne.s32.totalorder %s31, %s32
      %p43 = scmp.eq.s32.totalorder %s23, 0
      %p44 = por %p42, %p43
      %p45 = scmp.ne.s32.totalorder %s31, %s32
      %p46 = scmp.eq.s32.totalorder %s24, 1
      %p47 = por %p45, %p46
      %p49 = scmp.ne.s32.totalorder %s32, %s48
      %p50 = scmp.eq.s32.totalorder %s24, 0
      %p51 = por %p49, %p50
      %s52 = ssub.s32 %s18, %s25
      %p53 = scmp.eq.s32.totalorder %s52, 0
      %s55 = sadd.s32 %s54, 1
      %s56 = scalar_select %p53, %s54, %s55
      %p59 = pneg %p53
      %p60 = scmp.eq.s32.totalorder %s18, 1
      %p61 = por %p59, %p60
      %p62 = scmp.ne.s32.totalorder %s54, %s57
      %p63 = scmp.eq.s32.totalorder %s18, 0
      %p64 = por %p62, %p63
      %p65 = scmp.ne.s32.totalorder %s54, %s57
      %p66 = scmp.eq.s32.totalorder %s23, 1
      %p67 = por %p65, %p66
      %p68 = scmp.ne.s32.totalorder %s57, %s58
      %p69 = scmp.eq.s32.totalorder %s23, 0
      %p70 = por %p68, %p69
      %p71 = scmp.ne.s32.totalorder %s57, %s58
      %p72 = scmp.eq.s32.totalorder %s24, 1
      %p73 = por %p71, %p72
      %p75 = scmp.ne.s32.totalorder %s58, %s74
      %p76 = scmp.eq.s32.totalorder %s24, 0
      %p77 = por %p75, %p76
      %s78 = ssub.s32 %s18, %s25
      %p79 = scmp.eq.s32.totalorder %s78, 0
      %s81 = sadd.s32 %s80, 1
      %s82 = scalar_select %p79, %s80, %s81
      %p85 = pneg %p79
      %p86 = scmp.eq.s32.totalorder %s18, 1
      %p87 = por %p85, %p86
      %p88 = scmp.ne.s32.totalorder %s80, %s83
      %p89 = scmp.eq.s32.totalorder %s18, 0
      %p90 = por %p88, %p89
      %p91 = scmp.ne.s32.totalorder %s80, %s83
      %p92 = scmp.eq.s32.totalorder %s23, 1
      %p93 = por %p91, %p92
      %p94 = scmp.ne.s32.totalorder %s83, %s84
      %p95 = scmp.eq.s32.totalorder %s23, 0
      %p96 = por %p94, %p95
      %p97 = scmp.ne.s32.totalorder %s83, %s84
      %p98 = scmp.eq.s32.totalorder %s24, 1
      %p99 = por %p97, %p98
      %p101 = scmp.ne.s32.totalorder %s84, %s100
      %p102 = scmp.eq.s32.totalorder %s24, 0
      %p103 = por %p101, %p102
      %s105 = sadd.s32 %s104, 1
      %p108 = scmp.eq.s32.totalorder %s18, 1
      %p109 = scmp.ne.s32.totalorder %s104, %s106
      %p110 = scmp.eq.s32.totalorder %s18, 0
      %p111 = por %p109, %p110
      %p112 = scmp.ne.s32.totalorder %s104, %s106
      %p113 = scmp.eq.s32.totalorder %s23, 1
      %p114 = por %p112, %p113
      %p115 = scmp.ne.s32.totalorder %s106, %s107
      %p116 = scmp.eq.s32.totalorder %s23, 0
      %p117 = por %p115, %p116
      %p118 = scmp.ne.s32.totalorder %s106, %s107
      %p119 = scmp.eq.s32.totalorder %s24, 1
      %p120 = por %p118, %p119
      %p122 = scmp.ne.s32.totalorder %s107, %s121
      %p123 = scmp.eq.s32.totalorder %s24, 0
      %p124 = por %p122, %p123
      %s126 = sadd.s32 %s125, 1
      %p129 = scmp.eq.s32.totalorder %s18, 1
      %p130 = scmp.ne.s32.totalorder %s125, %s127
      %p131 = scmp.eq.s32.totalorder %s18, 0
      %p132 = por %p130, %p131
      %p133 = scmp.ne.s32.totalorder %s125, %s127
      %p134 = scmp.eq.s32.totalorder %s23, 1
      %p135 = por %p133, %p134
      %p136 = scmp.ne.s32.totalorder %s127, %s128
      %p137 = scmp.eq.s32.totalorder %s23, 0
      %p138 = por %p136, %p137
      %p139 = scmp.ne.s32.totalorder %s127, %s128
      %p140 = scmp.eq.s32.totalorder %s24, 1
      %p141 = por %p139, %p140
      %p143 = scmp.ne.s32.totalorder %s128, %s142
      %p144 = scmp.eq.s32.totalorder %s24, 0
      %p145 = por %p143, %p144
      %s146 = ssub.s32 %s18, %s25
      %p147 = scmp.eq.s32.totalorder %s146, 0
      %s149 = sadd.s32 %s148, 1
      %s150 = scalar_select %p147, %s148, %s149
      %p153 = pneg %p147
      %p154 = scmp.eq.s32.totalorder %s18, 1
      %p155 = por %p153, %p154
      %p156 = scmp.ne.s32.totalorder %s148, %s151
      %p157 = scmp.eq.s32.totalorder %s18, 0
      %p158 = por %p156, %p157
      %p159 = scmp.ne.s32.totalorder %s148, %s151
      %p160 = scmp.eq.s32.totalorder %s23, 1
      %p161 = por %p159, %p160
      %p162 = scmp.ne.s32.totalorder %s151, %s152
      %p163 = scmp.eq.s32.totalorder %s23, 0
      %p164 = por %p162, %p163
      %p165 = scmp.ne.s32.totalorder %s151, %s152
      %p166 = scmp.eq.s32.totalorder %s24, 1
      %p167 = por %p165, %p166
      %p169 = scmp.ne.s32.totalorder %s152, %s168
      %p170 = scmp.eq.s32.totalorder %s24, 0
      %p171 = por %p169, %p170
      %p172 = scmp.le.s32.totalorder 1, %s18
      %p173 = scmp.lt.s32.totalorder %s18, 3
      %p174 = pnand %p172, %p173
      %p175 = pneg %p174
      // Predicated region
      $region9: #{tpu_custom_call.1} parent=5 // pred_check
        _
      $region10: #{tpu_custom_call.1} parent=5 // pred_check_branch
        %177 = sbr.rel (%p174) target = $region12
      $region11: #{tpu_custom_call.1} parent=5 // pred_region
        %s178 = ssub.s32 %s18, 1
        // Predicated region
        $region13: #{tpu_custom_call.1} parent=11 // pred_check
          %p179 = pneg %p117
        $region14: #{tpu_custom_call.1} parent=11 // pred_check_branch
          %181 = sbr.rel (%p179) target = $region16
        $region15: #{tpu_custom_call.1} parent=11 // pred_region
          %183 = vsyncadd [#allocation8], 0
          %s184 = sshll.u32 %s3, 4
          %s185 = int_to_ptr.hbm [resolvable:$true] %s184
          %s186 = sshll.u32 [#allocation7], 4
          %s187 = int_to_ptr.vmem [resolvable:$true] %s186
          %192 = dma.hbm_to_vmem [thread:$0]  %s185, 2048, %s187, [#allocation8], 128, 128, 8
        $region16: #{tpu_custom_call.1} parent=11 // pred_fallthru
          _
        // Predicated region
        $region17: #{tpu_custom_call.1} parent=11 // pred_check
          %p193 = pneg %p138
        $region18: #{tpu_custom_call.1} parent=11 // pred_check_branch
          %195 = sbr.rel (%p193) target = $region20
        $region19: #{tpu_custom_call.1} parent=11 // pred_region
          %197 = vsyncadd [#allocation8], 0
          %s198 = sshll.u32 %s4, 4
          %s199 = int_to_ptr.hbm [resolvable:$true] %s198
          %s200 = sshll.u32 [#allocation9], 4
          %s201 = int_to_ptr.vmem [resolvable:$true] %s200
          %206 = dma.hbm_to_vmem [thread:$0]  %s199, 2048, %s201, [#allocation8], 128, 128, 8
        $region20: #{tpu_custom_call.1} parent=11 // pred_fallthru
          _
      $region12: #{tpu_custom_call.1} parent=5 // pred_fallthru
        _
      %p207 = scmp.lt.s32.totalorder %s18, 2
      // Predicated region
      $region21: #{tpu_custom_call.1} parent=5 // pred_check
        %p208 = pneg %p207
      $region22: #{tpu_custom_call.1} parent=5 // pred_check_branch
        %210 = sbr.rel (%p208) target = $region24
      $region23: #{tpu_custom_call.1} parent=5 // pred_region
        // Predicated region
        $region25: #{tpu_custom_call.1} parent=23 // pred_check
          %p211 = pneg %p38
        $region26: #{tpu_custom_call.1} parent=23 // pred_check_branch
          %213 = sbr.rel (%p211) target = $region28
        $region27: #{tpu_custom_call.1} parent=23 // pred_region
          %s214 = sand.u32 %s28, 1
          %s215 = scalar_lea.sflag [#allocation3], %s214
          %s216 = sand.u32 %s28, 1
          %s217 = smul.addr %s216, 48
          %s218 = scalar_lea.vmem [#allocation2], %s217
          %220 = vsyncadd %s215, 0
          %s221 = smul.addr %s18, 12
          %s222 = smul.addr %s221, 8
          %s223 = scalar_lea.hbm %s0, %s222
          %s224 = sshll.u32 %s223, 4
          %s225 = int_to_ptr.hbm [resolvable:$true] %s224
          %s226 = sshll.u32 %s218, 4
          %s227 = int_to_ptr.vmem [resolvable:$true] %s226
          %232 = dma.hbm_to_vmem [thread:$0]  %s225, 768, %s227, %s215, 128, 128, 8
        $region28: #{tpu_custom_call.1} parent=23 // pred_fallthru
          _
        // Predicated region
        $region29: #{tpu_custom_call.1} parent=23 // pred_check
          %p233 = pneg %p64
        $region30: #{tpu_custom_call.1} parent=23 // pred_check_branch
          %235 = sbr.rel (%p233) target = $region32
        $region31: #{tpu_custom_call.1} parent=23 // pred_region
          %s236 = sand.u32 %s18, 1
          %s237 = scalar_lea.sflag [#allocation5], %s236
          %s238 = sand.u32 %s54, 1
          %s239 = smul.addr %s238, 48
          %s240 = scalar_lea.vmem [#allocation4], %s239
          %242 = vsyncadd %s237, 0
          %s243 = smul.addr %s18, 12
          %s244 = sadd.s32 6, %s243
          %s245 = smul.addr %s244, 8
          %s246 = scalar_lea.hbm %s1, %s245
          %s247 = sshll.u32 %s246, 4
          %s248 = int_to_ptr.hbm [resolvable:$true] %s247
          %s249 = sshll.u32 %s240, 4
          %s250 = int_to_ptr.vmem [resolvable:$true] %s249
          %255 = dma.hbm_to_vmem [thread:$0]  %s248, 768, %s250, %s237, 128, 128, 8
        $region32: #{tpu_custom_call.1} parent=23 // pred_fallthru
          _
        // Predicated region
        $region33: #{tpu_custom_call.1} parent=23 // pred_check
          %p256 = pneg %p90
        $region34: #{tpu_custom_call.1} parent=23 // pred_check_branch
          %258 = sbr.rel (%p256) target = $region36
        $region35: #{tpu_custom_call.1} parent=23 // pred_region
          %s259 = sand.u32 %s18, 1
          %s260 = scalar_lea.sflag [#allocation5], %s259
          %s261 = sand.u32 %s80, 1
          %s262 = smul.addr %s261, 16
          %s263 = scalar_lea.vmem [#allocation6], %s262
          %265 = vsyncadd %s260, 0
          %s266 = smul.addr %s18, 2
          %s267 = smul.addr %s266, 8
          %s268 = scalar_lea.hbm %s2, %s267
          %s269 = sshll.u32 %s268, 4
          %s270 = int_to_ptr.hbm [resolvable:$true] %s269
          %s271 = sshll.u32 %s263, 4
          %s272 = int_to_ptr.vmem [resolvable:$true] %s271
          %277 = dma.hbm_to_vmem [thread:$0]  %s270, 256, %s272, %s260, 128, 128, 8
        $region36: #{tpu_custom_call.1} parent=23 // pred_fallthru
          _
      $region24: #{tpu_custom_call.1} parent=5 // pred_fallthru
        _
      %p278 = scmp.le.s32.totalorder 1, %s18
      %p279 = scmp.lt.s32.totalorder %s18, 3
      %p280 = pnand %p278, %p279
      %p281 = pneg %p280
      // Predicated region
      $region37: #{tpu_custom_call.1} parent=5 // pred_check
        _
      $region38: #{tpu_custom_call.1} parent=5 // pred_check_branch
        %283 = sbr.rel (%p280) target = $region40
      $region39: #{tpu_custom_call.1} parent=5 // pred_region
        %s284 = ssub.s32 %s18, 1
        %s285 = sand.u32 %s31, 1
        %s286 = scalar_lea.sflag [#allocation3], %s285
        %s287 = sand.u32 %s31, 1
        %s288 = smul.addr %s287, 48
        %s289 = scalar_lea.vmem [#allocation2], %s288
        // Predicated region
        $region41: #{tpu_custom_call.1} parent=39 // pred_check
          %p290 = pneg %p44
        $region42: #{tpu_custom_call.1} parent=39 // pred_check_branch
          %292 = sbr.rel (%p290) target = $region44
        $region43: #{tpu_custom_call.1} parent=39 // pred_region
          %294 = dma.done %s286, 768
        $region44: #{tpu_custom_call.1} parent=39 // pred_fallthru
          _
        %s295 = sand.u32 %s23, 1
        %s296 = scalar_lea.sflag [#allocation5], %s295
        %s297 = sand.u32 %s57, 1
        %s298 = smul.addr %s297, 48
        %s299 = scalar_lea.vmem [#allocation4], %s298
        // Predicated region
        $region45: #{tpu_custom_call.1} parent=39 // pred_check
          %p300 = pneg %p70
        $region46: #{tpu_custom_call.1} parent=39 // pred_check_branch
          %302 = sbr.rel (%p300) target = $region48
        $region47: #{tpu_custom_call.1} parent=39 // pred_region
          %304 = dma.done %s296, 768
        $region48: #{tpu_custom_call.1} parent=39 // pred_fallthru
          _
        %s305 = sand.u32 %s23, 1
        %s306 = scalar_lea.sflag [#allocation5], %s305
        %s307 = sand.u32 %s83, 1
        %s308 = smul.addr %s307, 16
        %s309 = scalar_lea.vmem [#allocation6], %s308
        // Predicated region
        $region49: #{tpu_custom_call.1} parent=39 // pred_check
          %p310 = pneg %p96
        $region50: #{tpu_custom_call.1} parent=39 // pred_check_branch
          %312 = sbr.rel (%p310) target = $region52
        $region51: #{tpu_custom_call.1} parent=39 // pred_region
          %314 = dma.done %s306, 256
        $region52: #{tpu_custom_call.1} parent=39 // pred_fallthru
          _
        // Predicated region
        $region53: #{tpu_custom_call.1} parent=39 // pred_check
          %p315 = pneg %p117
        $region54: #{tpu_custom_call.1} parent=39 // pred_check_branch
          %317 = sbr.rel (%p315) target = $region56
        $region55: #{tpu_custom_call.1} parent=39 // pred_region
          %319 = dma.done [#allocation8], 2048
        $region56: #{tpu_custom_call.1} parent=39 // pred_fallthru
          _
        // Predicated region
        $region57: #{tpu_custom_call.1} parent=39 // pred_check
          %p320 = pneg %p138
        $region58: #{tpu_custom_call.1} parent=39 // pred_check_branch
          %322 = sbr.rel (%p320) target = $region60
        $region59: #{tpu_custom_call.1} parent=39 // pred_region
          %324 = dma.done [#allocation8], 2048
        $region60: #{tpu_custom_call.1} parent=39 // pred_fallthru
          _
        %s325 = sand.u32 %s31, 1
        %s326 = scalar_lea.sflag [#allocation3], %s325
        %s327 = sand.u32 %s31, 1
        %s328 = smul.addr %s327, 48
        %s329 = scalar_lea.vmem [#allocation2], %s328
        %p330 = pneg %p44
        %p331 = pneg %p41
        %s332 = sand.u32 %s23, 1
        %s333 = scalar_lea.sflag [#allocation5], %s332
        %s334 = sand.u32 %s57, 1
        %s335 = smul.addr %s334, 48
        %s336 = scalar_lea.vmem [#allocation4], %s335
        %p337 = pneg %p70
        %p338 = pneg %p67
        %s339 = sand.u32 %s23, 1
        %s340 = scalar_lea.sflag [#allocation5], %s339
        %s341 = sand.u32 %s83, 1
        %s342 = smul.addr %s341, 16
        %s343 = scalar_lea.vmem [#allocation6], %s342
        %p344 = pneg %p96
        %p345 = pneg %p93
        %p346 = pneg %p117
        %p347 = pneg %p114
        %p348 = pneg %p138
        %p349 = pneg %p135
        %p350 = pneg %p164
        %p351 = pneg %p161
        %p352 = scmp.lt.s32.totalorder %s23, 1
        %s353 = scalar_select %p352, %s23, 1
        %s354 = scalar_lea.vmem %s5, %s353
        %p355 = scmp.lt.s32.totalorder %s23, 1
        %s356 = scalar_select %p355, %s23, 1
        %s357 = scalar_lea.vmem %s5, %s356
        %v358 = vld [vmem:[%s309] sm:$0xff]
        %v359 = vld [vmem:[%s309 + $0x8] sm:$0xff]
        %v360 = vsub.f32 1.0, %v358
        %v361 = vsub.f32 1.0, %v359
        %v362 = vld [vmem:[%s289] sm:$0xff]
        %v363 = vld [vmem:[%s289 + $0x8] sm:$0xff]
        %v364 = vld [vmem:[%s289 + $0x10] sm:$0xff]
        %v365 = vld [vmem:[%s289 + $0x18] sm:$0xff]
        %v366 = vld [vmem:[%s289 + $0x20] sm:$0xff]
        %v367 = vld [vmem:[%s289 + $0x28] sm:$0xff]
        %v368 = vmul.f32 %v362, %v360
        %v369 = vmul.f32 %v363, %v361
        %v370 = vmul.f32 %v364, %v360
        %v371 = vmul.f32 %v365, %v361
        %v372 = vmul.f32 %v366, %v360
        %v373 = vmul.f32 %v367, %v361
        %v374 = vld [vmem:[%s299] sm:$0xff]
        %v375 = vld [vmem:[%s299 + $0x8] sm:$0xff]
        %v376 = vld [vmem:[%s299 + $0x10] sm:$0xff]
        %v377 = vld [vmem:[%s299 + $0x18] sm:$0xff]
        %v378 = vld [vmem:[%s299 + $0x20] sm:$0xff]
        %v379 = vld [vmem:[%s299 + $0x28] sm:$0xff]
        %v380 = vmul.f32 %v374, %v360
        %v381 = vmul.f32 %v375, %v361
        %v382 = vmul.f32 %v376, %v360
        %v383 = vmul.f32 %v377, %v361
        %v384 = vmul.f32 %v378, %v360
        %v385 = vmul.f32 %v379, %v361
        %v386 = vmax.f32 %v368, 0.04045
        %v387 = vmax.f32 %v369, 0.04045
        %v388 = vadd.f32 %v386, 0.055
        %v389 = vadd.f32 %v387, 0.055
        %v390 = vmul.f32 %v388, 0.9478673
        %v391 = vmul.f32 %v389, 0.9478673
        %v392 = vlog2.pop %v390
        %v393 = vmul.f32 %v392, 0.6931472
        %v394 = vlog2.pop %v391
        %v395 = vmul.f32 %v394, 0.6931472
        %v396 = vmul.f32 %v393, 2.4
        %v397 = vmul.f32 %v395, 2.4
        %v398 = vmul.f32 %v396, 1.442695
        %v399 = vpow.pop %v398
        %v400 = vmul.f32 %v397, 1.442695
        %v401 = vpow.pop %v400
        %vm402 = vcmp.gt.f32.partialorder %v368, 0.04045
        %vm403 = vcmp.gt.f32.partialorder %v369, 0.04045
        %v404 = vmul.f32 %v368, 0.07739938
        %v405 = vmul.f32 %v369, 0.07739938
        %v406 = vsel %vm402, %v399, %v404
        %v407 = vsel %vm403, %v401, %v405
        %v408 = vmax.f32 %v370, 0.04045
        %v409 = vmax.f32 %v371, 0.04045
        %v410 = vadd.f32 %v408, 0.055
        %v411 = vadd.f32 %v409, 0.055
        %v412 = vmul.f32 %v410, 0.9478673
        %v413 = vmul.f32 %v411, 0.9478673
        %v414 = vlog2.pop %v412
        %v415 = vmul.f32 %v414, 0.6931472
        %v416 = vlog2.pop %v413
        %v417 = vmul.f32 %v416, 0.6931472
        %v418 = vmul.f32 %v415, 2.4
        %v419 = vmul.f32 %v417, 2.4
        %v420 = vmul.f32 %v418, 1.442695
        %v421 = vpow.pop %v420
        %v422 = vmul.f32 %v419, 1.442695
        %v423 = vpow.pop %v422
        %vm424 = vcmp.gt.f32.partialorder %v370, 0.04045
        %vm425 = vcmp.gt.f32.partialorder %v371, 0.04045
        %v426 = vmul.f32 %v370, 0.07739938
        %v427 = vmul.f32 %v371, 0.07739938
        %v428 = vsel %vm424, %v421, %v426
        %v429 = vsel %vm425, %v423, %v427
        %v430 = vmax.f32 %v372, 0.04045
        %v431 = vmax.f32 %v373, 0.04045
        %v432 = vadd.f32 %v430, 0.055
        %v433 = vadd.f32 %v431, 0.055
        %v434 = vmul.f32 %v432, 0.9478673
        %v435 = vmul.f32 %v433, 0.9478673
        %v436 = vlog2.pop %v434
        %v437 = vmul.f32 %v436, 0.6931472
        %v438 = vlog2.pop %v435
        %v439 = vmul.f32 %v438, 0.6931472
        %v440 = vmul.f32 %v437, 2.4
        %v441 = vmul.f32 %v439, 2.4
        %v442 = vmul.f32 %v440, 1.442695
        %v443 = vpow.pop %v442
        %v444 = vmul.f32 %v441, 1.442695
        %v445 = vpow.pop %v444
        %vm446 = vcmp.gt.f32.partialorder %v372, 0.04045
        %vm447 = vcmp.gt.f32.partialorder %v373, 0.04045
        %v448 = vmul.f32 %v372, 0.07739938
        %v449 = vmul.f32 %v373, 0.07739938
        %v450 = vsel %vm446, %v443, %v448
        %v451 = vsel %vm447, %v445, %v449
        %v452 = vmul.f32 %v406, 0.41238657
        %v453 = vmul.f32 %v407, 0.41238657
        %v454 = vmul.f32 %v428, 0.35759148
        %v455 = vmul.f32 %v429, 0.35759148
        %v456 = vadd.f32 %v452, %v454
        %v457 = vadd.f32 %v453, %v455
        %v458 = vmul.f32 %v450, 0.18045048
        %v459 = vmul.f32 %v451, 0.18045048
        %v460 = vadd.f32 %v456, %v458
        %v461 = vadd.f32 %v457, %v459
        %v462 = vmul.f32 %v406, 0.21263683
        %v463 = vmul.f32 %v407, 0.21263683
        %v464 = vmul.f32 %v428, 0.71518296
        %v465 = vmul.f32 %v429, 0.71518296
        %v466 = vadd.f32 %v462, %v464
        %v467 = vadd.f32 %v463, %v465
        %v468 = vmul.f32 %v450, 0.0721802
        %v469 = vmul.f32 %v451, 0.0721802
        %v470 = vadd.f32 %v466, %v468
        %v471 = vadd.f32 %v467, %v469
        %v472 = vmul.f32 %v406, 0.01933062
        %v473 = vmul.f32 %v407, 0.01933062
        %v474 = vmul.f32 %v428, 0.11919716
        %v475 = vmul.f32 %v429, 0.11919716
        %v476 = vadd.f32 %v472, %v474
        %v477 = vadd.f32 %v473, %v475
        %v478 = vmul.f32 %v450, 0.9503726
        %v479 = vmul.f32 %v451, 0.9503726
        %v480 = vadd.f32 %v476, %v478
        %v481 = vadd.f32 %v477, %v479
        %v482 = vmul.f32 %v460, 1.0521569
        %v483 = vmul.f32 %v461, 1.0521569
        %v484 = vmul.f32 %v480, 0.9183577
        %v485 = vmul.f32 %v481, 0.9183577
        %v486 = vmul.f32 %v470, 116.0
        %v487 = vmul.f32 %v471, 116.0
        %v488 = vsub.f32 %v486, 16.0
        %v489 = vsub.f32 %v487, 16.0
        %v490 = vsub.f32 %v482, %v470
        %v491 = vsub.f32 %v483, %v471
        %v492 = vmul.f32 %v490, 500.0
        %v493 = vmul.f32 %v491, 500.0
        %v494 = vsub.f32 %v470, %v484
        %v495 = vsub.f32 %v471, %v485
        %v496 = vmul.f32 %v494, 200.0
        %v497 = vmul.f32 %v495, 200.0
        %v498 = vmax.f32 %v380, 0.04045
        %v499 = vmax.f32 %v381, 0.04045
        %v500 = vadd.f32 %v498, 0.055
        %v501 = vadd.f32 %v499, 0.055
        %v502 = vmul.f32 %v500, 0.9478673
        %v503 = vmul.f32 %v501, 0.9478673
        %v504 = vlog2.pop %v502
        %v505 = vmul.f32 %v504, 0.6931472
        %v506 = vlog2.pop %v503
        %v507 = vmul.f32 %v506, 0.6931472
        %v508 = vmul.f32 %v505, 2.4
        %v509 = vmul.f32 %v507, 2.4
        %v510 = vmul.f32 %v508, 1.442695
        %v511 = vpow.pop %v510
        %v512 = vmul.f32 %v509, 1.442695
        %v513 = vpow.pop %v512
        %vm514 = vcmp.gt.f32.partialorder %v380, 0.04045
        %vm515 = vcmp.gt.f32.partialorder %v381, 0.04045
        %v516 = vmul.f32 %v380, 0.07739938
        %v517 = vmul.f32 %v381, 0.07739938
        %v518 = vsel %vm514, %v511, %v516
        %v519 = vsel %vm515, %v513, %v517
        %v520 = vmax.f32 %v382, 0.04045
        %v521 = vmax.f32 %v383, 0.04045
        %v522 = vadd.f32 %v520, 0.055
        %v523 = vadd.f32 %v521, 0.055
        %v524 = vmul.f32 %v522, 0.9478673
        %v525 = vmul.f32 %v523, 0.9478673
        %v526 = vlog2.pop %v524
        %v527 = vmul.f32 %v526, 0.6931472
        %v528 = vlog2.pop %v525
        %v529 = vmul.f32 %v528, 0.6931472
        %v530 = vmul.f32 %v527, 2.4
        %v531 = vmul.f32 %v529, 2.4
        %v532 = vmul.f32 %v530, 1.442695
        %v533 = vpow.pop %v532
        %v534 = vmul.f32 %v531, 1.442695
        %v535 = vpow.pop %v534
        %vm536 = vcmp.gt.f32.partialorder %v382, 0.04045
        %vm537 = vcmp.gt.f32.partialorder %v383, 0.04045
        %v538 = vmul.f32 %v382, 0.07739938
        %v539 = vmul.f32 %v383, 0.07739938
        %v540 = vsel %vm536, %v533, %v538
        %v541 = vsel %vm537, %v535, %v539
        %v542 = vmax.f32 %v384, 0.04045
        %v543 = vmax.f32 %v385, 0.04045
        %v544 = vadd.f32 %v542, 0.055
        %v545 = vadd.f32 %v543, 0.055
        %v546 = vmul.f32 %v544, 0.9478673
        %v547 = vmul.f32 %v545, 0.9478673
        %v548 = vlog2.pop %v546
        %v549 = vmul.f32 %v548, 0.6931472
        %v550 = vlog2.pop %v547
        %v551 = vmul.f32 %v550, 0.6931472
        %v552 = vmul.f32 %v549, 2.4
        %v553 = vmul.f32 %v551, 2.4
        %v554 = vmul.f32 %v552, 1.442695
        %v555 = vpow.pop %v554
        %v556 = vmul.f32 %v553, 1.442695
        %v557 = vpow.pop %v556
        %vm558 = vcmp.gt.f32.partialorder %v384, 0.04045
        %vm559 = vcmp.gt.f32.partialorder %v385, 0.04045
        %v560 = vmul.f32 %v384, 0.07739938
        %v561 = vmul.f32 %v385, 0.07739938
        %v562 = vsel %vm558, %v555, %v560
        %v563 = vsel %vm559, %v557, %v561
        %v564 = vmul.f32 %v518, 0.41238657
        %v565 = vmul.f32 %v519, 0.41238657
        %v566 = vmul.f32 %v540, 0.35759148
        %v567 = vmul.f32 %v541, 0.35759148
        %v568 = vadd.f32 %v564, %v566
        %v569 = vadd.f32 %v565, %v567
        %v570 = vmul.f32 %v562, 0.18045048
        %v571 = vmul.f32 %v563, 0.18045048
        %v572 = vadd.f32 %v568, %v570
        %v573 = vadd.f32 %v569, %v571
        %v574 = vmul.f32 %v518, 0.21263683
        %v575 = vmul.f32 %v519, 0.21263683
        %v576 = vmul.f32 %v540, 0.71518296
        %v577 = vmul.f32 %v541, 0.71518296
        %v578 = vadd.f32 %v574, %v576
        %v579 = vadd.f32 %v575, %v577
        %v580 = vmul.f32 %v562, 0.0721802
        %v581 = vmul.f32 %v563, 0.0721802
        %v582 = vadd.f32 %v578, %v580
        %v583 = vadd.f32 %v579, %v581
        %v584 = vmul.f32 %v518, 0.01933062
        %v585 = vmul.f32 %v519, 0.01933062
        %v586 = vmul.f32 %v540, 0.11919716
        %v587 = vmul.f32 %v541, 0.11919716
        %v588 = vadd.f32 %v584, %v586
        %v589 = vadd.f32 %v585, %v587
        %v590 = vmul.f32 %v562, 0.9503726
        %v591 = vmul.f32 %v563, 0.9503726
        %v592 = vadd.f32 %v588, %v590
        %v593 = vadd.f32 %v589, %v591
        %v594 = vmul.f32 %v572, 1.0521569
        %v595 = vmul.f32 %v573, 1.0521569
        %v596 = vmul.f32 %v592, 0.9183577
        %v597 = vmul.f32 %v593, 0.9183577
        %v598 = vmul.f32 %v582, 116.0
        %v599 = vmul.f32 %v583, 116.0
        %v600 = vsub.f32 %v598, 16.0
        %v601 = vsub.f32 %v599, 16.0
        %v602 = vsub.f32 %v594, %v582
        %v603 = vsub.f32 %v595, %v583
        %v604 = vmul.f32 %v602, 500.0
        %v605 = vmul.f32 %v603, 500.0
        %v606 = vsub.f32 %v582, %v596
        %v607 = vsub.f32 %v583, %v597
        %v608 = vmul.f32 %v606, 200.0
        %v609 = vmul.f32 %v607, 200.0
        %v610 = vld [vmem:[#allocation7] sm:$0xff]
        %v611 = vld [vmem:[#allocation7 + $0x8] sm:$0xff]
        %vm612 = vcmask 130048
        %v614 = vsel %vm612, %v610, 0
        %v617 = vsel %vm612, %v611, 0
        %619 = vmatpush.msra.mxu0 0.0
        %620 = vmatpush.msra.mxu0 0.0
        %621 = vmatpush.msra.mxu0 0.0
        %622 = vmatpush.msra.mxu0 0.0
        %623 = vmatpush.msra.mxu0 0.0
        %624 = vmatpush.msra.mxu0 0.0
        %625 = vmatpush.msra.mxu0 0.0
        %626 = vmatpush.msra.mxu0 0.0
        %627 = vmatpush.msra.mxu0 0.0
        %628 = vmatpush.msra.mxu0 0.0
        %629 = vmatpush.msra.mxu0 0.0
        %630 = vmatpush.msra.mxu0 0.0
        %631 = vmatpush.msra.mxu0 0.0
        %632 = vmatpush.msra.mxu0 0.0
        %633 = vmatpush.msra.mxu0 %v489
        %634 = vmatpush.msra.mxu0 %v488
        %635 = vmatmul.f32.gmra.mxu0 %v614
        %v636 = vpop.f32.mrf.mxu0
        %v637 = vadd.f32 0.0, %v636
        %638 = vmatmul.f32.gmra.mxu0 %v617
        %v639 = vpop.f32.mrf.mxu0
        %v640 = vadd.f32 0.0, %v639
        %641 = vdwg.mxu0
        %v642 = vld [vmem:[#allocation9] sm:$0xff]
        %v643 = vld [vmem:[#allocation9 + $0x8] sm:$0xff]
        %s644 = scalar_lea.vmem [#allocation7], 16
        %v645 = vld [vmem:[%s644] sm:$0xff]
        %v646 = vld [vmem:[%s644 + $0x8] sm:$0xff]
        %v648 = vsel %vm612, %v645, 0
        %v651 = vsel %vm612, %v646, 0
        %653 = vmatpush.msra.mxu0 0.0
        %654 = vmatpush.msra.mxu0 0.0
        %655 = vmatpush.msra.mxu0 0.0
        %656 = vmatpush.msra.mxu0 0.0
        %657 = vmatpush.msra.mxu0 0.0
        %658 = vmatpush.msra.mxu0 0.0
        %659 = vmatpush.msra.mxu0 0.0
        %660 = vmatpush.msra.mxu0 0.0
        %661 = vmatpush.msra.mxu0 0.0
        %662 = vmatpush.msra.mxu0 0.0
        %663 = vmatpush.msra.mxu0 0.0
        %664 = vmatpush.msra.mxu0 0.0
        %665 = vmatpush.msra.mxu0 0.0
        %666 = vmatpush.msra.mxu0 0.0
        %667 = vmatpush.msra.mxu0 %v493
        %668 = vmatpush.msra.mxu0 %v492
        %669 = vmatmul.f32.gmra.mxu0 %v648
        %v670 = vpop.f32.mrf.mxu0
        %v671 = vadd.f32 0.0, %v670
        %672 = vmatmul.f32.gmra.mxu0 %v651
        %v673 = vpop.f32.mrf.mxu0
        %v674 = vadd.f32 0.0, %v673
        %675 = vdwg.mxu0
        %s676 = scalar_lea.vmem [#allocation9], 16
        %v677 = vld [vmem:[%s676] sm:$0xff]
        %v678 = vld [vmem:[%s676 + $0x8] sm:$0xff]
        %v680 = vsel %vm612, %v671, 0
        %v683 = vsel %vm612, %v674, 0
        %685 = vmatpush.msra.mxu0 0.0
        %686 = vmatpush.msra.mxu0 0.0
        %687 = vmatpush.msra.mxu0 0.0
        %688 = vmatpush.msra.mxu0 0.0
        %689 = vmatpush.msra.mxu0 0.0
        %690 = vmatpush.msra.mxu0 0.0
        %691 = vmatpush.msra.mxu0 0.0
        %692 = vmatpush.msra.mxu0 0.0
        %693 = vmatpush.msra.mxu0 0.0
        %694 = vmatpush.msra.mxu0 0.0
        %695 = vmatpush.msra.mxu0 0.0
        %696 = vmatpush.msra.mxu0 0.0
        %697 = vmatpush.msra.mxu0 0.0
        %698 = vmatpush.msra.mxu0 0.0
        %699 = vmatpush.msra.mxu0 %v678
        %700 = vmatpush.msra.mxu0 %v677
        %701 = vmatmul.f32.gmra.mxu0 %v680
        %v702 = vpop.f32.mrf.mxu0
        %v703 = vadd.f32 0.0, %v702
        %704 = vmatmul.f32.gmra.mxu0 %v683
        %v705 = vpop.f32.mrf.mxu0
        %v706 = vadd.f32 0.0, %v705
        %707 = vdwg.mxu0
        %s708 = scalar_lea.vmem [#allocation7], 32
        %v709 = vld [vmem:[%s708] sm:$0xff]
        %v710 = vld [vmem:[%s708 + $0x8] sm:$0xff]
        %v712 = vsel %vm612, %v709, 0
        %v715 = vsel %vm612, %v710, 0
        %717 = vmatpush.msra.mxu0 0.0
        %718 = vmatpush.msra.mxu0 0.0
        %719 = vmatpush.msra.mxu0 0.0
        %720 = vmatpush.msra.mxu0 0.0
        %721 = vmatpush.msra.mxu0 0.0
        %722 = vmatpush.msra.mxu0 0.0
        %723 = vmatpush.msra.mxu0 0.0
        %724 = vmatpush.msra.mxu0 0.0
        %725 = vmatpush.msra.mxu0 0.0
        %726 = vmatpush.msra.mxu0 0.0
        %727 = vmatpush.msra.mxu0 0.0
        %728 = vmatpush.msra.mxu0 0.0
        %729 = vmatpush.msra.mxu0 0.0
        %730 = vmatpush.msra.mxu0 0.0
        %731 = vmatpush.msra.mxu0 %v497
        %732 = vmatpush.msra.mxu0 %v496
        %733 = vmatmul.f32.gmra.mxu0 %v712
        %v734 = vpop.f32.mrf.mxu0
        %v735 = vadd.f32 0.0, %v734
        %736 = vmatmul.f32.gmra.mxu0 %v715
        %v737 = vpop.f32.mrf.mxu0
        %v738 = vadd.f32 0.0, %v737
        %739 = vdwg.mxu0
        %s740 = scalar_lea.vmem [#allocation9], 32
        %v741 = vld [vmem:[%s740] sm:$0xff]
        %v742 = vld [vmem:[%s740 + $0x8] sm:$0xff]
        %s743 = scalar_lea.vmem [#allocation7], 48
        %v744 = vld [vmem:[%s743] sm:$0xff]
        %v745 = vld [vmem:[%s743 + $0x8] sm:$0xff]
        %v747 = vsel %vm612, %v744, 0
        %v750 = vsel %vm612, %v745, 0
        %752 = vmatpush.msra.mxu0 0.0
        %753 = vmatpush.msra.mxu0 0.0
        %754 = vmatpush.msra.mxu0 0.0
        %755 = vmatpush.msra.mxu0 0.0
        %756 = vmatpush.msra.mxu0 0.0
        %757 = vmatpush.msra.mxu0 0.0
        %758 = vmatpush.msra.mxu0 0.0
        %759 = vmatpush.msra.mxu0 0.0
        %760 = vmatpush.msra.mxu0 0.0
        %761 = vmatpush.msra.mxu0 0.0
        %762 = vmatpush.msra.mxu0 0.0
        %763 = vmatpush.msra.mxu0 0.0
        %764 = vmatpush.msra.mxu0 0.0
        %765 = vmatpush.msra.mxu0 0.0
        %766 = vmatpush.msra.mxu0 %v497
        %767 = vmatpush.msra.mxu0 %v496
        %768 = vmatmul.f32.gmra.mxu0 %v747
        %v769 = vpop.f32.mrf.mxu0
        %v770 = vadd.f32 0.0, %v769
        %771 = vmatmul.f32.gmra.mxu0 %v750
        %v772 = vpop.f32.mrf.mxu0
        %v773 = vadd.f32 0.0, %v772
        %774 = vdwg.mxu0
        %s775 = scalar_lea.vmem [#allocation9], 48
        %v776 = vld [vmem:[%s775] sm:$0xff]
        %v777 = vld [vmem:[%s775 + $0x8] sm:$0xff]
        %v779 = vsel %vm612, %v770, 0
        %v782 = vsel %vm612, %v773, 0
        %784 = vmatpush.msra.mxu0 0.0
        %785 = vmatpush.msra.mxu0 0.0
        %786 = vmatpush.msra.mxu0 0.0
        %787 = vmatpush.msra.mxu0 0.0
        %788 = vmatpush.msra.mxu0 0.0
        %789 = vmatpush.msra.mxu0 0.0
        %790 = vmatpush.msra.mxu0 0.0
        %791 = vmatpush.msra.mxu0 0.0
        %792 = vmatpush.msra.mxu0 0.0
        %793 = vmatpush.msra.mxu0 0.0
        %794 = vmatpush.msra.mxu0 0.0
        %795 = vmatpush.msra.mxu0 0.0
        %796 = vmatpush.msra.mxu0 0.0
        %797 = vmatpush.msra.mxu0 0.0
        %798 = vmatpush.msra.mxu0 %v777
        %799 = vmatpush.msra.mxu0 %v776
        %800 = vmatmul.f32.gmra.mxu0 %v779
        %v801 = vpop.f32.mrf.mxu0
        %v802 = vadd.f32 0.0, %v801
        %803 = vmatmul.f32.gmra.mxu0 %v782
        %v804 = vpop.f32.mrf.mxu0
        %v805 = vadd.f32 0.0, %v804
        %806 = vdwg.mxu0
        %v808 = vsel %vm612, %v735, 0
        %v811 = vsel %vm612, %v738, 0
        %813 = vmatpush.msra.mxu0 0.0
        %814 = vmatpush.msra.mxu0 0.0
        %815 = vmatpush.msra.mxu0 0.0
        %816 = vmatpush.msra.mxu0 0.0
        %817 = vmatpush.msra.mxu0 0.0
        %818 = vmatpush.msra.mxu0 0.0
        %819 = vmatpush.msra.mxu0 0.0
        %820 = vmatpush.msra.mxu0 0.0
        %821 = vmatpush.msra.mxu0 0.0
        %822 = vmatpush.msra.mxu0 0.0
        %823 = vmatpush.msra.mxu0 0.0
        %824 = vmatpush.msra.mxu0 0.0
        %825 = vmatpush.msra.mxu0 0.0
        %826 = vmatpush.msra.mxu0 0.0
        %827 = vmatpush.msra.mxu0 %v742
        %828 = vmatpush.msra.mxu0 %v741
        %829 = vmatmul.f32.gmra.mxu0 %v808
        %v830 = vpop.f32.mrf.mxu0
        %v831 = vadd.f32 %v802, %v830
        %832 = vmatmul.f32.gmra.mxu0 %v811
        %v833 = vpop.f32.mrf.mxu0
        %v834 = vadd.f32 %v805, %v833
        %835 = vdwg.mxu0
        %v837 = vsel %vm612, %v637, 0
        %v840 = vsel %vm612, %v640, 0
        %842 = vmatpush.msra.mxu0 0.0
        %843 = vmatpush.msra.mxu0 0.0
        %844 = vmatpush.msra.mxu0 0.0
        %845 = vmatpush.msra.mxu0 0.0
        %846 = vmatpush.msra.mxu0 0.0
        %847 = vmatpush.msra.mxu0 0.0
        %848 = vmatpush.msra.mxu0 0.0
        %849 = vmatpush.msra.mxu0 0.0
        %850 = vmatpush.msra.mxu0 0.0
        %851 = vmatpush.msra.mxu0 0.0
        %852 = vmatpush.msra.mxu0 0.0
        %853 = vmatpush.msra.mxu0 0.0
        %854 = vmatpush.msra.mxu0 0.0
        %855 = vmatpush.msra.mxu0 0.0
        %856 = vmatpush.msra.mxu0 %v643
        %857 = vmatpush.msra.mxu0 %v642
        %858 = vmatmul.f32.gmra.mxu0 %v837
        %v859 = vpop.f32.mrf.mxu0
        %v860 = vadd.f32 16.0, %v859
        %861 = vmatmul.f32.gmra.mxu0 %v840
        %v862 = vpop.f32.mrf.mxu0
        %v863 = vadd.f32 16.0, %v862
        %864 = vdwg.mxu0
        %v865 = vmul.f32 %v860, 0.00862069
        %v866 = vmul.f32 %v863, 0.00862069
        %v867 = vmul.f32 %v703, 0.002
        %v868 = vmul.f32 %v706, 0.002
        %v869 = vadd.f32 %v865, %v867
        %v870 = vadd.f32 %v866, %v868
        %v871 = vmul.f32 %v869, 0.95042855
        %v872 = vmul.f32 %v870, 0.95042855
        %v873 = vmul.f32 %v831, 0.005
        %v874 = vmul.f32 %v834, 0.005
        %v875 = vsub.f32 %v865, %v873
        %v876 = vsub.f32 %v866, %v874
        %v877 = vmul.f32 %v875, 1.0889003
        %v878 = vmul.f32 %v876, 1.0889003
        %v879 = vmul.f32 %v871, 3.2410033
        %v880 = vmul.f32 %v872, 3.2410033
        %v881 = vmul.f32 %v865, -1.5373989
        %v882 = vmul.f32 %v866, -1.5373989
        %v883 = vadd.f32 %v879, %v881
        %v884 = vadd.f32 %v880, %v882
        %v885 = vmul.f32 %v877, -0.49861586
        %v886 = vmul.f32 %v878, -0.49861586
        %v887 = vadd.f32 %v883, %v885
        %v888 = vadd.f32 %v884, %v886
        %v889 = vmul.f32 %v871, -0.96922433
        %v890 = vmul.f32 %v872, -0.96922433
        %v891 = vmul.f32 %v865, 1.8759301
        %v892 = vmul.f32 %v866, 1.8759301
        %v893 = vadd.f32 %v889, %v891
        %v894 = vadd.f32 %v890, %v892
        %v895 = vmul.f32 %v877, 0.041554224
        %v896 = vmul.f32 %v878, 0.041554224
        %v897 = vadd.f32 %v893, %v895
        %v898 = vadd.f32 %v894, %v896
        %v899 = vmul.f32 %v871, 0.055639423
        %v900 = vmul.f32 %v872, 0.055639423
        %v901 = vmul.f32 %v865, -0.2040112
        %v902 = vmul.f32 %v866, -0.2040112
        %v903 = vadd.f32 %v899, %v901
        %v904 = vadd.f32 %v900, %v902
        %v905 = vmul.f32 %v877, 1.0571489
        %v906 = vmul.f32 %v878, 1.0571489
        %v907 = vadd.f32 %v903, %v905
        %v908 = vadd.f32 %v904, %v906
        %v909 = vmax.f32 %v887, 0.0
        %v910 = vmax.f32 %v888, 0.0
        %v911 = vmin.f32 %v909, 1.0
        %v912 = vmin.f32 %v910, 1.0
        %v913 = vmax.f32 %v897, 0.0
        %v914 = vmax.f32 %v898, 0.0
        %v915 = vmin.f32 %v913, 1.0
        %v916 = vmin.f32 %v914, 1.0
        %v917 = vmax.f32 %v907, 0.0
        %v918 = vmax.f32 %v908, 0.0
        %v919 = vmin.f32 %v917, 1.0
        %v920 = vmin.f32 %v918, 1.0
        %v921 = vmul.f32 %v911, 0.41238657
        %v922 = vmul.f32 %v912, 0.41238657
        %v923 = vmul.f32 %v915, 0.35759148
        %v924 = vmul.f32 %v916, 0.35759148
        %v925 = vadd.f32 %v921, %v923
        %v926 = vadd.f32 %v922, %v924
        %v927 = vmul.f32 %v919, 0.18045048
        %v928 = vmul.f32 %v920, 0.18045048
        %v929 = vadd.f32 %v925, %v927
        %v930 = vadd.f32 %v926, %v928
        %v931 = vmul.f32 %v911, 0.21263683
        %v932 = vmul.f32 %v912, 0.21263683
        %v933 = vmul.f32 %v915, 0.71518296
        %v934 = vmul.f32 %v916, 0.71518296
        %v935 = vadd.f32 %v931, %v933
        %v936 = vadd.f32 %v932, %v934
        %v937 = vmul.f32 %v919, 0.0721802
        %v938 = vmul.f32 %v920, 0.0721802
        %v939 = vadd.f32 %v935, %v937
        %v940 = vadd.f32 %v936, %v938
        %v941 = vmul.f32 %v911, 0.01933062
        %v942 = vmul.f32 %v912, 0.01933062
        %v943 = vmul.f32 %v915, 0.11919716
        %v944 = vmul.f32 %v916, 0.11919716
        %v945 = vadd.f32 %v941, %v943
        %v946 = vadd.f32 %v942, %v944
        %v947 = vmul.f32 %v919, 0.9503726
        %v948 = vmul.f32 %v920, 0.9503726
        %v949 = vadd.f32 %v945, %v947
        %v950 = vadd.f32 %v946, %v948
        %v951 = vmul.f32 %v929, 1.0521569
        %v952 = vmul.f32 %v930, 1.0521569
        %v953 = vmax.f32 %v951, 0.008856452
        %v954 = vmax.f32 %v952, 0.008856452
        %v955 = vlog2.pop %v953
        %v956 = vmul.f32 %v955, 0.6931472
        %v957 = vlog2.pop %v954
        %v958 = vmul.f32 %v957, 0.6931472
        %v959 = vmul.f32 %v956, 0.33333334
        %v960 = vmul.f32 %v958, 0.33333334
        %v961 = vmul.f32 %v959, 1.442695
        %v962 = vpow.pop %v961
        %v963 = vmul.f32 %v960, 1.442695
        %v964 = vpow.pop %v963
        %vm965 = vcmp.gt.f32.partialorder %v951, 0.008856452
        %vm966 = vcmp.gt.f32.partialorder %v952, 0.008856452
        %v967 = vmul.f32 %v951, 7.787037
        %v968 = vmul.f32 %v952, 7.787037
        %v969 = vadd.f32 %v967, 0.13793103
        %v970 = vadd.f32 %v968, 0.13793103
        %v971 = vsel %vm965, %v962, %v969
        %v972 = vsel %vm966, %v964, %v970
        %v973 = vmax.f32 %v939, 0.008856452
        %v974 = vmax.f32 %v940, 0.008856452
        %v975 = vlog2.pop %v973
        %v976 = vmul.f32 %v975, 0.6931472
        %v977 = vlog2.pop %v974
        %v978 = vmul.f32 %v977, 0.6931472
        %v979 = vmul.f32 %v976, 0.33333334
        %v980 = vmul.f32 %v978, 0.33333334
        %v981 = vmul.f32 %v979, 1.442695
        %v982 = vpow.pop %v981
        %v983 = vmul.f32 %v980, 1.442695
        %v984 = vpow.pop %v983
        %vm985 = vcmp.gt.f32.partialorder %v939, 0.008856452
        %vm986 = vcmp.gt.f32.partialorder %v940, 0.008856452
        %v987 = vmul.f32 %v939, 7.787037
        %v988 = vmul.f32 %v940, 7.787037
        %v989 = vadd.f32 %v987, 0.13793103
        %v990 = vadd.f32 %v988, 0.13793103
        %v991 = vsel %vm985, %v982, %v989
        %v992 = vsel %vm986, %v984, %v990
        %v993 = vmul.f32 %v949, 0.9183577
        %v994 = vmul.f32 %v950, 0.9183577
        %v995 = vmax.f32 %v993, 0.008856452
        %v996 = vmax.f32 %v994, 0.008856452
        %v997 = vlog2.pop %v995
        %v998 = vmul.f32 %v997, 0.6931472
        %v999 = vlog2.pop %v996
        %v1000 = vmul.f32 %v999, 0.6931472
        %v1001 = vmul.f32 %v998, 0.33333334
        %v1002 = vmul.f32 %v1000, 0.33333334
        %v1003 = vmul.f32 %v1001, 1.442695
        %v1004 = vpow.pop %v1003
        %v1005 = vmul.f32 %v1002, 1.442695
        %v1006 = vpow.pop %v1005
        %vm1007 = vcmp.gt.f32.partialorder %v993, 0.008856452
        %vm1008 = vcmp.gt.f32.partialorder %v994, 0.008856452
        %v1009 = vmul.f32 %v993, 7.787037
        %v1010 = vmul.f32 %v994, 7.787037
        %v1011 = vadd.f32 %v1009, 0.13793103
        %v1012 = vadd.f32 %v1010, 0.13793103
        %v1013 = vsel %vm1007, %v1004, %v1011
        %v1014 = vsel %vm1008, %v1006, %v1012
        %v1015 = vmul.f32 %v991, 116.0
        %v1016 = vmul.f32 %v992, 116.0
        %v1017 = vsub.f32 %v1015, 16.0
        %v1018 = vsub.f32 %v1016, 16.0
        %v1019 = vsub.f32 %v971, %v991
        %v1020 = vsub.f32 %v972, %v992
        %v1021 = vmul.f32 %v1019, 500.0
        %v1022 = vmul.f32 %v1020, 500.0
        %v1023 = vsub.f32 %v991, %v1013
        %v1024 = vsub.f32 %v992, %v1014
        %v1025 = vmul.f32 %v1023, 200.0
        %v1026 = vmul.f32 %v1024, 200.0
        %v1027 = vmul.f32 %v1017, 0.01
        %v1028 = vmul.f32 %v1018, 0.01
        %v1029 = vmul.f32 %v1027, %v1021
        %v1030 = vmul.f32 %v1028, %v1022
        %v1031 = vmul.f32 %v1027, %v1025
        %v1032 = vmul.f32 %v1028, %v1026
        %1033 = vmatpush.msra.mxu0 0.0
        %1034 = vmatpush.msra.mxu0 0.0
        %1035 = vmatpush.msra.mxu0 0.0
        %1036 = vmatpush.msra.mxu0 0.0
        %1037 = vmatpush.msra.mxu0 0.0
        %1038 = vmatpush.msra.mxu0 0.0
        %1039 = vmatpush.msra.mxu0 0.0
        %1040 = vmatpush.msra.mxu0 0.0
        %1041 = vmatpush.msra.mxu0 0.0
        %1042 = vmatpush.msra.mxu0 0.0
        %1043 = vmatpush.msra.mxu0 0.0
        %1044 = vmatpush.msra.mxu0 0.0
        %1045 = vmatpush.msra.mxu0 0.0
        %1046 = vmatpush.msra.mxu0 0.0
        %1047 = vmatpush.msra.mxu0 %v601
        %1048 = vmatpush.msra.mxu0 %v600
        %1049 = vmatmul.f32.gmra.mxu0 %v614
        %v1050 = vpop.f32.mrf.mxu0
        %v1051 = vadd.f32 0.0, %v1050
        %1052 = vmatmul.f32.gmra.mxu0 %v617
        %v1053 = vpop.f32.mrf.mxu0
        %v1054 = vadd.f32 0.0, %v1053
        %1055 = vdwg.mxu0
        %1056 = vmatpush.msra.mxu0 0.0
        %1057 = vmatpush.msra.mxu0 0.0
        %1058 = vmatpush.msra.mxu0 0.0
        %1059 = vmatpush.msra.mxu0 0.0
        %1060 = vmatpush.msra.mxu0 0.0
        %1061 = vmatpush.msra.mxu0 0.0
        %1062 = vmatpush.msra.mxu0 0.0
        %1063 = vmatpush.msra.mxu0 0.0
        %1064 = vmatpush.msra.mxu0 0.0
        %1065 = vmatpush.msra.mxu0 0.0
        %1066 = vmatpush.msra.mxu0 0.0
        %1067 = vmatpush.msra.mxu0 0.0
        %1068 = vmatpush.msra.mxu0 0.0
        %1069 = vmatpush.msra.mxu0 0.0
        %1070 = vmatpush.msra.mxu0 %v605
        %1071 = vmatpush.msra.mxu0 %v604
        %1072 = vmatmul.f32.gmra.mxu0 %v648
        %v1073 = vpop.f32.mrf.mxu0
        %v1074 = vadd.f32 0.0, %v1073
        %1075 = vmatmul.f32.gmra.mxu0 %v651
        %v1076 = vpop.f32.mrf.mxu0
        %v1077 = vadd.f32 0.0, %v1076
        %1078 = vdwg.mxu0
        %v1080 = vsel %vm612, %v1074, 0
        %v1083 = vsel %vm612, %v1077, 0
        %1085 = vmatpush.msra.mxu0 0.0
        %1086 = vmatpush.msra.mxu0 0.0
        %1087 = vmatpush.msra.mxu0 0.0
        %1088 = vmatpush.msra.mxu0 0.0
        %1089 = vmatpush.msra.mxu0 0.0
        %1090 = vmatpush.msra.mxu0 0.0
        %1091 = vmatpush.msra.mxu0 0.0
        %1092 = vmatpush.msra.mxu0 0.0
        %1093 = vmatpush.msra.mxu0 0.0
        %1094 = vmatpush.msra.mxu0 0.0
        %1095 = vmatpush.msra.mxu0 0.0
        %1096 = vmatpush.msra.mxu0 0.0
        %1097 = vmatpush.msra.mxu0 0.0
        %1098 = vmatpush.msra.mxu0 0.0
        %1099 = vmatpush.msra.mxu0 %v678
        %1100 = vmatpush.msra.mxu0 %v677
        %1101 = vmatmul.f32.gmra.mxu0 %v1080
        %v1102 = vpop.f32.mrf.mxu0
        %v1103 = vadd.f32 0.0, %v1102
        %1104 = vmatmul.f32.gmra.mxu0 %v1083
        %v1105 = vpop.f32.mrf.mxu0
        %v1106 = vadd.f32 0.0, %v1105
        %1107 = vdwg.mxu0
        %1108 = vmatpush.msra.mxu0 0.0
        %1109 = vmatpush.msra.mxu0 0.0
        %1110 = vmatpush.msra.mxu0 0.0
        %1111 = vmatpush.msra.mxu0 0.0
        %1112 = vmatpush.msra.mxu0 0.0
        %1113 = vmatpush.msra.mxu0 0.0
        %1114 = vmatpush.msra.mxu0 0.0
        %1115 = vmatpush.msra.mxu0 0.0
        %1116 = vmatpush.msra.mxu0 0.0
        %1117 = vmatpush.msra.mxu0 0.0
        %1118 = vmatpush.msra.mxu0 0.0
        %1119 = vmatpush.msra.mxu0 0.0
        %1120 = vmatpush.msra.mxu0 0.0
        %1121 = vmatpush.msra.mxu0 0.0
        %1122 = vmatpush.msra.mxu0 %v609
        %1123 = vmatpush.msra.mxu0 %v608
        %1124 = vmatmul.f32.gmra.mxu0 %v712
        %v1125 = vpop.f32.mrf.mxu0
        %v1126 = vadd.f32 0.0, %v1125
        %1127 = vmatmul.f32.gmra.mxu0 %v715
        %v1128 = vpop.f32.mrf.mxu0
        %v1129 = vadd.f32 0.0, %v1128
        %1130 = vdwg.mxu0
        %1131 = vmatpush.msra.mxu0 0.0
        %1132 = vmatpush.msra.mxu0 0.0
        %1133 = vmatpush.msra.mxu0 0.0
        %1134 = vmatpush.msra.mxu0 0.0
        %1135 = vmatpush.msra.mxu0 0.0
        %1136 = vmatpush.msra.mxu0 0.0
        %1137 = vmatpush.msra.mxu0 0.0
        %1138 = vmatpush.msra.mxu0 0.0
        %1139 = vmatpush.msra.mxu0 0.0
        %1140 = vmatpush.msra.mxu0 0.0
        %1141 = vmatpush.msra.mxu0 0.0
        %1142 = vmatpush.msra.mxu0 0.0
        %1143 = vmatpush.msra.mxu0 0.0
        %1144 = vmatpush.msra.mxu0 0.0
        %1145 = vmatpush.msra.mxu0 %v609
        %1146 = vmatpush.msra.mxu0 %v608
        %1147 = vmatmul.f32.gmra.mxu0 %v747
        %v1148 = vpop.f32.mrf.mxu0
        %v1149 = vadd.f32 0.0, %v1148
        %1150 = vmatmul.f32.gmra.mxu0 %v750
        %v1151 = vpop.f32.mrf.mxu0
        %v1152 = vadd.f32 0.0, %v1151
        %1153 = vdwg.mxu0
        %v1155 = vsel %vm612, %v1149, 0
        %v1158 = vsel %vm612, %v1152, 0
        %1160 = vmatpush.msra.mxu0 0.0
        %1161 = vmatpush.msra.mxu0 0.0
        %1162 = vmatpush.msra.mxu0 0.0
        %1163 = vmatpush.msra.mxu0 0.0
        %1164 = vmatpush.msra.mxu0 0.0
        %1165 = vmatpush.msra.mxu0 0.0
        %1166 = vmatpush.msra.mxu0 0.0
        %1167 = vmatpush.msra.mxu0 0.0
        %1168 = vmatpush.msra.mxu0 0.0
        %1169 = vmatpush.msra.mxu0 0.0
        %1170 = vmatpush.msra.mxu0 0.0
        %1171 = vmatpush.msra.mxu0 0.0
        %1172 = vmatpush.msra.mxu0 0.0
        %1173 = vmatpush.msra.mxu0 0.0
        %1174 = vmatpush.msra.mxu0 %v777
        %1175 = vmatpush.msra.mxu0 %v776
        %1176 = vmatmul.f32.gmra.mxu0 %v1155
        %v1177 = vpop.f32.mrf.mxu0
        %v1178 = vadd.f32 0.0, %v1177
        %1179 = vmatmul.f32.gmra.mxu0 %v1158
        %v1180 = vpop.f32.mrf.mxu0
        %v1181 = vadd.f32 0.0, %v1180
        %1182 = vdwg.mxu0
        %v1184 = vsel %vm612, %v1126, 0
        %v1187 = vsel %vm612, %v1129, 0
        %1189 = vmatpush.msra.mxu0 0.0
        %1190 = vmatpush.msra.mxu0 0.0
        %1191 = vmatpush.msra.mxu0 0.0
        %1192 = vmatpush.msra.mxu0 0.0
        %1193 = vmatpush.msra.mxu0 0.0
        %1194 = vmatpush.msra.mxu0 0.0
        %1195 = vmatpush.msra.mxu0 0.0
        %1196 = vmatpush.msra.mxu0 0.0
        %1197 = vmatpush.msra.mxu0 0.0
        %1198 = vmatpush.msra.mxu0 0.0
        %1199 = vmatpush.msra.mxu0 0.0
        %1200 = vmatpush.msra.mxu0 0.0
        %1201 = vmatpush.msra.mxu0 0.0
        %1202 = vmatpush.msra.mxu0 0.0
        %1203 = vmatpush.msra.mxu0 %v742
        %1204 = vmatpush.msra.mxu0 %v741
        %1205 = vmatmul.f32.gmra.mxu0 %v1184
        %v1206 = vpop.f32.mrf.mxu0
        %v1207 = vadd.f32 %v1178, %v1206
        %1208 = vmatmul.f32.gmra.mxu0 %v1187
        %v1209 = vpop.f32.mrf.mxu0
        %v1210 = vadd.f32 %v1181, %v1209
        %1211 = vdwg.mxu0
        %v1213 = vsel %vm612, %v1051, 0
        %v1216 = vsel %vm612, %v1054, 0
        %1218 = vmatpush.msra.mxu0 0.0
        %1219 = vmatpush.msra.mxu0 0.0
        %1220 = vmatpush.msra.mxu0 0.0
        %1221 = vmatpush.msra.mxu0 0.0
        %1222 = vmatpush.msra.mxu0 0.0
        %1223 = vmatpush.msra.mxu0 0.0
        %1224 = vmatpush.msra.mxu0 0.0
        %1225 = vmatpush.msra.mxu0 0.0
        %1226 = vmatpush.msra.mxu0 0.0
        %1227 = vmatpush.msra.mxu0 0.0
        %1228 = vmatpush.msra.mxu0 0.0
        %1229 = vmatpush.msra.mxu0 0.0
        %1230 = vmatpush.msra.mxu0 0.0
        %1231 = vmatpush.msra.mxu0 0.0
        %1232 = vmatpush.msra.mxu0 %v643
        %1233 = vmatpush.msra.mxu0 %v642
        %1234 = vmatmul.f32.gmra.mxu0 %v1213
        %v1235 = vpop.f32.mrf.mxu0
        %v1236 = vadd.f32 16.0, %v1235
        %1237 = vmatmul.f32.gmra.mxu0 %v1216
        %v1238 = vpop.f32.mrf.mxu0
        %v1239 = vadd.f32 16.0, %v1238
        %1240 = vdwg.mxu0
        %v1241 = vmul.f32 %v1236, 0.00862069
        %v1242 = vmul.f32 %v1239, 0.00862069
        %v1243 = vmul.f32 %v1103, 0.002
        %v1244 = vmul.f32 %v1106, 0.002
        %v1245 = vadd.f32 %v1241, %v1243
        %v1246 = vadd.f32 %v1242, %v1244
        %v1247 = vmul.f32 %v1245, 0.95042855
        %v1248 = vmul.f32 %v1246, 0.95042855
        %v1249 = vmul.f32 %v1207, 0.005
        %v1250 = vmul.f32 %v1210, 0.005
        %v1251 = vsub.f32 %v1241, %v1249
        %v1252 = vsub.f32 %v1242, %v1250
        %v1253 = vmul.f32 %v1251, 1.0889003
        %v1254 = vmul.f32 %v1252, 1.0889003
        %v1255 = vmul.f32 %v1247, 3.2410033
        %v1256 = vmul.f32 %v1248, 3.2410033
        %v1257 = vmul.f32 %v1241, -1.5373989
        %v1258 = vmul.f32 %v1242, -1.5373989
        %v1259 = vadd.f32 %v1255, %v1257
        %v1260 = vadd.f32 %v1256, %v1258
        %v1261 = vmul.f32 %v1253, -0.49861586
        %v1262 = vmul.f32 %v1254, -0.49861586
        %v1263 = vadd.f32 %v1259, %v1261
        %v1264 = vadd.f32 %v1260, %v1262
        %v1265 = vmul.f32 %v1247, -0.96922433
        %v1266 = vmul.f32 %v1248, -0.96922433
        %v1267 = vmul.f32 %v1241, 1.8759301
        %v1268 = vmul.f32 %v1242, 1.8759301
        %v1269 = vadd.f32 %v1265, %v1267
        %v1270 = vadd.f32 %v1266, %v1268
        %v1271 = vmul.f32 %v1253, 0.041554224
        %v1272 = vmul.f32 %v1254, 0.041554224
        %v1273 = vadd.f32 %v1269, %v1271
        %v1274 = vadd.f32 %v1270, %v1272
        %v1275 = vmul.f32 %v1247, 0.055639423
        %v1276 = vmul.f32 %v1248, 0.055639423
        %v1277 = vmul.f32 %v1241, -0.2040112
        %v1278 = vmul.f32 %v1242, -0.2040112
        %v1279 = vadd.f32 %v1275, %v1277
        %v1280 = vadd.f32 %v1276, %v1278
        %v1281 = vmul.f32 %v1253, 1.0571489
        %v1282 = vmul.f32 %v1254, 1.0571489
        %v1283 = vadd.f32 %v1279, %v1281
        %v1284 = vadd.f32 %v1280, %v1282
        %v1285 = vmax.f32 %v1263, 0.0
        %v1286 = vmax.f32 %v1264, 0.0
        %v1287 = vmin.f32 %v1285, 1.0
        %v1288 = vmin.f32 %v1286, 1.0
        %v1289 = vmax.f32 %v1273, 0.0
        %v1290 = vmax.f32 %v1274, 0.0
        %v1291 = vmin.f32 %v1289, 1.0
        %v1292 = vmin.f32 %v1290, 1.0
        %v1293 = vmax.f32 %v1283, 0.0
        %v1294 = vmax.f32 %v1284, 0.0
        %v1295 = vmin.f32 %v1293, 1.0
        %v1296 = vmin.f32 %v1294, 1.0
        %v1297 = vmul.f32 %v1287, 0.41238657
        %v1298 = vmul.f32 %v1288, 0.41238657
        %v1299 = vmul.f32 %v1291, 0.35759148
        %v1300 = vmul.f32 %v1292, 0.35759148
        %v1301 = vadd.f32 %v1297, %v1299
        %v1302 = vadd.f32 %v1298, %v1300
        %v1303 = vmul.f32 %v1295, 0.18045048
        %v1304 = vmul.f32 %v1296, 0.18045048
        %v1305 = vadd.f32 %v1301, %v1303
        %v1306 = vadd.f32 %v1302, %v1304
        %v1307 = vmul.f32 %v1287, 0.21263683
        %v1308 = vmul.f32 %v1288, 0.21263683
        %v1309 = vmul.f32 %v1291, 0.71518296
        %v1310 = vmul.f32 %v1292, 0.71518296
        %v1311 = vadd.f32 %v1307, %v1309
        %v1312 = vadd.f32 %v1308, %v1310
        %v1313 = vmul.f32 %v1295, 0.0721802
        %v1314 = vmul.f32 %v1296, 0.0721802
        %v1315 = vadd.f32 %v1311, %v1313
        %v1316 = vadd.f32 %v1312, %v1314
        %v1317 = vmul.f32 %v1287, 0.01933062
        %v1318 = vmul.f32 %v1288, 0.01933062
        %v1319 = vmul.f32 %v1291, 0.11919716
        %v1320 = vmul.f32 %v1292, 0.11919716
        %v1321 = vadd.f32 %v1317, %v1319
        %v1322 = vadd.f32 %v1318, %v1320
        %v1323 = vmul.f32 %v1295, 0.9503726
        %v1324 = vmul.f32 %v1296, 0.9503726
        %v1325 = vadd.f32 %v1321, %v1323
        %v1326 = vadd.f32 %v1322, %v1324
        %v1327 = vmul.f32 %v1305, 1.0521569
        %v1328 = vmul.f32 %v1306, 1.0521569
        %v1329 = vmax.f32 %v1327, 0.008856452
        %v1330 = vmax.f32 %v1328, 0.008856452
        %v1331 = vlog2.pop %v1329
        %v1332 = vmul.f32 %v1331, 0.6931472
        %v1333 = vlog2.pop %v1330
        %v1334 = vmul.f32 %v1333, 0.6931472
        %v1335 = vmul.f32 %v1332, 0.33333334
        %v1336 = vmul.f32 %v1334, 0.33333334
        %v1337 = vmul.f32 %v1335, 1.442695
        %v1338 = vpow.pop %v1337
        %v1339 = vmul.f32 %v1336, 1.442695
        %v1340 = vpow.pop %v1339
        %vm1341 = vcmp.gt.f32.partialorder %v1327, 0.008856452
        %vm1342 = vcmp.gt.f32.partialorder %v1328, 0.008856452
        %v1343 = vmul.f32 %v1327, 7.787037
        %v1344 = vmul.f32 %v1328, 7.787037
        %v1345 = vadd.f32 %v1343, 0.13793103
        %v1346 = vadd.f32 %v1344, 0.13793103
        %v1347 = vsel %vm1341, %v1338, %v1345
        %v1348 = vsel %vm1342, %v1340, %v1346
        %v1349 = vmax.f32 %v1315, 0.008856452
        %v1350 = vmax.f32 %v1316, 0.008856452
        %v1351 = vlog2.pop %v1349
        %v1352 = vmul.f32 %v1351, 0.6931472
        %v1353 = vlog2.pop %v1350
        %v1354 = vmul.f32 %v1353, 0.6931472
        %v1355 = vmul.f32 %v1352, 0.33333334
        %v1356 = vmul.f32 %v1354, 0.33333334
        %v1357 = vmul.f32 %v1355, 1.442695
        %v1358 = vpow.pop %v1357
        %v1359 = vmul.f32 %v1356, 1.442695
        %v1360 = vpow.pop %v1359
        %vm1361 = vcmp.gt.f32.partialorder %v1315, 0.008856452
        %vm1362 = vcmp.gt.f32.partialorder %v1316, 0.008856452
        %v1363 = vmul.f32 %v1315, 7.787037
        %v1364 = vmul.f32 %v1316, 7.787037
        %v1365 = vadd.f32 %v1363, 0.13793103
        %v1366 = vadd.f32 %v1364, 0.13793103
        %v1367 = vsel %vm1361, %v1358, %v1365
        %v1368 = vsel %vm1362, %v1360, %v1366
        %v1369 = vmul.f32 %v1325, 0.9183577
        %v1370 = vmul.f32 %v1326, 0.9183577
        %v1371 = vmax.f32 %v1369, 0.008856452
        %v1372 = vmax.f32 %v1370, 0.008856452
        %v1373 = vlog2.pop %v1371
        %v1374 = vmul.f32 %v1373, 0.6931472
        %v1375 = vlog2.pop %v1372
        %v1376 = vmul.f32 %v1375, 0.6931472
        %v1377 = vmul.f32 %v1374, 0.33333334
        %v1378 = vmul.f32 %v1376, 0.33333334
        %v1379 = vmul.f32 %v1377, 1.442695
        %v1380 = vpow.pop %v1379
        %v1381 = vmul.f32 %v1378, 1.442695
        %v1382 = vpow.pop %v1381
        %vm1383 = vcmp.gt.f32.partialorder %v1369, 0.008856452
        %vm1384 = vcmp.gt.f32.partialorder %v1370, 0.008856452
        %v1385 = vmul.f32 %v1369, 7.787037
        %v1386 = vmul.f32 %v1370, 7.787037
        %v1387 = vadd.f32 %v1385, 0.13793103
        %v1388 = vadd.f32 %v1386, 0.13793103
        %v1389 = vsel %vm1383, %v1380, %v1387
        %v1390 = vsel %vm1384, %v1382, %v1388
        %v1391 = vmul.f32 %v1367, 116.0
        %v1392 = vmul.f32 %v1368, 116.0
        %v1393 = vsub.f32 %v1391, 16.0
        %v1394 = vsub.f32 %v1392, 16.0
        %v1395 = vsub.f32 %v1347, %v1367
        %v1396 = vsub.f32 %v1348, %v1368
        %v1397 = vmul.f32 %v1395, 500.0
        %v1398 = vmul.f32 %v1396, 500.0
        %v1399 = vsub.f32 %v1367, %v1389
        %v1400 = vsub.f32 %v1368, %v1390
        %v1401 = vmul.f32 %v1399, 200.0
        %v1402 = vmul.f32 %v1400, 200.0
        %v1403 = vmul.f32 %v1393, 0.01
        %v1404 = vmul.f32 %v1394, 0.01
        %v1405 = vmul.f32 %v1403, %v1397
        %v1406 = vmul.f32 %v1404, %v1398
        %v1407 = vmul.f32 %v1403, %v1401
        %v1408 = vmul.f32 %v1404, %v1402
        %v1409 = vsub.f32 %v1405, %v1029
        %v1410 = vsub.f32 %v1406, %v1030
        %v1411 = vsub.f32 %v1407, %v1031
        %v1412 = vsub.f32 %v1408, %v1032
        %v1413 = vsub.f32 %v1393, %v1017
        %v1414 = vsub.f32 %v1394, %v1018
        %v1415 = vand.u32 2147483647, %v1413
        %v1416 = vand.u32 2147483647, %v1414
        %v1417 = vmul.f32 %v1409, %v1409
        %v1418 = vmul.f32 %v1410, %v1410
        %v1419 = vmul.f32 %v1411, %v1411
        %v1420 = vmul.f32 %v1412, %v1412
        %v1421 = vadd.f32 %v1417, %v1419
        %v1422 = vadd.f32 %v1418, %v1420
        %v1423 = vrsqrt.pop %v1421
        %v1424 = vmul.f32 %v1423, %v1421
        %v1425 = vmul.f32 %v1424, %v1423
        %v1426 = vmul.f32 0.5, %v1425
        %v1427 = vsub.f32 1.5, %v1426
        %v1428 = vmul.f32 %v1423, %v1427
        %v1429 = vmul.f32 %v1421, %v1428
        %vm1430 = vcmp.eq.f32.partialorder %v1421, inf
        %v1431 = vsel %vm1430, %v1421, %v1429
        %vm1432 = vcmp.eq.f32.partialorder %v1421, 0.0
        %v1433 = vand.u32 %v1421, 2147483648
        %v1434 = vsel %vm1432, %v1433, %v1431
        %v1435 = vrsqrt.pop %v1422
        %v1436 = vmul.f32 %v1435, %v1422
        %v1437 = vmul.f32 %v1436, %v1435
        %v1438 = vmul.f32 0.5, %v1437
        %v1439 = vsub.f32 1.5, %v1438
        %v1440 = vmul.f32 %v1435, %v1439
        %v1441 = vmul.f32 %v1422, %v1440
        %vm1442 = vcmp.eq.f32.partialorder %v1422, inf
        %v1443 = vsel %vm1442, %v1422, %v1441
        %vm1444 = vcmp.eq.f32.partialorder %v1422, 0.0
        %v1445 = vand.u32 %v1422, 2147483648
        %v1446 = vsel %vm1444, %v1445, %v1443
        %v1447 = vadd.f32 %v1415, %v1434
        %v1448 = vadd.f32 %v1416, %v1446
        %vm1449 = vcmp.gt.f32.partialorder %v1447, 0.0
        %vm1450 = vcmp.gt.f32.partialorder %v1448, 0.0
        %v1451 = vmax.f32 %v1447, 1e-30
        %v1452 = vmax.f32 %v1448, 1e-30
        %v1453 = vlog2.pop %v1451
        %v1454 = vmul.f32 %v1453, 0.6931472
        %v1455 = vlog2.pop %v1452
        %v1456 = vmul.f32 %v1455, 0.6931472
        %v1457 = vmul.f32 %v1454, 0.7
        %v1458 = vmul.f32 %v1456, 0.7
        %v1459 = vmul.f32 %v1457, 1.442695
        %v1460 = vpow.pop %v1459
        %v1461 = vmul.f32 %v1458, 1.442695
        %v1462 = vpow.pop %v1461
        %v1463 = vsel %vm1449, %v1460, 0.0
        %v1464 = vsel %vm1450, %v1462, 0.0
        %vm1465 = vcmp.lt.f32.partialorder %v1463, 16.510439
        %vm1466 = vcmp.lt.f32.partialorder %v1464, 16.510439
        %v1467 = vmul.f32 %v1463, 0.05753935
        %v1468 = vmul.f32 %v1464, 0.05753935
        %v1469 = vsub.f32 %v1463, 16.510439
        %v1470 = vsub.f32 %v1464, 16.510439
        %v1471 = vmul.f32 %v1469, 0.0020189246
        %v1472 = vmul.f32 %v1470, 0.0020189246
        %v1473 = vadd.f32 %v1471, 0.95
        %v1474 = vadd.f32 %v1472, 0.95
        %v1475 = vsel %vm1465, %v1467, %v1473
        %v1476 = vsel %vm1466, %v1468, %v1474
        %v1477 = vadd.f32 %v488, 16.0
        %v1478 = vadd.f32 %v489, 16.0
        %v1479 = vmul.f32 %v1477, 0.00862069
        %v1480 = vmul.f32 %v1478, 0.00862069
        %s1481 = scalar_lea.vmem [#allocation7], 64
        %v1482 = vld [vmem:[%s1481] sm:$0xff]
        %v1483 = vld [vmem:[%s1481 + $0x8] sm:$0xff]
        %v1485 = vsel %vm612, %v1482, 0
        %v1488 = vsel %vm612, %v1483, 0
        %1490 = vmatpush.msra.mxu0 0.0
        %1491 = vmatpush.msra.mxu0 0.0
        %1492 = vmatpush.msra.mxu0 0.0
        %1493 = vmatpush.msra.mxu0 0.0
        %1494 = vmatpush.msra.mxu0 0.0
        %1495 = vmatpush.msra.mxu0 0.0
        %1496 = vmatpush.msra.mxu0 0.0
        %1497 = vmatpush.msra.mxu0 0.0
        %1498 = vmatpush.msra.mxu0 0.0
        %1499 = vmatpush.msra.mxu0 0.0
        %1500 = vmatpush.msra.mxu0 0.0
        %1501 = vmatpush.msra.mxu0 0.0
        %1502 = vmatpush.msra.mxu0 0.0
        %1503 = vmatpush.msra.mxu0 0.0
        %1504 = vmatpush.msra.mxu0 %v1480
        %1505 = vmatpush.msra.mxu0 %v1479
        %1506 = vmatmul.f32.gmra.mxu0 %v1485
        %v1507 = vpop.f32.mrf.mxu0
        %v1508 = vadd.f32 0.0, %v1507
        %1509 = vmatmul.f32.gmra.mxu0 %v1488
        %v1510 = vpop.f32.mrf.mxu0
        %v1511 = vadd.f32 0.0, %v1510
        %1512 = vdwg.mxu0
        %s1513 = scalar_lea.vmem [#allocation9], 64
        %v1514 = vld [vmem:[%s1513] sm:$0xff]
        %v1515 = vld [vmem:[%s1513 + $0x8] sm:$0xff]
        %v1517 = vsel %vm612, %v1508, 0
        %v1520 = vsel %vm612, %v1511, 0
        %1522 = vmatpush.msra.mxu0 0.0
        %1523 = vmatpush.msra.mxu0 0.0
        %1524 = vmatpush.msra.mxu0 0.0
        %1525 = vmatpush.msra.mxu0 0.0
        %1526 = vmatpush.msra.mxu0 0.0
        %1527 = vmatpush.msra.mxu0 0.0
        %1528 = vmatpush.msra.mxu0 0.0
        %1529 = vmatpush.msra.mxu0 0.0
        %1530 = vmatpush.msra.mxu0 0.0
        %1531 = vmatpush.msra.mxu0 0.0
        %1532 = vmatpush.msra.mxu0 0.0
        %1533 = vmatpush.msra.mxu0 0.0
        %1534 = vmatpush.msra.mxu0 0.0
        %1535 = vmatpush.msra.mxu0 0.0
        %1536 = vmatpush.msra.mxu0 %v1515
        %1537 = vmatpush.msra.mxu0 %v1514
        %1538 = vmatmul.f32.gmra.mxu0 %v1517
        %v1539 = vpop.f32.mrf.mxu0
        %v1540 = vadd.f32 0.0, %v1539
        %1541 = vmatmul.f32.gmra.mxu0 %v1520
        %v1542 = vpop.f32.mrf.mxu0
        %v1543 = vadd.f32 0.0, %v1542
        %1544 = vdwg.mxu0
        %s1545 = scalar_lea.vmem [#allocation7], 80
        %v1546 = vld [vmem:[%s1545] sm:$0xff]
        %v1547 = vld [vmem:[%s1545 + $0x8] sm:$0xff]
        %v1549 = vsel %vm612, %v1546, 0
        %v1552 = vsel %vm612, %v1547, 0
        %1554 = vmatpush.msra.mxu0 0.0
        %1555 = vmatpush.msra.mxu0 0.0
        %1556 = vmatpush.msra.mxu0 0.0
        %1557 = vmatpush.msra.mxu0 0.0
        %1558 = vmatpush.msra.mxu0 0.0
        %1559 = vmatpush.msra.mxu0 0.0
        %1560 = vmatpush.msra.mxu0 0.0
        %1561 = vmatpush.msra.mxu0 0.0
        %1562 = vmatpush.msra.mxu0 0.0
        %1563 = vmatpush.msra.mxu0 0.0
        %1564 = vmatpush.msra.mxu0 0.0
        %1565 = vmatpush.msra.mxu0 0.0
        %1566 = vmatpush.msra.mxu0 0.0
        %1567 = vmatpush.msra.mxu0 0.0
        %1568 = vmatpush.msra.mxu0 %v1480
        %1569 = vmatpush.msra.mxu0 %v1479
        %1570 = vmatmul.f32.gmra.mxu0 %v1549
        %v1571 = vpop.f32.mrf.mxu0
        %v1572 = vadd.f32 0.0, %v1571
        %1573 = vmatmul.f32.gmra.mxu0 %v1552
        %v1574 = vpop.f32.mrf.mxu0
        %v1575 = vadd.f32 0.0, %v1574
        %1576 = vdwg.mxu0
        %s1577 = scalar_lea.vmem [#allocation9], 80
        %v1578 = vld [vmem:[%s1577] sm:$0xff]
        %v1579 = vld [vmem:[%s1577 + $0x8] sm:$0xff]
        %v1581 = vsel %vm612, %v1572, 0
        %v1584 = vsel %vm612, %v1575, 0
        %1586 = vmatpush.msra.mxu0 0.0
        %1587 = vmatpush.msra.mxu0 0.0
        %1588 = vmatpush.msra.mxu0 0.0
        %1589 = vmatpush.msra.mxu0 0.0
        %1590 = vmatpush.msra.mxu0 0.0
        %1591 = vmatpush.msra.mxu0 0.0
        %1592 = vmatpush.msra.mxu0 0.0
        %1593 = vmatpush.msra.mxu0 0.0
        %1594 = vmatpush.msra.mxu0 0.0
        %1595 = vmatpush.msra.mxu0 0.0
        %1596 = vmatpush.msra.mxu0 0.0
        %1597 = vmatpush.msra.mxu0 0.0
        %1598 = vmatpush.msra.mxu0 0.0
        %1599 = vmatpush.msra.mxu0 0.0
        %1600 = vmatpush.msra.mxu0 %v1579
        %1601 = vmatpush.msra.mxu0 %v1578
        %1602 = vmatmul.f32.gmra.mxu0 %v1581
        %v1603 = vpop.f32.mrf.mxu0
        %v1604 = vadd.f32 0.0, %v1603
        %1605 = vmatmul.f32.gmra.mxu0 %v1584
        %v1606 = vpop.f32.mrf.mxu0
        %v1607 = vadd.f32 0.0, %v1606
        %1608 = vdwg.mxu0
        %s1609 = scalar_lea.vmem [#allocation7], 96
        %v1610 = vld [vmem:[%s1609] sm:$0xff]
        %v1611 = vld [vmem:[%s1609 + $0x8] sm:$0xff]
        %v1613 = vsel %vm612, %v1610, 0
        %v1616 = vsel %vm612, %v1611, 0
        %1618 = vmatpush.msra.mxu0 0.0
        %1619 = vmatpush.msra.mxu0 0.0
        %1620 = vmatpush.msra.mxu0 0.0
        %1621 = vmatpush.msra.mxu0 0.0
        %1622 = vmatpush.msra.mxu0 0.0
        %1623 = vmatpush.msra.mxu0 0.0
        %1624 = vmatpush.msra.mxu0 0.0
        %1625 = vmatpush.msra.mxu0 0.0
        %1626 = vmatpush.msra.mxu0 0.0
        %1627 = vmatpush.msra.mxu0 0.0
        %1628 = vmatpush.msra.mxu0 0.0
        %1629 = vmatpush.msra.mxu0 0.0
        %1630 = vmatpush.msra.mxu0 0.0
        %1631 = vmatpush.msra.mxu0 0.0
        %1632 = vmatpush.msra.mxu0 %v1480
        %1633 = vmatpush.msra.mxu0 %v1479
        %1634 = vmatmul.f32.gmra.mxu0 %v1613
        %v1635 = vpop.f32.mrf.mxu0
        %v1636 = vadd.f32 0.0, %v1635
        %1637 = vmatmul.f32.gmra.mxu0 %v1616
        %v1638 = vpop.f32.mrf.mxu0
        %v1639 = vadd.f32 0.0, %v1638
        %1640 = vdwg.mxu0
        %s1641 = scalar_lea.vmem [#allocation9], 96
        %v1642 = vld [vmem:[%s1641] sm:$0xff]
        %v1643 = vld [vmem:[%s1641 + $0x8] sm:$0xff]
        %v1645 = vsel %vm612, %v1636, 0
        %v1648 = vsel %vm612, %v1639, 0
        %1650 = vmatpush.msra.mxu0 0.0
        %1651 = vmatpush.msra.mxu0 0.0
        %1652 = vmatpush.msra.mxu0 0.0
        %1653 = vmatpush.msra.mxu0 0.0
        %1654 = vmatpush.msra.mxu0 0.0
        %1655 = vmatpush.msra.mxu0 0.0
        %1656 = vmatpush.msra.mxu0 0.0
        %1657 = vmatpush.msra.mxu0 0.0
        %1658 = vmatpush.msra.mxu0 0.0
        %1659 = vmatpush.msra.mxu0 0.0
        %1660 = vmatpush.msra.mxu0 0.0
        %1661 = vmatpush.msra.mxu0 0.0
        %1662 = vmatpush.msra.mxu0 0.0
        %1663 = vmatpush.msra.mxu0 0.0
        %1664 = vmatpush.msra.mxu0 %v1643
        %1665 = vmatpush.msra.mxu0 %v1642
        %1666 = vmatmul.f32.gmra.mxu0 %v1645
        %v1667 = vpop.f32.mrf.mxu0
        %v1668 = vadd.f32 0.0, %v1667
        %1669 = vmatmul.f32.gmra.mxu0 %v1648
        %v1670 = vpop.f32.mrf.mxu0
        %v1671 = vadd.f32 0.0, %v1670
        %1672 = vdwg.mxu0
        %s1673 = scalar_lea.vmem [#allocation7], 112
        %v1674 = vld [vmem:[%s1673] sm:$0xff]
        %v1675 = vld [vmem:[%s1673 + $0x8] sm:$0xff]
        %v1677 = vsel %vm612, %v1674, 0
        %v1680 = vsel %vm612, %v1675, 0
        %1682 = vmatpush.msra.mxu0 0.0
        %1683 = vmatpush.msra.mxu0 0.0
        %1684 = vmatpush.msra.mxu0 0.0
        %1685 = vmatpush.msra.mxu0 0.0
        %1686 = vmatpush.msra.mxu0 0.0
        %1687 = vmatpush.msra.mxu0 0.0
        %1688 = vmatpush.msra.mxu0 0.0
        %1689 = vmatpush.msra.mxu0 0.0
        %1690 = vmatpush.msra.mxu0 0.0
        %1691 = vmatpush.msra.mxu0 0.0
        %1692 = vmatpush.msra.mxu0 0.0
        %1693 = vmatpush.msra.mxu0 0.0
        %1694 = vmatpush.msra.mxu0 0.0
        %1695 = vmatpush.msra.mxu0 0.0
        %1696 = vmatpush.msra.mxu0 %v1480
        %1697 = vmatpush.msra.mxu0 %v1479
        %1698 = vmatmul.f32.gmra.mxu0 %v1677
        %v1699 = vpop.f32.mrf.mxu0
        %v1700 = vadd.f32 0.0, %v1699
        %1701 = vmatmul.f32.gmra.mxu0 %v1680
        %v1702 = vpop.f32.mrf.mxu0
        %v1703 = vadd.f32 0.0, %v1702
        %1704 = vdwg.mxu0
        %s1705 = scalar_lea.vmem [#allocation9], 112
        %v1706 = vld [vmem:[%s1705] sm:$0xff]
        %v1707 = vld [vmem:[%s1705 + $0x8] sm:$0xff]
        %v1709 = vsel %vm612, %v1700, 0
        %v1712 = vsel %vm612, %v1703, 0
        %1714 = vmatpush.msra.mxu0 0.0
        %1715 = vmatpush.msra.mxu0 0.0
        %1716 = vmatpush.msra.mxu0 0.0
        %1717 = vmatpush.msra.mxu0 0.0
        %1718 = vmatpush.msra.mxu0 0.0
        %1719 = vmatpush.msra.mxu0 0.0
        %1720 = vmatpush.msra.mxu0 0.0
        %1721 = vmatpush.msra.mxu0 0.0
        %1722 = vmatpush.msra.mxu0 0.0
        %1723 = vmatpush.msra.mxu0 0.0
        %1724 = vmatpush.msra.mxu0 0.0
        %1725 = vmatpush.msra.mxu0 0.0
        %1726 = vmatpush.msra.mxu0 0.0
        %1727 = vmatpush.msra.mxu0 0.0
        %1728 = vmatpush.msra.mxu0 %v1707
        %1729 = vmatpush.msra.mxu0 %v1706
        %1730 = vmatmul.f32.gmra.mxu0 %v1709
        %v1731 = vpop.f32.mrf.mxu0
        %v1732 = vadd.f32 0.0, %v1731
        %1733 = vmatmul.f32.gmra.mxu0 %v1712
        %v1734 = vpop.f32.mrf.mxu0
        %v1735 = vadd.f32 0.0, %v1734
        %1736 = vdwg.mxu0
        %v1737 = vmul.f32 %v1540, %v1540
        %v1738 = vmul.f32 %v1543, %v1543
        %v1739 = vmul.f32 %v1604, %v1604
        %v1740 = vmul.f32 %v1607, %v1607
        %v1741 = vadd.f32 %v1737, %v1739
        %v1742 = vadd.f32 %v1738, %v1740
        %v1743 = vrsqrt.pop %v1741
        %v1744 = vmul.f32 %v1743, %v1741
        %v1745 = vmul.f32 %v1744, %v1743
        %v1746 = vmul.f32 0.5, %v1745
        %v1747 = vsub.f32 1.5, %v1746
        %v1748 = vmul.f32 %v1743, %v1747
        %v1749 = vmul.f32 %v1741, %v1748
        %vm1750 = vcmp.eq.f32.partialorder %v1741, inf
        %v1751 = vsel %vm1750, %v1741, %v1749
        %vm1752 = vcmp.eq.f32.partialorder %v1741, 0.0
        %v1753 = vand.u32 %v1741, 2147483648
        %v1754 = vsel %vm1752, %v1753, %v1751
        %v1755 = vrsqrt.pop %v1742
        %v1756 = vmul.f32 %v1755, %v1742
        %v1757 = vmul.f32 %v1756, %v1755
        %v1758 = vmul.f32 0.5, %v1757
        %v1759 = vsub.f32 1.5, %v1758
        %v1760 = vmul.f32 %v1755, %v1759
        %v1761 = vmul.f32 %v1742, %v1760
        %vm1762 = vcmp.eq.f32.partialorder %v1742, inf
        %v1763 = vsel %vm1762, %v1742, %v1761
        %vm1764 = vcmp.eq.f32.partialorder %v1742, 0.0
        %v1765 = vand.u32 %v1742, 2147483648
        %v1766 = vsel %vm1764, %v1765, %v1763
        %v1767 = vmul.f32 %v1668, %v1668
        %v1768 = vmul.f32 %v1671, %v1671
        %v1769 = vmul.f32 %v1732, %v1732
        %v1770 = vmul.f32 %v1735, %v1735
        %v1771 = vadd.f32 %v1767, %v1769
        %v1772 = vadd.f32 %v1768, %v1770
        %v1773 = vrsqrt.pop %v1771
        %v1774 = vmul.f32 %v1773, %v1771
        %v1775 = vmul.f32 %v1774, %v1773
        %v1776 = vmul.f32 0.5, %v1775
        %v1777 = vsub.f32 1.5, %v1776
        %v1778 = vmul.f32 %v1773, %v1777
        %v1779 = vmul.f32 %v1771, %v1778
        %vm1780 = vcmp.eq.f32.partialorder %v1771, inf
        %v1781 = vsel %vm1780, %v1771, %v1779
        %vm1782 = vcmp.eq.f32.partialorder %v1771, 0.0
        %v1783 = vand.u32 %v1771, 2147483648
        %v1784 = vsel %vm1782, %v1783, %v1781
        %v1785 = vrsqrt.pop %v1772
        %v1786 = vmul.f32 %v1785, %v1772
        %v1787 = vmul.f32 %v1786, %v1785
        %v1788 = vmul.f32 0.5, %v1787
        %v1789 = vsub.f32 1.5, %v1788
        %v1790 = vmul.f32 %v1785, %v1789
        %v1791 = vmul.f32 %v1772, %v1790
        %vm1792 = vcmp.eq.f32.partialorder %v1772, inf
        %v1793 = vsel %vm1792, %v1772, %v1791
        %vm1794 = vcmp.eq.f32.partialorder %v1772, 0.0
        %v1795 = vand.u32 %v1772, 2147483648
        %v1796 = vsel %vm1794, %v1795, %v1793
        %v1797 = vadd.f32 %v600, 16.0
        %v1798 = vadd.f32 %v601, 16.0
        %v1799 = vmul.f32 %v1797, 0.00862069
        %v1800 = vmul.f32 %v1798, 0.00862069
        %1801 = vmatpush.msra.mxu0 0.0
        %1802 = vmatpush.msra.mxu0 0.0
        %1803 = vmatpush.msra.mxu0 0.0
        %1804 = vmatpush.msra.mxu0 0.0
        %1805 = vmatpush.msra.mxu0 0.0
        %1806 = vmatpush.msra.mxu0 0.0
        %1807 = vmatpush.msra.mxu0 0.0
        %1808 = vmatpush.msra.mxu0 0.0
        %1809 = vmatpush.msra.mxu0 0.0
        %1810 = vmatpush.msra.mxu0 0.0
        %1811 = vmatpush.msra.mxu0 0.0
        %1812 = vmatpush.msra.mxu0 0.0
        %1813 = vmatpush.msra.mxu0 0.0
        %1814 = vmatpush.msra.mxu0 0.0
        %1815 = vmatpush.msra.mxu0 %v1800
        %1816 = vmatpush.msra.mxu0 %v1799
        %1817 = vmatmul.f32.gmra.mxu0 %v1485
        %v1818 = vpop.f32.mrf.mxu0
        %v1819 = vadd.f32 0.0, %v1818
        %1820 = vmatmul.f32.gmra.mxu0 %v1488
        %v1821 = vpop.f32.mrf.mxu0
        %v1822 = vadd.f32 0.0, %v1821
        %1823 = vdwg.mxu0
        %v1825 = vsel %vm612, %v1819, 0
        %v1828 = vsel %vm612, %v1822, 0
        %1830 = vmatpush.msra.mxu0 0.0
        %1831 = vmatpush.msra.mxu0 0.0
        %1832 = vmatpush.msra.mxu0 0.0
        %1833 = vmatpush.msra.mxu0 0.0
        %1834 = vmatpush.msra.mxu0 0.0
        %1835 = vmatpush.msra.mxu0 0.0
        %1836 = vmatpush.msra.mxu0 0.0
        %1837 = vmatpush.msra.mxu0 0.0
        %1838 = vmatpush.msra.mxu0 0.0
        %1839 = vmatpush.msra.mxu0 0.0
        %1840 = vmatpush.msra.mxu0 0.0
        %1841 = vmatpush.msra.mxu0 0.0
        %1842 = vmatpush.msra.mxu0 0.0
        %1843 = vmatpush.msra.mxu0 0.0
        %1844 = vmatpush.msra.mxu0 %v1515
        %1845 = vmatpush.msra.mxu0 %v1514
        %1846 = vmatmul.f32.gmra.mxu0 %v1825
        %v1847 = vpop.f32.mrf.mxu0
        %v1848 = vadd.f32 0.0, %v1847
        %1849 = vmatmul.f32.gmra.mxu0 %v1828
        %v1850 = vpop.f32.mrf.mxu0
        %v1851 = vadd.f32 0.0, %v1850
        %1852 = vdwg.mxu0
        %1853 = vmatpush.msra.mxu0 0.0
        %1854 = vmatpush.msra.mxu0 0.0
        %1855 = vmatpush.msra.mxu0 0.0
        %1856 = vmatpush.msra.mxu0 0.0
        %1857 = vmatpush.msra.mxu0 0.0
        %1858 = vmatpush.msra.mxu0 0.0
        %1859 = vmatpush.msra.mxu0 0.0
        %1860 = vmatpush.msra.mxu0 0.0
        %1861 = vmatpush.msra.mxu0 0.0
        %1862 = vmatpush.msra.mxu0 0.0
        %1863 = vmatpush.msra.mxu0 0.0
        %1864 = vmatpush.msra.mxu0 0.0
        %1865 = vmatpush.msra.mxu0 0.0
        %1866 = vmatpush.msra.mxu0 0.0
        %1867 = vmatpush.msra.mxu0 %v1800
        %1868 = vmatpush.msra.mxu0 %v1799
        %1869 = vmatmul.f32.gmra.mxu0 %v1549
        %v1870 = vpop.f32.mrf.mxu0
        %v1871 = vadd.f32 0.0, %v1870
        %1872 = vmatmul.f32.gmra.mxu0 %v1552
        %v1873 = vpop.f32.mrf.mxu0
        %v1874 = vadd.f32 0.0, %v1873
        %1875 = vdwg.mxu0
        %v1877 = vsel %vm612, %v1871, 0
        %v1880 = vsel %vm612, %v1874, 0
        %1882 = vmatpush.msra.mxu0 0.0
        %1883 = vmatpush.msra.mxu0 0.0
        %1884 = vmatpush.msra.mxu0 0.0
        %1885 = vmatpush.msra.mxu0 0.0
        %1886 = vmatpush.msra.mxu0 0.0
        %1887 = vmatpush.msra.mxu0 0.0
        %1888 = vmatpush.msra.mxu0 0.0
        %1889 = vmatpush.msra.mxu0 0.0
        %1890 = vmatpush.msra.mxu0 0.0
        %1891 = vmatpush.msra.mxu0 0.0
        %1892 = vmatpush.msra.mxu0 0.0
        %1893 = vmatpush.msra.mxu0 0.0
        %1894 = vmatpush.msra.mxu0 0.0
        %1895 = vmatpush.msra.mxu0 0.0
        %1896 = vmatpush.msra.mxu0 %v1579
        %1897 = vmatpush.msra.mxu0 %v1578
        %1898 = vmatmul.f32.gmra.mxu0 %v1877
        %v1899 = vpop.f32.mrf.mxu0
        %v1900 = vadd.f32 0.0, %v1899
        %1901 = vmatmul.f32.gmra.mxu0 %v1880
        %v1902 = vpop.f32.mrf.mxu0
        %v1903 = vadd.f32 0.0, %v1902
        %1904 = vdwg.mxu0
        %1905 = vmatpush.msra.mxu0 0.0
        %1906 = vmatpush.msra.mxu0 0.0
        %1907 = vmatpush.msra.mxu0 0.0
        %1908 = vmatpush.msra.mxu0 0.0
        %1909 = vmatpush.msra.mxu0 0.0
        %1910 = vmatpush.msra.mxu0 0.0
        %1911 = vmatpush.msra.mxu0 0.0
        %1912 = vmatpush.msra.mxu0 0.0
        %1913 = vmatpush.msra.mxu0 0.0
        %1914 = vmatpush.msra.mxu0 0.0
        %1915 = vmatpush.msra.mxu0 0.0
        %1916 = vmatpush.msra.mxu0 0.0
        %1917 = vmatpush.msra.mxu0 0.0
        %1918 = vmatpush.msra.mxu0 0.0
        %1919 = vmatpush.msra.mxu0 %v1800
        %1920 = vmatpush.msra.mxu0 %v1799
        %1921 = vmatmul.f32.gmra.mxu0 %v1613
        %v1922 = vpop.f32.mrf.mxu0
        %v1923 = vadd.f32 0.0, %v1922
        %1924 = vmatmul.f32.gmra.mxu0 %v1616
        %v1925 = vpop.f32.mrf.mxu0
        %v1926 = vadd.f32 0.0, %v1925
        %1927 = vdwg.mxu0
        %v1929 = vsel %vm612, %v1923, 0
        %v1932 = vsel %vm612, %v1926, 0
        %1934 = vmatpush.msra.mxu0 0.0
        %1935 = vmatpush.msra.mxu0 0.0
        %1936 = vmatpush.msra.mxu0 0.0
        %1937 = vmatpush.msra.mxu0 0.0
        %1938 = vmatpush.msra.mxu0 0.0
        %1939 = vmatpush.msra.mxu0 0.0
        %1940 = vmatpush.msra.mxu0 0.0
        %1941 = vmatpush.msra.mxu0 0.0
        %1942 = vmatpush.msra.mxu0 0.0
        %1943 = vmatpush.msra.mxu0 0.0
        %1944 = vmatpush.msra.mxu0 0.0
        %1945 = vmatpush.msra.mxu0 0.0
        %1946 = vmatpush.msra.mxu0 0.0
        %1947 = vmatpush.msra.mxu0 0.0
        %1948 = vmatpush.msra.mxu0 %v1643
        %1949 = vmatpush.msra.mxu0 %v1642
        %1950 = vmatmul.f32.gmra.mxu0 %v1929
        %v1951 = vpop.f32.mrf.mxu0
        %v1952 = vadd.f32 0.0, %v1951
        %1953 = vmatmul.f32.gmra.mxu0 %v1932
        %v1954 = vpop.f32.mrf.mxu0
        %v1955 = vadd.f32 0.0, %v1954
        %1956 = vdwg.mxu0
        %1957 = vmatpush.msra.mxu0 0.0
        %1958 = vmatpush.msra.mxu0 0.0
        %1959 = vmatpush.msra.mxu0 0.0
        %1960 = vmatpush.msra.mxu0 0.0
        %1961 = vmatpush.msra.mxu0 0.0
        %1962 = vmatpush.msra.mxu0 0.0
        %1963 = vmatpush.msra.mxu0 0.0
        %1964 = vmatpush.msra.mxu0 0.0
        %1965 = vmatpush.msra.mxu0 0.0
        %1966 = vmatpush.msra.mxu0 0.0
        %1967 = vmatpush.msra.mxu0 0.0
        %1968 = vmatpush.msra.mxu0 0.0
        %1969 = vmatpush.msra.mxu0 0.0
        %1970 = vmatpush.msra.mxu0 0.0
        %1971 = vmatpush.msra.mxu0 %v1800
        %1972 = vmatpush.msra.mxu0 %v1799
        %1973 = vmatmul.f32.gmra.mxu0 %v1677
        %v1974 = vpop.f32.mrf.mxu0
        %v1975 = vadd.f32 0.0, %v1974
        %1976 = vmatmul.f32.gmra.mxu0 %v1680
        %v1977 = vpop.f32.mrf.mxu0
        %v1978 = vadd.f32 0.0, %v1977
        %1979 = vdwg.mxu0
        %v1981 = vsel %vm612, %v1975, 0
        %v1984 = vsel %vm612, %v1978, 0
        %1986 = vmatpush.msra.mxu0 0.0
        %1987 = vmatpush.msra.mxu0 0.0
        %1988 = vmatpush.msra.mxu0 0.0
        %1989 = vmatpush.msra.mxu0 0.0
        %1990 = vmatpush.msra.mxu0 0.0
        %1991 = vmatpush.msra.mxu0 0.0
        %1992 = vmatpush.msra.mxu0 0.0
        %1993 = vmatpush.msra.mxu0 0.0
        %1994 = vmatpush.msra.mxu0 0.0
        %1995 = vmatpush.msra.mxu0 0.0
        %1996 = vmatpush.msra.mxu0 0.0
        %1997 = vmatpush.msra.mxu0 0.0
        %1998 = vmatpush.msra.mxu0 0.0
        %1999 = vmatpush.msra.mxu0 0.0
        %2000 = vmatpush.msra.mxu0 %v1707
        %2001 = vmatpush.msra.mxu0 %v1706
        %2002 = vmatmul.f32.gmra.mxu0 %v1981
        %v2003 = vpop.f32.mrf.mxu0
        %v2004 = vadd.f32 0.0, %v2003
        %2005 = vmatmul.f32.gmra.mxu0 %v1984
        %v2006 = vpop.f32.mrf.mxu0
        %v2007 = vadd.f32 0.0, %v2006
        %2008 = vdwg.mxu0
        %v2009 = vmul.f32 %v1848, %v1848
        %v2010 = vmul.f32 %v1851, %v1851
        %v2011 = vmul.f32 %v1900, %v1900
        %v2012 = vmul.f32 %v1903, %v1903
        %v2013 = vadd.f32 %v2009, %v2011
        %v2014 = vadd.f32 %v2010, %v2012
        %v2015 = vrsqrt.pop %v2013
        %v2016 = vmul.f32 %v2015, %v2013
        %v2017 = vmul.f32 %v2016, %v2015
        %v2018 = vmul.f32 0.5, %v2017
        %v2019 = vsub.f32 1.5, %v2018
        %v2020 = vmul.f32 %v2015, %v2019
        %v2021 = vmul.f32 %v2013, %v2020
        %vm2022 = vcmp.eq.f32.partialorder %v2013, inf
        %v2023 = vsel %vm2022, %v2013, %v2021
        %vm2024 = vcmp.eq.f32.partialorder %v2013, 0.0
        %v2025 = vand.u32 %v2013, 2147483648
        %v2026 = vsel %vm2024, %v2025, %v2023
        %v2027 = vrsqrt.pop %v2014
        %v2028 = vmul.f32 %v2027, %v2014
        %v2029 = vmul.f32 %v2028, %v2027
        %v2030 = vmul.f32 0.5, %v2029
        %v2031 = vsub.f32 1.5, %v2030
        %v2032 = vmul.f32 %v2027, %v2031
        %v2033 = vmul.f32 %v2014, %v2032
        %vm2034 = vcmp.eq.f32.partialorder %v2014, inf
        %v2035 = vsel %vm2034, %v2014, %v2033
        %vm2036 = vcmp.eq.f32.partialorder %v2014, 0.0
        %v2037 = vand.u32 %v2014, 2147483648
        %v2038 = vsel %vm2036, %v2037, %v2035
        %v2039 = vmul.f32 %v1952, %v1952
        %v2040 = vmul.f32 %v1955, %v1955
        %v2041 = vmul.f32 %v2004, %v2004
        %v2042 = vmul.f32 %v2007, %v2007
        %v2043 = vadd.f32 %v2039, %v2041
        %v2044 = vadd.f32 %v2040, %v2042
        %v2045 = vrsqrt.pop %v2043
        %v2046 = vmul.f32 %v2045, %v2043
        %v2047 = vmul.f32 %v2046, %v2045
        %v2048 = vmul.f32 0.5, %v2047
        %v2049 = vsub.f32 1.5, %v2048
        %v2050 = vmul.f32 %v2045, %v2049
        %v2051 = vmul.f32 %v2043, %v2050
        %vm2052 = vcmp.eq.f32.partialorder %v2043, inf
        %v2053 = vsel %vm2052, %v2043, %v2051
        %vm2054 = vcmp.eq.f32.partialorder %v2043, 0.0
        %v2055 = vand.u32 %v2043, 2147483648
        %v2056 = vsel %vm2054, %v2055, %v2053
        %v2057 = vrsqrt.pop %v2044
        %v2058 = vmul.f32 %v2057, %v2044
        %v2059 = vmul.f32 %v2058, %v2057
        %v2060 = vmul.f32 0.5, %v2059
        %v2061 = vsub.f32 1.5, %v2060
        %v2062 = vmul.f32 %v2057, %v2061
        %v2063 = vmul.f32 %v2044, %v2062
        %vm2064 = vcmp.eq.f32.partialorder %v2044, inf
        %v2065 = vsel %vm2064, %v2044, %v2063
        %vm2066 = vcmp.eq.f32.partialorder %v2044, 0.0
        %v2067 = vand.u32 %v2044, 2147483648
        %v2068 = vsel %vm2066, %v2067, %v2065
        %v2069 = vsub.f32 %v2026, %v1754
        %v2070 = vsub.f32 %v2038, %v1766
        %v2071 = vand.u32 2147483647, %v2069
        %v2072 = vand.u32 2147483647, %v2070
        %v2073 = vsub.f32 %v1784, %v2056
        %v2074 = vsub.f32 %v1796, %v2068
        %v2075 = vand.u32 2147483647, %v2073
        %v2076 = vand.u32 2147483647, %v2074
        %v2077 = vmax.f32 %v2071, %v2075
        %v2078 = vmax.f32 %v2072, %v2076
        %v2079 = vmul.f32 %v2077, 0.70710677
        %v2080 = vmul.f32 %v2078, 0.70710677
        %v2081 = vrsqrt.pop %v2079
        %v2082 = vmul.f32 %v2081, %v2079
        %v2083 = vmul.f32 %v2082, %v2081
        %v2084 = vmul.f32 0.5, %v2083
        %v2085 = vsub.f32 1.5, %v2084
        %v2086 = vmul.f32 %v2081, %v2085
        %v2087 = vmul.f32 %v2079, %v2086
        %vm2088 = vcmp.eq.f32.partialorder %v2079, inf
        %v2089 = vsel %vm2088, %v2079, %v2087
        %vm2090 = vcmp.eq.f32.partialorder %v2079, 0.0
        %v2091 = vand.u32 %v2079, 2147483648
        %v2092 = vsel %vm2090, %v2091, %v2089
        %v2093 = vrsqrt.pop %v2080
        %v2094 = vmul.f32 %v2093, %v2080
        %v2095 = vmul.f32 %v2094, %v2093
        %v2096 = vmul.f32 0.5, %v2095
        %v2097 = vsub.f32 1.5, %v2096
        %v2098 = vmul.f32 %v2093, %v2097
        %v2099 = vmul.f32 %v2080, %v2098
        %vm2100 = vcmp.eq.f32.partialorder %v2080, inf
        %v2101 = vsel %vm2100, %v2080, %v2099
        %vm2102 = vcmp.eq.f32.partialorder %v2080, 0.0
        %v2103 = vand.u32 %v2080, 2147483648
        %v2104 = vsel %vm2102, %v2103, %v2101
        %vm2105 = vcmp.gt.f32.partialorder %v1475, 0.0
        %vm2106 = vcmp.gt.f32.partialorder %v1476, 0.0
        %v2107 = vsub.f32 1.0, %v2092
        %v2108 = vsub.f32 1.0, %v2104
        %v2109 = vmax.f32 %v1475, 1e-30
        %v2110 = vmax.f32 %v1476, 1e-30
        %v2111 = vlog2.pop %v2109
        %v2112 = vmul.f32 %v2111, 0.6931472
        %v2113 = vlog2.pop %v2110
        %v2114 = vmul.f32 %v2113, 0.6931472
        %v2115 = vmul.f32 %v2107, %v2112
        %v2116 = vmul.f32 %v2108, %v2114
        %v2117 = vmul.f32 %v2115, 1.442695
        %v2118 = vpow.pop %v2117
        %v2119 = vmul.f32 %v2116, 1.442695
        %v2120 = vpow.pop %v2119
        %v2121 = vsel %vm2105, %v2118, 0.0
        %v2122 = vsel %vm2106, %v2120, 0.0
        %v2123 = vsel %vm612, %v2121, 0.0
        %v2124 = vsel %vm612, %v2122, 0.0
        %v2125 = vadd.f32 %v2123, %v2124
        %2126 = vadd.xlane.f32.xlu0 %v2125
        %v2127 = vpop.xlane.xlu0 %2126
        %v2128 = vrot.slane %v2127, 4
        %v2129 = vadd.f32 %v2127, %v2128
        %v2130 = vrot.slane %v2129, 2
        %v2131 = vadd.f32 %v2129, %v2130
        %v2132 = vrot.slane %v2131, 1
        %v2133 = vadd.f32 %v2131, %v2132
        %s2134 = vtos %v2133
        %s2135 = smul.f32 %s2134, 0.00390625
        %v2136 = vstv %s2135
        %v2137 = vadd.f32 %v2136, 0.0
        %vm2138 = vcmask 0
        %2139 = vst.msk [vmem:[%s357] sm:$0x1] %vm2138, %v2137
        %p2140 = scmp.lt.s32.totalorder %s23, 1
        %s2141 = scalar_select %p2140, %s23, 1
        %s2142 = scalar_lea.vmem %s5, %s2141
        // Predicated region
        $region61: #{tpu_custom_call.1} parent=39 // pred_check
          %p2143 = pneg %p161
        $region62: #{tpu_custom_call.1} parent=39 // pred_check_branch
          %2145 = sbr.rel (%p2143) target = $region64
        $region63: #{tpu_custom_call.1} parent=39 // pred_region
          _
        $region64: #{tpu_custom_call.1} parent=39 // pred_fallthru
          _
      $region40: #{tpu_custom_call.1} parent=5 // pred_fallthru
        _
      %p2146 = scmp.le.s32.totalorder 2, %s18
      // Predicated region
      $region65: #{tpu_custom_call.1} parent=5 // pred_check
        %p2147 = pneg %p2146
      $region66: #{tpu_custom_call.1} parent=5 // pred_check_branch
        %2149 = sbr.rel (%p2147) target = $region68
      $region67: #{tpu_custom_call.1} parent=5 // pred_region
        %s2150 = ssub.s32 %s18, 2
        // Predicated region
        $region69: #{tpu_custom_call.1} parent=67 // pred_check
          %p2151 = pneg %p167
        $region70: #{tpu_custom_call.1} parent=67 // pred_check_branch
          %2153 = sbr.rel (%p2151) target = $region72
        $region71: #{tpu_custom_call.1} parent=67 // pred_region
          %p2154 = scmp.lt.s32.totalorder %s24, 1
          %s2155 = scalar_select %p2154, %s24, 1
          %s2156 = scalar_lea.vmem %s5, %s2155
        $region72: #{tpu_custom_call.1} parent=67 // pred_fallthru
          _
      $region68: #{tpu_custom_call.1} parent=5 // pred_fallthru
        _
    $region6: #{tpu_custom_call.1} parent=1 // loop_footer
      %s22 = sadd.s32 1, %s18
    $region7: #{tpu_custom_call.1} parent=1 // loop_footer_branch
      %17 = sbr.rel target = $region3
    $region8: #{tpu_custom_call.1} parent=1 // loop_exit
      _
    %2157 = vsyncpa [#allocation3], 1
    %s2158 = scalar_lea.sflag [#allocation3], 1
    %2159 = vsyncpa %s2158, 1
    %2160 = vsyncpa [#allocation5], 1
    %s2161 = scalar_lea.sflag [#allocation5], 1
    %2162 = vsyncpa %s2161, 1
    %2163 = vsyncpa [#allocation8], 1

</llo_original>
